<compile_context>
chip_gen: v7x
topology: tpu7x:2x2x1
jax: 0.10.0
libtpu: 0.0.40
codegen_flags: <defaults>
</compile_context>

<pallas_src>
import functools
import math

import jax
import jax.numpy as jnp
from jax.experimental import pallas as pl
from jax.experimental.pallas import tpu as pltpu


# ---------------------------------------------------------------------------
# Pallas kernels
# ---------------------------------------------------------------------------
def _conv_fused_kernel(*refs, KH, KW, th, Wout, neg_slope, has_skip):
    """Fused KxK conv (as KH*KW shifted matmuls) + folded BN + LeakyReLU
    (+ optional residual add).  Grid = (batch, output-row tiles)."""
    if has_skip:
        x_ref, w_ref, b_ref, s_ref, o_ref = refs
    else:
        x_ref, w_ref, b_ref, o_ref = refs

    cin = x_ref.shape[-1]
    coutp = o_ref.shape[-1]
    t = pl.program_id(1)
    h0 = t * th                       # first output row of this tile

    acc = jnp.zeros((th * Wout, coutp), jnp.float32)
    r = 0
    for kh in range(KH):              # static unrolled loops (<= 9 iters)
        for kw in range(KW):
            lhs = x_ref[0, pl.ds(h0 + kh, th), pl.ds(kw, Wout), :]
            lhs = lhs.reshape(th * Wout, cin)
            acc = acc + jnp.dot(lhs, w_ref[r],
                                preferred_element_type=jnp.float32)
            r += 1

    y = acc + b_ref[...]                         # folded BatchNorm bias
    y = jnp.where(y >= 0, y, neg_slope * y)      # LeakyReLU
    if has_skip:                                 # fused shortcut (residual)
        y = y + s_ref[0].reshape(th * Wout, coutp).astype(jnp.float32)
    o_ref[0] = y.reshape(th, Wout, coutp).astype(o_ref.dtype)


def _add_kernel(a_ref, b_ref, o_ref):
    o_ref[...] = (a_ref[...].astype(jnp.float32)
                  + b_ref[...].astype(jnp.float32)).astype(o_ref.dtype)


# ---------------------------------------------------------------------------
# Helpers
# ---------------------------------------------------------------------------
def _round_up(v, m):
    return (v + m - 1) // m * m


def _pick_th(hout, wout, coutp, min_steps=4, budget_bytes=8 << 20):
    """Largest divisor of hout whose output tile fits a conservative VMEM
    budget while keeping >= min_steps grid steps (so pipelining overlaps)."""
    best = 1
    for th in range(1, hout + 1):
        if hout % th:
            continue
        if hout // th < min(min_steps, hout):
            continue
        # acc f32 + out/skip bf16, with 2x double-buffer margin
        tile_bytes = th * wout * coutp * 16
        if tile_bytes <= budget_bytes:
            best = th
    return best


# ---------------------------------------------------------------------------
# Wrappers around pallas_call
# ---------------------------------------------------------------------------
def conv_bn_leaky(x_nhwc, w, bn_scale, bn_bias, stride, pad,
                  neg_slope=0.1, skip=None):
    """Conv2d (no conv bias, Darknet style) + folded BN + LeakyReLU, with an
    optional fused residual add (shortcut) in the epilogue."""
    N, H, W, Cin = x_nhwc.shape
    Cout, Cin_w, KH, KW = w.shape
    assert Cin == Cin_w, (Cin, Cin_w)
    Hout = (H + 2 * pad - KH) // stride + 1
    Wout = (W + 2 * pad - KW) // stride + 1

    x_bf = x_nhwc.astype(jnp.bfloat16)
    # Fold BN scale into the weights: (Cout,Cin,KH,KW) -> (KH,KW,Cin,Cout)*scale
    wmat = jnp.transpose(w, (2, 3, 1, 0)) * bn_scale.reshape(1, 1, 1, Cout)

    if stride == 1:
        # Fused im2col path: padded NHWC image goes straight into the kernel,
        # which accumulates KH*KW shifted matmuls (1x1 convs need no padding).
        xp = jnp.pad(x_bf, ((0, 0), (pad, pad), (pad, pad), (0, 0)))
        KH_e, KW_e = KH, KW
        cin_eff = Cin
        wk = wmat.reshape(KH * KW, Cin, Cout)
    else:
        # TODO(synk): strided convs fall back to a wrapper-side im2col gather;
        # the matmul + BN + LeakyReLU epilogue still runs in the Pallas kernel.
        xp0 = jnp.pad(x_bf, ((0, 0), (pad, pad), (pad, pad), (0, 0)))
        cols = [xp0[:, kh:kh + stride * Hout:stride,
                    kw:kw + stride * Wout:stride, :]
                for kh in range(KH) for kw in range(KW)]
        xp = jnp.concatenate(cols, axis=-1)        # (N, Hout, Wout, KH*KW*Cin)
        KH_e, KW_e = 1, 1
        cin_eff = KH * KW * Cin
        wk = wmat.reshape(1, cin_eff, Cout)

    # Pad the contraction dim to a multiple of 8 (sublane friendly, zero-cost
    # numerically) and Cout to a multiple of 128 (lane-dense unmasked stores).
    cin_p = _round_up(cin_eff, 8)
    if cin_p != cin_eff:
        xp = jnp.pad(xp, ((0, 0), (0, 0), (0, 0), (0, cin_p - cin_eff)))
        wk = jnp.pad(wk, ((0, 0), (0, cin_p - cin_eff), (0, 0)))
    coutp = _round_up(Cout, 128)
    if coutp != Cout:
        wk = jnp.pad(wk, ((0, 0), (0, 0), (0, coutp - Cout)))
    wk = wk.astype(jnp.bfloat16)
    bias = jnp.pad(bn_bias, (0, coutp - Cout)).reshape(1, coutp)
    bias = bias.astype(jnp.float32)

    has_skip = skip is not None
    if has_skip:
        skip_p = skip.astype(jnp.bfloat16)
        cs = skip_p.shape[-1]
        if cs < coutp:
            skip_p = jnp.pad(skip_p, ((0, 0), (0, 0), (0, 0), (0, coutp - cs)))

    th = _pick_th(Hout, Wout, coutp)
    grid = (N, Hout // th)
    Hp, Wp = xp.shape[1], xp.shape[2]

    flops = 2 * N * Hout * Wout * (KH * KW * Cin) * Cout
    bytes_acc = (xp.size * 2 + wk.size * 2 + bias.size * 4
                 + N * Hout * Wout * coutp * 2
                 + (skip_p.size * 2 if has_skip else 0))

    inputs = [xp, wk, bias]
    in_specs = [
        pl.BlockSpec((1, Hp, Wp, cin_p), lambda n, t: (n, 0, 0, 0)),
        pl.BlockSpec((KH_e * KW_e, cin_p, coutp), lambda n, t: (0, 0, 0)),
        pl.BlockSpec((1, coutp), lambda n, t: (0, 0)),
    ]
    if has_skip:
        inputs.append(skip_p)
        in_specs.append(pl.BlockSpec((1, th, Wout, coutp),
                                     lambda n, t: (n, t, 0, 0)))

    out = pl.pallas_call(
        functools.partial(_conv_fused_kernel, KH=KH_e, KW=KW_e, th=th,
                          Wout=Wout, neg_slope=neg_slope, has_skip=has_skip),
        out_shape=jax.ShapeDtypeStruct((N, Hout, Wout, coutp), jnp.bfloat16),
        grid_spec=pltpu.PrefetchScalarGridSpec(
            num_scalar_prefetch=0,
            grid=grid,
            in_specs=in_specs,
            out_specs=pl.BlockSpec((1, th, Wout, coutp),
                                   lambda n, t: (n, t, 0, 0)),
        ),
        compiler_params=pltpu.CompilerParams(
            dimension_semantics=("parallel", "parallel"),
            vmem_limit_bytes=32 * 1024 * 1024),
        cost_estimate=pl.CostEstimate(flops=flops, transcendentals=0,
                                      bytes_accessed=int(bytes_acc)),
    )(*inputs)

    return out[..., :Cout]


def shortcut_add(x_nhwc, y_nhwc):
    """Fallback WeightedFeatureFusion (no learned weights, equal channels)."""
    N, H, W, C = x_nhwc.shape
    M = N * H * W
    a = x_nhwc.reshape(M, C)
    b = y_nhwc.reshape(M, C)
    tm = M
    for t in (1024, 512, 256, 128, 64, 32, 16, 8):
        if M % t == 0:
            tm = t
            break
    out = pl.pallas_call(
        _add_kernel,
        out_shape=jax.ShapeDtypeStruct((M, C), x_nhwc.dtype),
        grid_spec=pltpu.PrefetchScalarGridSpec(
            num_scalar_prefetch=0,
            grid=(M // tm,),
            in_specs=[pl.BlockSpec((tm, C), lambda i: (i, 0)),
                      pl.BlockSpec((tm, C), lambda i: (i, 0))],
            out_specs=pl.BlockSpec((tm, C), lambda i: (i, 0)),
        ),
        compiler_params=pltpu.CompilerParams(
            dimension_semantics=("parallel",)),
    )(a, b)
    return out.reshape(N, H, W, C)


# ---------------------------------------------------------------------------
# Darknet model (embedded synthetic cfg)
# ---------------------------------------------------------------------------
MODULE_DEFS = [
    {"type": "convolutional", "filters": 16, "size": 3, "stride": 1, "pad": 1},
    {"type": "convolutional", "filters": 32, "size": 3, "stride": 2, "pad": 1},
    {"type": "convolutional", "filters": 32, "size": 1, "stride": 1, "pad": 0},
    {"type": "convolutional", "filters": 32, "size": 3, "stride": 1, "pad": 1},
    {"type": "shortcut", "from": -3},          # WeightedFeatureFusion
    {"type": "route", "layers": [-1, -4]},     # FeatureConcat
    {"type": "convolutional", "filters": 16, "size": 1, "stride": 1, "pad": 0},
]


def init_darknet_params(key, in_channels=3):
    """Deterministic init matching Darknet.init_weights():
       conv: xavier_uniform, no bias (BN follows); BN: gamma=1, beta=0,
       running stats mean=0 / var=1 (eval-mode), eps=1e-5.
       Tracks channel counts through shortcut/route layers."""
    params = []
    channels = []            # output channels of each layer
    c_prev = in_channels
    for i, mdef in enumerate(MODULE_DEFS):
        t = mdef["type"]
        if t == "convolutional":
            cout, k = mdef["filters"], mdef["size"]
            fan_in = c_prev * k * k
            fan_out = cout * k * k
            bound = math.sqrt(6.0 / (fan_in + fan_out))
            key, sub = jax.random.split(key)
            w = jax.random.uniform(sub, (cout, c_prev, k, k), jnp.float32,
                                   -bound, bound)
            gamma = jnp.ones((cout,), jnp.float32)
            beta = jnp.zeros((cout,), jnp.float32)
            run_mean = jnp.zeros((cout,), jnp.float32)
            run_var = jnp.ones((cout,), jnp.float32)
            eps = 1e-5
            scale = gamma / jnp.sqrt(run_var + eps)
            bias = beta - run_mean * scale
            params.append({"w": w, "scale": scale, "bias": bias})
            c_prev = cout
        elif t == "shortcut":
            params.append(None)            # elementwise add keeps channels
        elif t == "route":
            params.append(None)
            c_prev = sum(c_prev if l == -1
                         else channels[i + l if l < 0 else l]
                         for l in mdef["layers"])
        else:
            params.append(None)
        channels.append(c_prev)
    return params


def _referenced_later(idx):
    """Is layer idx's output referenced by a later shortcut/route layer?"""
    for j in range(idx + 1, len(MODULE_DEFS)):
        m = MODULE_DEFS[j]
        if m["type"] == "shortcut" and j + m["from"] == idx:
            return True
        if m["type"] == "route":
            for l in m["layers"]:
                if l == -1:
                    continue
                if (j + l if l < 0 else l) == idx:
                    return True
    return False


def darknet_forward(x_nchw, params):
    """Mirrors Darknet.forward / forward_once over the embedded module defs."""
    x = jnp.transpose(x_nchw, (0, 2, 3, 1)).astype(jnp.bfloat16)  # NCHW->NHWC
    out = []
    fused_shortcut_idx = -1
    n_layers = len(MODULE_DEFS)
    for i, mdef in enumerate(MODULE_DEFS):
        t = mdef["type"]
        if t == "convolutional":
            p = params[i]
            skip = None
            # Fuse a directly-following shortcut into this conv's epilogue if
            # this conv's standalone output is never referenced later.
            if (i + 1 < n_layers and MODULE_DEFS[i + 1]["type"] == "shortcut"
                    and not _referenced_later(i)):
                nxt = MODULE_DEFS[i + 1]
                src_idx = (i + 1) + nxt["from"] if nxt["from"] < 0 else nxt["from"]
                if 0 <= src_idx < len(out):
                    cand = out[src_idx]
                    exp_h = (x.shape[1] + 2 * mdef["pad"] - mdef["size"]) \
                        // mdef["stride"] + 1
                    exp_w = (x.shape[2] + 2 * mdef["pad"] - mdef["size"]) \
                        // mdef["stride"] + 1
                    if cand.shape == (x.shape[0], exp_h, exp_w, mdef["filters"]):
                        skip = cand
                        fused_shortcut_idx = i + 1
            x = conv_bn_leaky(x, p["w"], p["scale"], p["bias"],
                              stride=mdef["stride"], pad=mdef["pad"],
                              neg_slope=0.1, skip=skip)
        elif t == "shortcut":
            if i == fused_shortcut_idx:
                fused_shortcut_idx = -1          # already added in conv epilogue
            else:
                src_idx = i + mdef["from"] if mdef["from"] < 0 else mdef["from"]
                x = shortcut_add(x, out[src_idx])
        elif t == "route":
            feats = [x if l == -1 else out[i + l if l < 0 else l]
                     for l in mdef["layers"]]
            x = jnp.concatenate(feats, axis=-1)  # channel concat (glue)
        out.append(x)
    return jnp.transpose(x, (0, 3, 1, 2)).astype(jnp.float32)  # back to NCHW


# ---------------------------------------------------------------------------
if __name__ == "__main__":
    key = jax.random.PRNGKey(0)
    key, kx = jax.random.split(key)
    x = jax.random.normal(kx, (2, 3, 16, 16), jnp.float32)  # NCHW like PyTorch

    params = init_darknet_params(key, in_channels=3)
    fwd = jax.jit(darknet_forward)
    y = fwd(x, params)
    y = jax.block_until_ready(y)

    assert y.shape == (2, 16, 8, 8), y.shape
    assert bool(jnp.all(jnp.isfinite(y)))
    print("KERNEL_OK")
</pallas_src>

<mosaic_0001>
module attributes {stable_mosaic.version = 11 : i64} {
  func.func @_conv_fused_kernel(%arg0: i32, %arg1: i32, %arg2: memref<1x18x18x8xbf16, #tpu.memory_space<vmem>>, %arg3: memref<9x8x128xbf16, #tpu.memory_space<vmem>>, %arg4: memref<1x128xf32, #tpu.memory_space<vmem>>, %arg5: memref<1x4x16x128xbf16, #tpu.memory_space<vmem>>) attributes {dimension_semantics = [#tpu.dimension_semantics<parallel>, #tpu.dimension_semantics<parallel>], iteration_bounds = array<i64: 2, 4>, scalar_prefetch = 0 : i64, scratch_operands = 0 : i64, tpu.core_type = #tpu.core_type<tc>, window_params = [{transform_indices = @transform_0, window_bounds = array<i64: 1, 18, 18, 8>}, {pipeline_mode = #tpu.pipeline_mode<synchronous>, transform_indices = @transform_1, window_bounds = array<i64: 9, 8, 128>}, {pipeline_mode = #tpu.pipeline_mode<synchronous>, transform_indices = @transform_2, window_bounds = array<i64: 1, 128>}, {transform_indices = @transform_3, window_bounds = array<i64: 1, 4, 16, 128>}]} {
    %c4_i32 = arith.constant 4 : i32
    %0 = arith.muli %arg1, %c4_i32 : i32
    %cst = arith.constant 0.000000e+00 : f32
    %1 = vector.broadcast %cst : f32 to vector<64x128xf32>
    %c0_i32 = arith.constant 0 : i32
    %2 = arith.addi %0, %c0_i32 : i32
    %c0 = arith.constant 0 : index
    %3 = arith.index_cast %2 : i32 to index
    %c0_0 = arith.constant 0 : index
    %c0_1 = arith.constant 0 : index
    %4 = vector.load %arg2[%c0, %3, %c0_0, %c0_1] : memref<1x18x18x8xbf16, #tpu.memory_space<vmem>>, vector<1x4x16x8xbf16>
    %5 = vector.shape_cast %4 : vector<1x4x16x8xbf16> to vector<4x16x8xbf16>
    %6 = vector.shape_cast %5 : vector<4x16x8xbf16> to vector<64x8xbf16>
    %c0_2 = arith.constant 0 : index
    %c0_3 = arith.constant 0 : index
    %c0_4 = arith.constant 0 : index
    %7 = vector.load %arg3[%c0_2, %c0_3, %c0_4] : memref<9x8x128xbf16, #tpu.memory_space<vmem>>, vector<1x8x128xbf16>
    %8 = vector.shape_cast %7 : vector<1x8x128xbf16> to vector<8x128xbf16>
    %cst_5 = arith.constant dense<0.000000e+00> : vector<64x128xf32>
    %9 = tpu.matmul %6, %8, %cst_5 {dimension_numbers = #tpu.dot_dimension_numbers<[1], [0], [0], [1], [0, 0, 1, 1], [], []>} : vector<64x8xbf16>, vector<8x128xbf16>, vector<64x128xf32> -> vector<64x128xf32>
    %10 = arith.addf %1, %9 : vector<64x128xf32>
    %c0_i32_6 = arith.constant 0 : i32
    %11 = arith.addi %0, %c0_i32_6 : i32
    %c0_7 = arith.constant 0 : index
    %12 = arith.index_cast %11 : i32 to index
    %c1 = arith.constant 1 : index
    %c0_8 = arith.constant 0 : index
    %13 = vector.load %arg2[%c0_7, %12, %c1, %c0_8] : memref<1x18x18x8xbf16, #tpu.memory_space<vmem>>, vector<1x4x16x8xbf16>
    %14 = vector.shape_cast %13 : vector<1x4x16x8xbf16> to vector<4x16x8xbf16>
    %15 = vector.shape_cast %14 : vector<4x16x8xbf16> to vector<64x8xbf16>
    %c1_9 = arith.constant 1 : index
    %c0_10 = arith.constant 0 : index
    %c0_11 = arith.constant 0 : index
    %16 = vector.load %arg3[%c1_9, %c0_10, %c0_11] : memref<9x8x128xbf16, #tpu.memory_space<vmem>>, vector<1x8x128xbf16>
    %17 = vector.shape_cast %16 : vector<1x8x128xbf16> to vector<8x128xbf16>
    %cst_12 = arith.constant dense<0.000000e+00> : vector<64x128xf32>
    %18 = tpu.matmul %15, %17, %cst_12 {dimension_numbers = #tpu.dot_dimension_numbers<[1], [0], [0], [1], [0, 0, 1, 1], [], []>} : vector<64x8xbf16>, vector<8x128xbf16>, vector<64x128xf32> -> vector<64x128xf32>
    %19 = arith.addf %10, %18 : vector<64x128xf32>
    %c0_i32_13 = arith.constant 0 : i32
    %20 = arith.addi %0, %c0_i32_13 : i32
    %c0_14 = arith.constant 0 : index
    %21 = arith.index_cast %20 : i32 to index
    %c2 = arith.constant 2 : index
    %c0_15 = arith.constant 0 : index
    %22 = vector.load %arg2[%c0_14, %21, %c2, %c0_15] : memref<1x18x18x8xbf16, #tpu.memory_space<vmem>>, vector<1x4x16x8xbf16>
    %23 = vector.shape_cast %22 : vector<1x4x16x8xbf16> to vector<4x16x8xbf16>
    %24 = vector.shape_cast %23 : vector<4x16x8xbf16> to vector<64x8xbf16>
    %c2_16 = arith.constant 2 : index
    %c0_17 = arith.constant 0 : index
    %c0_18 = arith.constant 0 : index
    %25 = vector.load %arg3[%c2_16, %c0_17, %c0_18] : memref<9x8x128xbf16, #tpu.memory_space<vmem>>, vector<1x8x128xbf16>
    %26 = vector.shape_cast %25 : vector<1x8x128xbf16> to vector<8x128xbf16>
    %cst_19 = arith.constant dense<0.000000e+00> : vector<64x128xf32>
    %27 = tpu.matmul %24, %26, %cst_19 {dimension_numbers = #tpu.dot_dimension_numbers<[1], [0], [0], [1], [0, 0, 1, 1], [], []>} : vector<64x8xbf16>, vector<8x128xbf16>, vector<64x128xf32> -> vector<64x128xf32>
    %28 = arith.addf %19, %27 : vector<64x128xf32>
    %c1_i32 = arith.constant 1 : i32
    %29 = arith.addi %0, %c1_i32 : i32
    %c0_20 = arith.constant 0 : index
    %30 = arith.index_cast %29 : i32 to index
    %c0_21 = arith.constant 0 : index
    %c0_22 = arith.constant 0 : index
    %31 = vector.load %arg2[%c0_20, %30, %c0_21, %c0_22] : memref<1x18x18x8xbf16, #tpu.memory_space<vmem>>, vector<1x4x16x8xbf16>
    %32 = vector.shape_cast %31 : vector<1x4x16x8xbf16> to vector<4x16x8xbf16>
    %33 = vector.shape_cast %32 : vector<4x16x8xbf16> to vector<64x8xbf16>
    %c3 = arith.constant 3 : index
    %c0_23 = arith.constant 0 : index
    %c0_24 = arith.constant 0 : index
    %34 = vector.load %arg3[%c3, %c0_23, %c0_24] : memref<9x8x128xbf16, #tpu.memory_space<vmem>>, vector<1x8x128xbf16>
    %35 = vector.shape_cast %34 : vector<1x8x128xbf16> to vector<8x128xbf16>
    %cst_25 = arith.constant dense<0.000000e+00> : vector<64x128xf32>
    %36 = tpu.matmul %33, %35, %cst_25 {dimension_numbers = #tpu.dot_dimension_numbers<[1], [0], [0], [1], [0, 0, 1, 1], [], []>} : vector<64x8xbf16>, vector<8x128xbf16>, vector<64x128xf32> -> vector<64x128xf32>
    %37 = arith.addf %28, %36 : vector<64x128xf32>
    %c1_i32_26 = arith.constant 1 : i32
    %38 = arith.addi %0, %c1_i32_26 : i32
    %c0_27 = arith.constant 0 : index
    %39 = arith.index_cast %38 : i32 to index
    %c1_28 = arith.constant 1 : index
    %c0_29 = arith.constant 0 : index
    %40 = vector.load %arg2[%c0_27, %39, %c1_28, %c0_29] : memref<1x18x18x8xbf16, #tpu.memory_space<vmem>>, vector<1x4x16x8xbf16>
    %41 = vector.shape_cast %40 : vector<1x4x16x8xbf16> to vector<4x16x8xbf16>
    %42 = vector.shape_cast %41 : vector<4x16x8xbf16> to vector<64x8xbf16>
    %c4 = arith.constant 4 : index
    %c0_30 = arith.constant 0 : index
    %c0_31 = arith.constant 0 : index
    %43 = vector.load %arg3[%c4, %c0_30, %c0_31] : memref<9x8x128xbf16, #tpu.memory_space<vmem>>, vector<1x8x128xbf16>
    %44 = vector.shape_cast %43 : vector<1x8x128xbf16> to vector<8x128xbf16>
    %cst_32 = arith.constant dense<0.000000e+00> : vector<64x128xf32>
    %45 = tpu.matmul %42, %44, %cst_32 {dimension_numbers = #tpu.dot_dimension_numbers<[1], [0], [0], [1], [0, 0, 1, 1], [], []>} : vector<64x8xbf16>, vector<8x128xbf16>, vector<64x128xf32> -> vector<64x128xf32>
    %46 = arith.addf %37, %45 : vector<64x128xf32>
    %c1_i32_33 = arith.constant 1 : i32
    %47 = arith.addi %0, %c1_i32_33 : i32
    %c0_34 = arith.constant 0 : index
    %48 = arith.index_cast %47 : i32 to index
    %c2_35 = arith.constant 2 : index
    %c0_36 = arith.constant 0 : index
    %49 = vector.load %arg2[%c0_34, %48, %c2_35, %c0_36] : memref<1x18x18x8xbf16, #tpu.memory_space<vmem>>, vector<1x4x16x8xbf16>
    %50 = vector.shape_cast %49 : vector<1x4x16x8xbf16> to vector<4x16x8xbf16>
    %51 = vector.shape_cast %50 : vector<4x16x8xbf16> to vector<64x8xbf16>
    %c5 = arith.constant 5 : index
    %c0_37 = arith.constant 0 : index
    %c0_38 = arith.constant 0 : index
    %52 = vector.load %arg3[%c5, %c0_37, %c0_38] : memref<9x8x128xbf16, #tpu.memory_space<vmem>>, vector<1x8x128xbf16>
    %53 = vector.shape_cast %52 : vector<1x8x128xbf16> to vector<8x128xbf16>
    %cst_39 = arith.constant dense<0.000000e+00> : vector<64x128xf32>
    %54 = tpu.matmul %51, %53, %cst_39 {dimension_numbers = #tpu.dot_dimension_numbers<[1], [0], [0], [1], [0, 0, 1, 1], [], []>} : vector<64x8xbf16>, vector<8x128xbf16>, vector<64x128xf32> -> vector<64x128xf32>
    %55 = arith.addf %46, %54 : vector<64x128xf32>
    %c2_i32 = arith.constant 2 : i32
    %56 = arith.addi %0, %c2_i32 : i32
    %c0_40 = arith.constant 0 : index
    %57 = arith.index_cast %56 : i32 to index
    %c0_41 = arith.constant 0 : index
    %c0_42 = arith.constant 0 : index
    %58 = vector.load %arg2[%c0_40, %57, %c0_41, %c0_42] : memref<1x18x18x8xbf16, #tpu.memory_space<vmem>>, vector<1x4x16x8xbf16>
    %59 = vector.shape_cast %58 : vector<1x4x16x8xbf16> to vector<4x16x8xbf16>
    %60 = vector.shape_cast %59 : vector<4x16x8xbf16> to vector<64x8xbf16>
    %c6 = arith.constant 6 : index
    %c0_43 = arith.constant 0 : index
    %c0_44 = arith.constant 0 : index
    %61 = vector.load %arg3[%c6, %c0_43, %c0_44] : memref<9x8x128xbf16, #tpu.memory_space<vmem>>, vector<1x8x128xbf16>
    %62 = vector.shape_cast %61 : vector<1x8x128xbf16> to vector<8x128xbf16>
    %cst_45 = arith.constant dense<0.000000e+00> : vector<64x128xf32>
    %63 = tpu.matmul %60, %62, %cst_45 {dimension_numbers = #tpu.dot_dimension_numbers<[1], [0], [0], [1], [0, 0, 1, 1], [], []>} : vector<64x8xbf16>, vector<8x128xbf16>, vector<64x128xf32> -> vector<64x128xf32>
    %64 = arith.addf %55, %63 : vector<64x128xf32>
    %c2_i32_46 = arith.constant 2 : i32
    %65 = arith.addi %0, %c2_i32_46 : i32
    %c0_47 = arith.constant 0 : index
    %66 = arith.index_cast %65 : i32 to index
    %c1_48 = arith.constant 1 : index
    %c0_49 = arith.constant 0 : index
    %67 = vector.load %arg2[%c0_47, %66, %c1_48, %c0_49] : memref<1x18x18x8xbf16, #tpu.memory_space<vmem>>, vector<1x4x16x8xbf16>
    %68 = vector.shape_cast %67 : vector<1x4x16x8xbf16> to vector<4x16x8xbf16>
    %69 = vector.shape_cast %68 : vector<4x16x8xbf16> to vector<64x8xbf16>
    %c7 = arith.constant 7 : index
    %c0_50 = arith.constant 0 : index
    %c0_51 = arith.constant 0 : index
    %70 = vector.load %arg3[%c7, %c0_50, %c0_51] : memref<9x8x128xbf16, #tpu.memory_space<vmem>>, vector<1x8x128xbf16>
    %71 = vector.shape_cast %70 : vector<1x8x128xbf16> to vector<8x128xbf16>
    %cst_52 = arith.constant dense<0.000000e+00> : vector<64x128xf32>
    %72 = tpu.matmul %69, %71, %cst_52 {dimension_numbers = #tpu.dot_dimension_numbers<[1], [0], [0], [1], [0, 0, 1, 1], [], []>} : vector<64x8xbf16>, vector<8x128xbf16>, vector<64x128xf32> -> vector<64x128xf32>
    %73 = arith.addf %64, %72 : vector<64x128xf32>
    %c2_i32_53 = arith.constant 2 : i32
    %74 = arith.addi %0, %c2_i32_53 : i32
    %c0_54 = arith.constant 0 : index
    %75 = arith.index_cast %74 : i32 to index
    %c2_55 = arith.constant 2 : index
    %c0_56 = arith.constant 0 : index
    %76 = vector.load %arg2[%c0_54, %75, %c2_55, %c0_56] : memref<1x18x18x8xbf16, #tpu.memory_space<vmem>>, vector<1x4x16x8xbf16>
    %77 = vector.shape_cast %76 : vector<1x4x16x8xbf16> to vector<4x16x8xbf16>
    %78 = vector.shape_cast %77 : vector<4x16x8xbf16> to vector<64x8xbf16>
    %c8 = arith.constant 8 : index
    %c0_57 = arith.constant 0 : index
    %c0_58 = arith.constant 0 : index
    %79 = vector.load %arg3[%c8, %c0_57, %c0_58] : memref<9x8x128xbf16, #tpu.memory_space<vmem>>, vector<1x8x128xbf16>
    %80 = vector.shape_cast %79 : vector<1x8x128xbf16> to vector<8x128xbf16>
    %cst_59 = arith.constant dense<0.000000e+00> : vector<64x128xf32>
    %81 = tpu.matmul %78, %80, %cst_59 {dimension_numbers = #tpu.dot_dimension_numbers<[1], [0], [0], [1], [0, 0, 1, 1], [], []>} : vector<64x8xbf16>, vector<8x128xbf16>, vector<64x128xf32> -> vector<64x128xf32>
    %82 = arith.addf %73, %81 : vector<64x128xf32>
    %c0_60 = arith.constant 0 : index
    %c0_61 = arith.constant 0 : index
    %83 = vector.load %arg4[%c0_60, %c0_61] : memref<1x128xf32, #tpu.memory_space<vmem>>, vector<1x128xf32>
    %84 = vector.broadcast %83 : vector<1x128xf32> to vector<64x128xf32>
    %85 = arith.addf %82, %84 : vector<64x128xf32>
    %cst_62 = arith.constant 0.000000e+00 : f32
    %86 = vector.broadcast %cst_62 : f32 to vector<64x128xf32>
    %87 = arith.cmpf oge, %85, %86 : vector<64x128xf32>
    %cst_63 = arith.constant 1.000000e-01 : f32
    %88 = vector.broadcast %cst_63 : f32 to vector<64x128xf32>
    %89 = arith.mulf %88, %85 : vector<64x128xf32>
    %90 = arith.select %87, %85, %89 : vector<64x128xi1>, vector<64x128xf32>
    %91 = vector.shape_cast %90 : vector<64x128xf32> to vector<4x16x128xf32>
    %92 = arith.truncf %91 : vector<4x16x128xf32> to vector<4x16x128xbf16>
    %c0_64 = arith.constant 0 : index
    %c0_65 = arith.constant 0 : index
    %c0_66 = arith.constant 0 : index
    %c0_67 = arith.constant 0 : index
    %93 = vector.load %arg5[%c0_64, %c0_65, %c0_66, %c0_67] : memref<1x4x16x128xbf16, #tpu.memory_space<vmem>>, vector<1x4x16x128xbf16>
    %94 = vector.shape_cast %93 : vector<1x4x16x128xbf16> to vector<4x16x128xbf16>
    %95 = vector.shape_cast %92 : vector<4x16x128xbf16> to vector<1x4x16x128xbf16>
    tpu.vector_store %arg5[%c0_64, %c0_65, %c0_66, %c0_67], %95 {strides = array<i32>} : memref<1x4x16x128xbf16, #tpu.memory_space<vmem>>, vector<1x4x16x128xbf16>,
    return
  }
  func.func @transform_0(%arg0: i32, %arg1: i32) -> (i32, i32, i32, i32) {
    %c0_i32 = arith.constant 0 : i32
    %c0_i32_0 = arith.constant 0 : i32
    %c0_i32_1 = arith.constant 0 : i32
    %c0_i32_2 = arith.constant 0 : i32
    return %arg0, %c0_i32, %c0_i32_0, %c0_i32_1 : i32, i32, i32, i32
  }
  func.func @transform_1(%arg0: i32, %arg1: i32) -> (i32, i32, i32) {
    %c0_i32 = arith.constant 0 : i32
    %c0_i32_0 = arith.constant 0 : i32
    %c0_i32_1 = arith.constant 0 : i32
    %c0_i32_2 = arith.constant 0 : i32
    return %c0_i32, %c0_i32_0, %c0_i32_1 : i32, i32, i32
  }
  func.func @transform_2(%arg0: i32, %arg1: i32) -> (i32, i32) {
    %c0_i32 = arith.constant 0 : i32
    %c0_i32_0 = arith.constant 0 : i32
    %c0_i32_1 = arith.constant 0 : i32
    return %c0_i32, %c0_i32_0 : i32, i32
  }
  func.func @transform_3(%arg0: i32, %arg1: i32) -> (i32, i32, i32, i32) {
    %c0_i32 = arith.constant 0 : i32
    %c0_i32_0 = arith.constant 0 : i32
    %c0_i32_1 = arith.constant 0 : i32
    return %arg0, %arg1, %c0_i32, %c0_i32_0 : i32, i32, i32, i32
  }
}

module attributes {stable_mosaic.version = 11 : i64} {
  func.func @_conv_fused_kernel(%arg0: i32, %arg1: i32, %arg2: memref<1x8x8x144xbf16, #tpu.memory_space<vmem>>, %arg3: memref<1x144x128xbf16, #tpu.memory_space<vmem>>, %arg4: memref<1x128xf32, #tpu.memory_space<vmem>>, %arg5: memref<1x2x8x128xbf16, #tpu.memory_space<vmem>>) attributes {dimension_semantics = [#tpu.dimension_semantics<parallel>, #tpu.dimension_semantics<parallel>], iteration_bounds = array<i64: 2, 4>, scalar_prefetch = 0 : i64, scratch_operands = 0 : i64, tpu.core_type = #tpu.core_type<tc>, window_params = [{transform_indices = @transform_0, window_bounds = array<i64: 1, 8, 8, 144>}, {pipeline_mode = #tpu.pipeline_mode<synchronous>, transform_indices = @transform_1, window_bounds = array<i64: 1, 144, 128>}, {pipeline_mode = #tpu.pipeline_mode<synchronous>, transform_indices = @transform_2, window_bounds = array<i64: 1, 128>}, {transform_indices = @transform_3, window_bounds = array<i64: 1, 2, 8, 128>}]} {
    %c2_i32 = arith.constant 2 : i32
    %0 = arith.muli %arg1, %c2_i32 : i32
    %cst = arith.constant 0.000000e+00 : f32
    %1 = vector.broadcast %cst : f32 to vector<16x128xf32>
    %c0_i32 = arith.constant 0 : i32
    %2 = arith.addi %0, %c0_i32 : i32
    %c0 = arith.constant 0 : index
    %3 = arith.index_cast %2 : i32 to index
    %c0_0 = arith.constant 0 : index
    %c0_1 = arith.constant 0 : index
    %4 = vector.load %arg2[%c0, %3, %c0_0, %c0_1] : memref<1x8x8x144xbf16, #tpu.memory_space<vmem>>, vector<1x2x8x144xbf16>
    %5 = vector.shape_cast %4 : vector<1x2x8x144xbf16> to vector<2x8x144xbf16>
    %6 = vector.shape_cast %5 : vector<2x8x144xbf16> to vector<16x144xbf16>
    %c0_2 = arith.constant 0 : index
    %c0_3 = arith.constant 0 : index
    %c0_4 = arith.constant 0 : index
    %7 = vector.load %arg3[%c0_2, %c0_3, %c0_4] : memref<1x144x128xbf16, #tpu.memory_space<vmem>>, vector<1x144x128xbf16>
    %8 = vector.shape_cast %7 : vector<1x144x128xbf16> to vector<144x128xbf16>
    %cst_5 = arith.constant dense<0.000000e+00> : vector<16x128xf32>
    %9 = tpu.matmul %6, %8, %cst_5 {dimension_numbers = #tpu.dot_dimension_numbers<[1], [0], [0], [1], [0, 0, 1, 1], [], []>} : vector<16x144xbf16>, vector<144x128xbf16>, vector<16x128xf32> -> vector<16x128xf32>
    %10 = arith.addf %1, %9 : vector<16x128xf32>
    %c0_6 = arith.constant 0 : index
    %c0_7 = arith.constant 0 : index
    %11 = vector.load %arg4[%c0_6, %c0_7] : memref<1x128xf32, #tpu.memory_space<vmem>>, vector<1x128xf32>
    %12 = vector.broadcast %11 : vector<1x128xf32> to vector<16x128xf32>
    %13 = arith.addf %10, %12 : vector<16x128xf32>
    %cst_8 = arith.constant 0.000000e+00 : f32
    %14 = vector.broadcast %cst_8 : f32 to vector<16x128xf32>
    %15 = arith.cmpf oge, %13, %14 : vector<16x128xf32>
    %cst_9 = arith.constant 1.000000e-01 : f32
    %16 = vector.broadcast %cst_9 : f32 to vector<16x128xf32>
    %17 = arith.mulf %16, %13 : vector<16x128xf32>
    %18 = arith.select %15, %13, %17 : vector<16x128xi1>, vector<16x128xf32>
    %19 = vector.shape_cast %18 : vector<16x128xf32> to vector<2x8x128xf32>
    %20 = arith.truncf %19 : vector<2x8x128xf32> to vector<2x8x128xbf16>
    %c0_10 = arith.constant 0 : index
    %c0_11 = arith.constant 0 : index
    %c0_12 = arith.constant 0 : index
    %c0_13 = arith.constant 0 : index
    %21 = vector.load %arg5[%c0_10, %c0_11, %c0_12, %c0_13] : memref<1x2x8x128xbf16, #tpu.memory_space<vmem>>, vector<1x2x8x128xbf16>
    %22 = vector.shape_cast %21 : vector<1x2x8x128xbf16> to vector<2x8x128xbf16>
    %23 = vector.shape_cast %20 : vector<2x8x128xbf16> to vector<1x2x8x128xbf16>
    tpu.vector_store %arg5[%c0_10, %c0_11, %c0_12, %c0_13], %23 {strides = array<i32>} : memref<1x2x8x128xbf16, #tpu.memory_space<vmem>>, vector<1x2x8x128xbf16>,
    return
  }
  func.func @transform_0(%arg0: i32, %arg1: i32) -> (i32, i32, i32, i32) {
    %c0_i32 = arith.constant 0 : i32
    %c0_i32_0 = arith.constant 0 : i32
    %c0_i32_1 = arith.constant 0 : i32
    %c0_i32_2 = arith.constant 0 : i32
    return %arg0, %c0_i32, %c0_i32_0, %c0_i32_1 : i32, i32, i32, i32
  }
  func.func @transform_1(%arg0: i32, %arg1: i32) -> (i32, i32, i32) {
    %c0_i32 = arith.constant 0 : i32
    %c0_i32_0 = arith.constant 0 : i32
    %c0_i32_1 = arith.constant 0 : i32
    %c0_i32_2 = arith.constant 0 : i32
    return %c0_i32, %c0_i32_0, %c0_i32_1 : i32, i32, i32
  }
  func.func @transform_2(%arg0: i32, %arg1: i32) -> (i32, i32) {
    %c0_i32 = arith.constant 0 : i32
    %c0_i32_0 = arith.constant 0 : i32
    %c0_i32_1 = arith.constant 0 : i32
    return %c0_i32, %c0_i32_0 : i32, i32
  }
  func.func @transform_3(%arg0: i32, %arg1: i32) -> (i32, i32, i32, i32) {
    %c0_i32 = arith.constant 0 : i32
    %c0_i32_0 = arith.constant 0 : i32
    %c0_i32_1 = arith.constant 0 : i32
    return %arg0, %arg1, %c0_i32, %c0_i32_0 : i32, i32, i32, i32
  }
}

module attributes {stable_mosaic.version = 11 : i64} {
  func.func @_conv_fused_kernel(%arg0: i32, %arg1: i32, %arg2: memref<1x8x8x32xbf16, #tpu.memory_space<vmem>>, %arg3: memref<1x32x128xbf16, #tpu.memory_space<vmem>>, %arg4: memref<1x128xf32, #tpu.memory_space<vmem>>, %arg5: memref<1x2x8x128xbf16, #tpu.memory_space<vmem>>) attributes {dimension_semantics = [#tpu.dimension_semantics<parallel>, #tpu.dimension_semantics<parallel>], iteration_bounds = array<i64: 2, 4>, scalar_prefetch = 0 : i64, scratch_operands = 0 : i64, tpu.core_type = #tpu.core_type<tc>, window_params = [{transform_indices = @transform_0, window_bounds = array<i64: 1, 8, 8, 32>}, {pipeline_mode = #tpu.pipeline_mode<synchronous>, transform_indices = @transform_1, window_bounds = array<i64: 1, 32, 128>}, {pipeline_mode = #tpu.pipeline_mode<synchronous>, transform_indices = @transform_2, window_bounds = array<i64: 1, 128>}, {transform_indices = @transform_3, window_bounds = array<i64: 1, 2, 8, 128>}]} {
    %c2_i32 = arith.constant 2 : i32
    %0 = arith.muli %arg1, %c2_i32 : i32
    %cst = arith.constant 0.000000e+00 : f32
    %1 = vector.broadcast %cst : f32 to vector<16x128xf32>
    %c0_i32 = arith.constant 0 : i32
    %2 = arith.addi %0, %c0_i32 : i32
    %c0 = arith.constant 0 : index
    %3 = arith.index_cast %2 : i32 to index
    %c0_0 = arith.constant 0 : index
    %c0_1 = arith.constant 0 : index
    %4 = vector.load %arg2[%c0, %3, %c0_0, %c0_1] : memref<1x8x8x32xbf16, #tpu.memory_space<vmem>>, vector<1x2x8x32xbf16>
    %5 = vector.shape_cast %4 : vector<1x2x8x32xbf16> to vector<2x8x32xbf16>
    %6 = vector.shape_cast %5 : vector<2x8x32xbf16> to vector<16x32xbf16>
    %c0_2 = arith.constant 0 : index
    %c0_3 = arith.constant 0 : index
    %c0_4 = arith.constant 0 : index
    %7 = vector.load %arg3[%c0_2, %c0_3, %c0_4] : memref<1x32x128xbf16, #tpu.memory_space<vmem>>, vector<1x32x128xbf16>
    %8 = vector.shape_cast %7 : vector<1x32x128xbf16> to vector<32x128xbf16>
    %cst_5 = arith.constant dense<0.000000e+00> : vector<16x128xf32>
    %9 = tpu.matmul %6, %8, %cst_5 {dimension_numbers = #tpu.dot_dimension_numbers<[1], [0], [0], [1], [0, 0, 1, 1], [], []>} : vector<16x32xbf16>, vector<32x128xbf16>, vector<16x128xf32> -> vector<16x128xf32>
    %10 = arith.addf %1, %9 : vector<16x128xf32>
    %c0_6 = arith.constant 0 : index
    %c0_7 = arith.constant 0 : index
    %11 = vector.load %arg4[%c0_6, %c0_7] : memref<1x128xf32, #tpu.memory_space<vmem>>, vector<1x128xf32>
    %12 = vector.broadcast %11 : vector<1x128xf32> to vector<16x128xf32>
    %13 = arith.addf %10, %12 : vector<16x128xf32>
    %cst_8 = arith.constant 0.000000e+00 : f32
    %14 = vector.broadcast %cst_8 : f32 to vector<16x128xf32>
    %15 = arith.cmpf oge, %13, %14 : vector<16x128xf32>
    %cst_9 = arith.constant 1.000000e-01 : f32
    %16 = vector.broadcast %cst_9 : f32 to vector<16x128xf32>
    %17 = arith.mulf %16, %13 : vector<16x128xf32>
    %18 = arith.select %15, %13, %17 : vector<16x128xi1>, vector<16x128xf32>
    %19 = vector.shape_cast %18 : vector<16x128xf32> to vector<2x8x128xf32>
    %20 = arith.truncf %19 : vector<2x8x128xf32> to vector<2x8x128xbf16>
    %c0_10 = arith.constant 0 : index
    %c0_11 = arith.constant 0 : index
    %c0_12 = arith.constant 0 : index
    %c0_13 = arith.constant 0 : index
    %21 = vector.load %arg5[%c0_10, %c0_11, %c0_12, %c0_13] : memref<1x2x8x128xbf16, #tpu.memory_space<vmem>>, vector<1x2x8x128xbf16>
    %22 = vector.shape_cast %21 : vector<1x2x8x128xbf16> to vector<2x8x128xbf16>
    %23 = vector.shape_cast %20 : vector<2x8x128xbf16> to vector<1x2x8x128xbf16>
    tpu.vector_store %arg5[%c0_10, %c0_11, %c0_12, %c0_13], %23 {strides = array<i32>} : memref<1x2x8x128xbf16, #tpu.memory_space<vmem>>, vector<1x2x8x128xbf16>,
    return
  }
  func.func @transform_0(%arg0: i32, %arg1: i32) -> (i32, i32, i32, i32) {
    %c0_i32 = arith.constant 0 : i32
    %c0_i32_0 = arith.constant 0 : i32
    %c0_i32_1 = arith.constant 0 : i32
    %c0_i32_2 = arith.constant 0 : i32
    return %arg0, %c0_i32, %c0_i32_0, %c0_i32_1 : i32, i32, i32, i32
  }
  func.func @transform_1(%arg0: i32, %arg1: i32) -> (i32, i32, i32) {
    %c0_i32 = arith.constant 0 : i32
    %c0_i32_0 = arith.constant 0 : i32
    %c0_i32_1 = arith.constant 0 : i32
    %c0_i32_2 = arith.constant 0 : i32
    return %c0_i32, %c0_i32_0, %c0_i32_1 : i32, i32, i32
  }
  func.func @transform_2(%arg0: i32, %arg1: i32) -> (i32, i32) {
    %c0_i32 = arith.constant 0 : i32
    %c0_i32_0 = arith.constant 0 : i32
    %c0_i32_1 = arith.constant 0 : i32
    return %c0_i32, %c0_i32_0 : i32, i32
  }
  func.func @transform_3(%arg0: i32, %arg1: i32) -> (i32, i32, i32, i32) {
    %c0_i32 = arith.constant 0 : i32
    %c0_i32_0 = arith.constant 0 : i32
    %c0_i32_1 = arith.constant 0 : i32
    return %arg0, %arg1, %c0_i32, %c0_i32_0 : i32, i32, i32, i32
  }
}

module attributes {stable_mosaic.version = 11 : i64} {
  func.func @_conv_fused_kernel(%arg0: i32, %arg1: i32, %arg2: memref<1x10x10x32xbf16, #tpu.memory_space<vmem>>, %arg3: memref<9x32x128xbf16, #tpu.memory_space<vmem>>, %arg4: memref<1x128xf32, #tpu.memory_space<vmem>>, %arg5: memref<1x2x8x128xbf16, #tpu.memory_space<vmem>>, %arg6: memref<1x2x8x128xbf16, #tpu.memory_space<vmem>>) attributes {dimension_semantics = [#tpu.dimension_semantics<parallel>, #tpu.dimension_semantics<parallel>], iteration_bounds = array<i64: 2, 4>, scalar_prefetch = 0 : i64, scratch_operands = 0 : i64, tpu.core_type = #tpu.core_type<tc>, window_params = [{transform_indices = @transform_0, window_bounds = array<i64: 1, 10, 10, 32>}, {pipeline_mode = #tpu.pipeline_mode<synchronous>, transform_indices = @transform_1, window_bounds = array<i64: 9, 32, 128>}, {pipeline_mode = #tpu.pipeline_mode<synchronous>, transform_indices = @transform_2, window_bounds = array<i64: 1, 128>}, {transform_indices = @transform_3, window_bounds = array<i64: 1, 2, 8, 128>}, {transform_indices = @transform_4, window_bounds = array<i64: 1, 2, 8, 128>}]} {
    %c2_i32 = arith.constant 2 : i32
    %0 = arith.muli %arg1, %c2_i32 : i32
    %cst = arith.constant 0.000000e+00 : f32
    %1 = vector.broadcast %cst : f32 to vector<16x128xf32>
    %c0_i32 = arith.constant 0 : i32
    %2 = arith.addi %0, %c0_i32 : i32
    %c0 = arith.constant 0 : index
    %3 = arith.index_cast %2 : i32 to index
    %c0_0 = arith.constant 0 : index
    %c0_1 = arith.constant 0 : index
    %4 = vector.load %arg2[%c0, %3, %c0_0, %c0_1] : memref<1x10x10x32xbf16, #tpu.memory_space<vmem>>, vector<1x2x8x32xbf16>
    %5 = vector.shape_cast %4 : vector<1x2x8x32xbf16> to vector<2x8x32xbf16>
    %6 = vector.shape_cast %5 : vector<2x8x32xbf16> to vector<16x32xbf16>
    %c0_2 = arith.constant 0 : index
    %c0_3 = arith.constant 0 : index
    %c0_4 = arith.constant 0 : index
    %7 = vector.load %arg3[%c0_2, %c0_3, %c0_4] : memref<9x32x128xbf16, #tpu.memory_space<vmem>>, vector<1x32x128xbf16>
    %8 = vector.shape_cast %7 : vector<1x32x128xbf16> to vector<32x128xbf16>
    %cst_5 = arith.constant dense<0.000000e+00> : vector<16x128xf32>
    %9 = tpu.matmul %6, %8, %cst_5 {dimension_numbers = #tpu.dot_dimension_numbers<[1], [0], [0], [1], [0, 0, 1, 1], [], []>} : vector<16x32xbf16>, vector<32x128xbf16>, vector<16x128xf32> -> vector<16x128xf32>
    %10 = arith.addf %1, %9 : vector<16x128xf32>
    %c0_i32_6 = arith.constant 0 : i32
    %11 = arith.addi %0, %c0_i32_6 : i32
    %c0_7 = arith.constant 0 : index
    %12 = arith.index_cast %11 : i32 to index
    %c1 = arith.constant 1 : index
    %c0_8 = arith.constant 0 : index
    %13 = vector.load %arg2[%c0_7, %12, %c1, %c0_8] : memref<1x10x10x32xbf16, #tpu.memory_space<vmem>>, vector<1x2x8x32xbf16>
    %14 = vector.shape_cast %13 : vector<1x2x8x32xbf16> to vector<2x8x32xbf16>
    %15 = vector.shape_cast %14 : vector<2x8x32xbf16> to vector<16x32xbf16>
    %c1_9 = arith.constant 1 : index
    %c0_10 = arith.constant 0 : index
    %c0_11 = arith.constant 0 : index
    %16 = vector.load %arg3[%c1_9, %c0_10, %c0_11] : memref<9x32x128xbf16, #tpu.memory_space<vmem>>, vector<1x32x128xbf16>
    %17 = vector.shape_cast %16 : vector<1x32x128xbf16> to vector<32x128xbf16>
    %cst_12 = arith.constant dense<0.000000e+00> : vector<16x128xf32>
    %18 = tpu.matmul %15, %17, %cst_12 {dimension_numbers = #tpu.dot_dimension_numbers<[1], [0], [0], [1], [0, 0, 1, 1], [], []>} : vector<16x32xbf16>, vector<32x128xbf16>, vector<16x128xf32> -> vector<16x128xf32>
    %19 = arith.addf %10, %18 : vector<16x128xf32>
    %c0_i32_13 = arith.constant 0 : i32
    %20 = arith.addi %0, %c0_i32_13 : i32
    %c0_14 = arith.constant 0 : index
    %21 = arith.index_cast %20 : i32 to index
    %c2 = arith.constant 2 : index
    %c0_15 = arith.constant 0 : index
    %22 = vector.load %arg2[%c0_14, %21, %c2, %c0_15] : memref<1x10x10x32xbf16, #tpu.memory_space<vmem>>, vector<1x2x8x32xbf16>
    %23 = vector.shape_cast %22 : vector<1x2x8x32xbf16> to vector<2x8x32xbf16>
    %24 = vector.shape_cast %23 : vector<2x8x32xbf16> to vector<16x32xbf16>
    %c2_16 = arith.constant 2 : index
    %c0_17 = arith.constant 0 : index
    %c0_18 = arith.constant 0 : index
    %25 = vector.load %arg3[%c2_16, %c0_17, %c0_18] : memref<9x32x128xbf16, #tpu.memory_space<vmem>>, vector<1x32x128xbf16>
    %26 = vector.shape_cast %25 : vector<1x32x128xbf16> to vector<32x128xbf16>
    %cst_19 = arith.constant dense<0.000000e+00> : vector<16x128xf32>
    %27 = tpu.matmul %24, %26, %cst_19 {dimension_numbers = #tpu.dot_dimension_numbers<[1], [0], [0], [1], [0, 0, 1, 1], [], []>} : vector<16x32xbf16>, vector<32x128xbf16>, vector<16x128xf32> -> vector<16x128xf32>
    %28 = arith.addf %19, %27 : vector<16x128xf32>
    %c1_i32 = arith.constant 1 : i32
    %29 = arith.addi %0, %c1_i32 : i32
    %c0_20 = arith.constant 0 : index
    %30 = arith.index_cast %29 : i32 to index
    %c0_21 = arith.constant 0 : index
    %c0_22 = arith.constant 0 : index
    %31 = vector.load %arg2[%c0_20, %30, %c0_21, %c0_22] : memref<1x10x10x32xbf16, #tpu.memory_space<vmem>>, vector<1x2x8x32xbf16>
    %32 = vector.shape_cast %31 : vector<1x2x8x32xbf16> to vector<2x8x32xbf16>
    %33 = vector.shape_cast %32 : vector<2x8x32xbf16> to vector<16x32xbf16>
    %c3 = arith.constant 3 : index
    %c0_23 = arith.constant 0 : index
    %c0_24 = arith.constant 0 : index
    %34 = vector.load %arg3[%c3, %c0_23, %c0_24] : memref<9x32x128xbf16, #tpu.memory_space<vmem>>, vector<1x32x128xbf16>
    %35 = vector.shape_cast %34 : vector<1x32x128xbf16> to vector<32x128xbf16>
    %cst_25 = arith.constant dense<0.000000e+00> : vector<16x128xf32>
    %36 = tpu.matmul %33, %35, %cst_25 {dimension_numbers = #tpu.dot_dimension_numbers<[1], [0], [0], [1], [0, 0, 1, 1], [], []>} : vector<16x32xbf16>, vector<32x128xbf16>, vector<16x128xf32> -> vector<16x128xf32>
    %37 = arith.addf %28, %36 : vector<16x128xf32>
    %c1_i32_26 = arith.constant 1 : i32
    %38 = arith.addi %0, %c1_i32_26 : i32
    %c0_27 = arith.constant 0 : index
    %39 = arith.index_cast %38 : i32 to index
    %c1_28 = arith.constant 1 : index
    %c0_29 = arith.constant 0 : index
    %40 = vector.load %arg2[%c0_27, %39, %c1_28, %c0_29] : memref<1x10x10x32xbf16, #tpu.memory_space<vmem>>, vector<1x2x8x32xbf16>
    %41 = vector.shape_cast %40 : vector<1x2x8x32xbf16> to vector<2x8x32xbf16>
    %42 = vector.shape_cast %41 : vector<2x8x32xbf16> to vector<16x32xbf16>
    %c4 = arith.constant 4 : index
    %c0_30 = arith.constant 0 : index
    %c0_31 = arith.constant 0 : index
    %43 = vector.load %arg3[%c4, %c0_30, %c0_31] : memref<9x32x128xbf16, #tpu.memory_space<vmem>>, vector<1x32x128xbf16>
    %44 = vector.shape_cast %43 : vector<1x32x128xbf16> to vector<32x128xbf16>
    %cst_32 = arith.constant dense<0.000000e+00> : vector<16x128xf32>
    %45 = tpu.matmul %42, %44, %cst_32 {dimension_numbers = #tpu.dot_dimension_numbers<[1], [0], [0], [1], [0, 0, 1, 1], [], []>} : vector<16x32xbf16>, vector<32x128xbf16>, vector<16x128xf32> -> vector<16x128xf32>
    %46 = arith.addf %37, %45 : vector<16x128xf32>
    %c1_i32_33 = arith.constant 1 : i32
    %47 = arith.addi %0, %c1_i32_33 : i32
    %c0_34 = arith.constant 0 : index
    %48 = arith.index_cast %47 : i32 to index
    %c2_35 = arith.constant 2 : index
    %c0_36 = arith.constant 0 : index
    %49 = vector.load %arg2[%c0_34, %48, %c2_35, %c0_36] : memref<1x10x10x32xbf16, #tpu.memory_space<vmem>>, vector<1x2x8x32xbf16>
    %50 = vector.shape_cast %49 : vector<1x2x8x32xbf16> to vector<2x8x32xbf16>
    %51 = vector.shape_cast %50 : vector<2x8x32xbf16> to vector<16x32xbf16>
    %c5 = arith.constant 5 : index
    %c0_37 = arith.constant 0 : index
    %c0_38 = arith.constant 0 : index
    %52 = vector.load %arg3[%c5, %c0_37, %c0_38] : memref<9x32x128xbf16, #tpu.memory_space<vmem>>, vector<1x32x128xbf16>
    %53 = vector.shape_cast %52 : vector<1x32x128xbf16> to vector<32x128xbf16>
    %cst_39 = arith.constant dense<0.000000e+00> : vector<16x128xf32>
    %54 = tpu.matmul %51, %53, %cst_39 {dimension_numbers = #tpu.dot_dimension_numbers<[1], [0], [0], [1], [0, 0, 1, 1], [], []>} : vector<16x32xbf16>, vector<32x128xbf16>, vector<16x128xf32> -> vector<16x128xf32>
    %55 = arith.addf %46, %54 : vector<16x128xf32>
    %c2_i32_40 = arith.constant 2 : i32
    %56 = arith.addi %0, %c2_i32_40 : i32
    %c0_41 = arith.constant 0 : index
    %57 = arith.index_cast %56 : i32 to index
    %c0_42 = arith.constant 0 : index
    %c0_43 = arith.constant 0 : index
    %58 = vector.load %arg2[%c0_41, %57, %c0_42, %c0_43] : memref<1x10x10x32xbf16, #tpu.memory_space<vmem>>, vector<1x2x8x32xbf16>
    %59 = vector.shape_cast %58 : vector<1x2x8x32xbf16> to vector<2x8x32xbf16>
    %60 = vector.shape_cast %59 : vector<2x8x32xbf16> to vector<16x32xbf16>
    %c6 = arith.constant 6 : index
    %c0_44 = arith.constant 0 : index
    %c0_45 = arith.constant 0 : index
    %61 = vector.load %arg3[%c6, %c0_44, %c0_45] : memref<9x32x128xbf16, #tpu.memory_space<vmem>>, vector<1x32x128xbf16>
    %62 = vector.shape_cast %61 : vector<1x32x128xbf16> to vector<32x128xbf16>
    %cst_46 = arith.constant dense<0.000000e+00> : vector<16x128xf32>
    %63 = tpu.matmul %60, %62, %cst_46 {dimension_numbers = #tpu.dot_dimension_numbers<[1], [0], [0], [1], [0, 0, 1, 1], [], []>} : vector<16x32xbf16>, vector<32x128xbf16>, vector<16x128xf32> -> vector<16x128xf32>
    %64 = arith.addf %55, %63 : vector<16x128xf32>
    %c2_i32_47 = arith.constant 2 : i32
    %65 = arith.addi %0, %c2_i32_47 : i32
    %c0_48 = arith.constant 0 : index
    %66 = arith.index_cast %65 : i32 to index
    %c1_49 = arith.constant 1 : index
    %c0_50 = arith.constant 0 : index
    %67 = vector.load %arg2[%c0_48, %66, %c1_49, %c0_50] : memref<1x10x10x32xbf16, #tpu.memory_space<vmem>>, vector<1x2x8x32xbf16>
    %68 = vector.shape_cast %67 : vector<1x2x8x32xbf16> to vector<2x8x32xbf16>
    %69 = vector.shape_cast %68 : vector<2x8x32xbf16> to vector<16x32xbf16>
    %c7 = arith.constant 7 : index
    %c0_51 = arith.constant 0 : index
    %c0_52 = arith.constant 0 : index
    %70 = vector.load %arg3[%c7, %c0_51, %c0_52] : memref<9x32x128xbf16, #tpu.memory_space<vmem>>, vector<1x32x128xbf16>
    %71 = vector.shape_cast %70 : vector<1x32x128xbf16> to vector<32x128xbf16>
    %cst_53 = arith.constant dense<0.000000e+00> : vector<16x128xf32>
    %72 = tpu.matmul %69, %71, %cst_53 {dimension_numbers = #tpu.dot_dimension_numbers<[1], [0], [0], [1], [0, 0, 1, 1], [], []>} : vector<16x32xbf16>, vector<32x128xbf16>, vector<16x128xf32> -> vector<16x128xf32>
    %73 = arith.addf %64, %72 : vector<16x128xf32>
    %c2_i32_54 = arith.constant 2 : i32
    %74 = arith.addi %0, %c2_i32_54 : i32
    %c0_55 = arith.constant 0 : index
    %75 = arith.index_cast %74 : i32 to index
    %c2_56 = arith.constant 2 : index
    %c0_57 = arith.constant 0 : index
    %76 = vector.load %arg2[%c0_55, %75, %c2_56, %c0_57] : memref<1x10x10x32xbf16, #tpu.memory_space<vmem>>, vector<1x2x8x32xbf16>
    %77 = vector.shape_cast %76 : vector<1x2x8x32xbf16> to vector<2x8x32xbf16>
    %78 = vector.shape_cast %77 : vector<2x8x32xbf16> to vector<16x32xbf16>
    %c8 = arith.constant 8 : index
    %c0_58 = arith.constant 0 : index
    %c0_59 = arith.constant 0 : index
    %79 = vector.load %arg3[%c8, %c0_58, %c0_59] : memref<9x32x128xbf16, #tpu.memory_space<vmem>>, vector<1x32x128xbf16>
    %80 = vector.shape_cast %79 : vector<1x32x128xbf16> to vector<32x128xbf16>
    %cst_60 = arith.constant dense<0.000000e+00> : vector<16x128xf32>
    %81 = tpu.matmul %78, %80, %cst_60 {dimension_numbers = #tpu.dot_dimension_numbers<[1], [0], [0], [1], [0, 0, 1, 1], [], []>} : vector<16x32xbf16>, vector<32x128xbf16>, vector<16x128xf32> -> vector<16x128xf32>
    %82 = arith.addf %73, %81 : vector<16x128xf32>
    %c0_61 = arith.constant 0 : index
    %c0_62 = arith.constant 0 : index
    %83 = vector.load %arg4[%c0_61, %c0_62] : memref<1x128xf32, #tpu.memory_space<vmem>>, vector<1x128xf32>
    %84 = vector.broadcast %83 : vector<1x128xf32> to vector<16x128xf32>
    %85 = arith.addf %82, %84 : vector<16x128xf32>
    %cst_63 = arith.constant 0.000000e+00 : f32
    %86 = vector.broadcast %cst_63 : f32 to vector<16x128xf32>
    %87 = arith.cmpf oge, %85, %86 : vector<16x128xf32>
    %cst_64 = arith.constant 1.000000e-01 : f32
    %88 = vector.broadcast %cst_64 : f32 to vector<16x128xf32>
    %89 = arith.mulf %88, %85 : vector<16x128xf32>
    %90 = arith.select %87, %85, %89 : vector<16x128xi1>, vector<16x128xf32>
    %c0_65 = arith.constant 0 : index
    %c0_66 = arith.constant 0 : index
    %c0_67 = arith.constant 0 : index
    %c0_68 = arith.constant 0 : index
    %91 = vector.load %arg5[%c0_65, %c0_66, %c0_67, %c0_68] : memref<1x2x8x128xbf16, #tpu.memory_space<vmem>>, vector<1x2x8x128xbf16>
    %92 = vector.shape_cast %91 : vector<1x2x8x128xbf16> to vector<2x8x128xbf16>
    %93 = vector.shape_cast %92 : vector<2x8x128xbf16> to vector<16x128xbf16>
    %94 = arith.extf %93 : vector<16x128xbf16> to vector<16x128xf32>
    %95 = arith.addf %90, %94 : vector<16x128xf32>
    %96 = vector.shape_cast %95 : vector<16x128xf32> to vector<2x8x128xf32>
    %97 = arith.truncf %96 : vector<2x8x128xf32> to vector<2x8x128xbf16>
    %c0_69 = arith.constant 0 : index
    %c0_70 = arith.constant 0 : index
    %c0_71 = arith.constant 0 : index
    %c0_72 = arith.constant 0 : index
    %98 = vector.load %arg6[%c0_69, %c0_70, %c0_71, %c0_72] : memref<1x2x8x128xbf16, #tpu.memory_space<vmem>>, vector<1x2x8x128xbf16>
    %99 = vector.shape_cast %98 : vector<1x2x8x128xbf16> to vector<2x8x128xbf16>
    %100 = vector.shape_cast %97 : vector<2x8x128xbf16> to vector<1x2x8x128xbf16>
    tpu.vector_store %arg6[%c0_69, %c0_70, %c0_71, %c0_72], %100 {strides = array<i32>} : memref<1x2x8x128xbf16, #tpu.memory_space<vmem>>, vector<1x2x8x128xbf16>,
    return
  }
  func.func @transform_0(%arg0: i32, %arg1: i32) -> (i32, i32, i32, i32) {
    %c0_i32 = arith.constant 0 : i32
    %c0_i32_0 = arith.constant 0 : i32
    %c0_i32_1 = arith.constant 0 : i32
    %c0_i32_2 = arith.constant 0 : i32
    return %arg0, %c0_i32, %c0_i32_0, %c0_i32_1 : i32, i32, i32, i32
  }
  func.func @transform_1(%arg0: i32, %arg1: i32) -> (i32, i32, i32) {
    %c0_i32 = arith.constant 0 : i32
    %c0_i32_0 = arith.constant 0 : i32
    %c0_i32_1 = arith.constant 0 : i32
    %c0_i32_2 = arith.constant 0 : i32
    return %c0_i32, %c0_i32_0, %c0_i32_1 : i32, i32, i32
  }
  func.func @transform_2(%arg0: i32, %arg1: i32) -> (i32, i32) {
    %c0_i32 = arith.constant 0 : i32
    %c0_i32_0 = arith.constant 0 : i32
    %c0_i32_1 = arith.constant 0 : i32
    return %c0_i32, %c0_i32_0 : i32, i32
  }
  func.func @transform_3(%arg0: i32, %arg1: i32) -> (i32, i32, i32, i32) {
    %c0_i32 = arith.constant 0 : i32
    %c0_i32_0 = arith.constant 0 : i32
    %c0_i32_1 = arith.constant 0 : i32
    return %arg0, %arg1, %c0_i32, %c0_i32_0 : i32, i32, i32, i32
  }
  func.func @transform_4(%arg0: i32, %arg1: i32) -> (i32, i32, i32, i32) {
    %c0_i32 = arith.constant 0 : i32
    %c0_i32_0 = arith.constant 0 : i32
    %c0_i32_1 = arith.constant 0 : i32
    return %arg0, %arg1, %c0_i32, %c0_i32_0 : i32, i32, i32, i32
  }
}

module attributes {stable_mosaic.version = 11 : i64} {
  func.func @_conv_fused_kernel(%arg0: i32, %arg1: i32, %arg2: memref<1x8x8x64xbf16, #tpu.memory_space<vmem>>, %arg3: memref<1x64x128xbf16, #tpu.memory_space<vmem>>, %arg4: memref<1x128xf32, #tpu.memory_space<vmem>>, %arg5: memref<1x2x8x128xbf16, #tpu.memory_space<vmem>>) attributes {dimension_semantics = [#tpu.dimension_semantics<parallel>, #tpu.dimension_semantics<parallel>], iteration_bounds = array<i64: 2, 4>, scalar_prefetch = 0 : i64, scratch_operands = 0 : i64, tpu.core_type = #tpu.core_type<tc>, window_params = [{transform_indices = @transform_0, window_bounds = array<i64: 1, 8, 8, 64>}, {pipeline_mode = #tpu.pipeline_mode<synchronous>, transform_indices = @transform_1, window_bounds = array<i64: 1, 64, 128>}, {pipeline_mode = #tpu.pipeline_mode<synchronous>, transform_indices = @transform_2, window_bounds = array<i64: 1, 128>}, {transform_indices = @transform_3, window_bounds = array<i64: 1, 2, 8, 128>}]} {
    %c2_i32 = arith.constant 2 : i32
    %0 = arith.muli %arg1, %c2_i32 : i32
    %cst = arith.constant 0.000000e+00 : f32
    %1 = vector.broadcast %cst : f32 to vector<16x128xf32>
    %c0_i32 = arith.constant 0 : i32
    %2 = arith.addi %0, %c0_i32 : i32
    %c0 = arith.constant 0 : index
    %3 = arith.index_cast %2 : i32 to index
    %c0_0 = arith.constant 0 : index
    %c0_1 = arith.constant 0 : index
    %4 = vector.load %arg2[%c0, %3, %c0_0, %c0_1] : memref<1x8x8x64xbf16, #tpu.memory_space<vmem>>, vector<1x2x8x64xbf16>
    %5 = vector.shape_cast %4 : vector<1x2x8x64xbf16> to vector<2x8x64xbf16>
    %6 = vector.shape_cast %5 : vector<2x8x64xbf16> to vector<16x64xbf16>
    %c0_2 = arith.constant 0 : index
    %c0_3 = arith.constant 0 : index
    %c0_4 = arith.constant 0 : index
    %7 = vector.load %arg3[%c0_2, %c0_3, %c0_4] : memref<1x64x128xbf16, #tpu.memory_space<vmem>>, vector<1x64x128xbf16>
    %8 = vector.shape_cast %7 : vector<1x64x128xbf16> to vector<64x128xbf16>
    %cst_5 = arith.constant dense<0.000000e+00> : vector<16x128xf32>
    %9 = tpu.matmul %6, %8, %cst_5 {dimension_numbers = #tpu.dot_dimension_numbers<[1], [0], [0], [1], [0, 0, 1, 1], [], []>} : vector<16x64xbf16>, vector<64x128xbf16>, vector<16x128xf32> -> vector<16x128xf32>
    %10 = arith.addf %1, %9 : vector<16x128xf32>
    %c0_6 = arith.constant 0 : index
    %c0_7 = arith.constant 0 : index
    %11 = vector.load %arg4[%c0_6, %c0_7] : memref<1x128xf32, #tpu.memory_space<vmem>>, vector<1x128xf32>
    %12 = vector.broadcast %11 : vector<1x128xf32> to vector<16x128xf32>
    %13 = arith.addf %10, %12 : vector<16x128xf32>
    %cst_8 = arith.constant 0.000000e+00 : f32
    %14 = vector.broadcast %cst_8 : f32 to vector<16x128xf32>
    %15 = arith.cmpf oge, %13, %14 : vector<16x128xf32>
    %cst_9 = arith.constant 1.000000e-01 : f32
    %16 = vector.broadcast %cst_9 : f32 to vector<16x128xf32>
    %17 = arith.mulf %16, %13 : vector<16x128xf32>
    %18 = arith.select %15, %13, %17 : vector<16x128xi1>, vector<16x128xf32>
    %19 = vector.shape_cast %18 : vector<16x128xf32> to vector<2x8x128xf32>
    %20 = arith.truncf %19 : vector<2x8x128xf32> to vector<2x8x128xbf16>
    %c0_10 = arith.constant 0 : index
    %c0_11 = arith.constant 0 : index
    %c0_12 = arith.constant 0 : index
    %c0_13 = arith.constant 0 : index
    %21 = vector.load %arg5[%c0_10, %c0_11, %c0_12, %c0_13] : memref<1x2x8x128xbf16, #tpu.memory_space<vmem>>, vector<1x2x8x128xbf16>
    %22 = vector.shape_cast %21 : vector<1x2x8x128xbf16> to vector<2x8x128xbf16>
    %23 = vector.shape_cast %20 : vector<2x8x128xbf16> to vector<1x2x8x128xbf16>
    tpu.vector_store %arg5[%c0_10, %c0_11, %c0_12, %c0_13], %23 {strides = array<i32>} : memref<1x2x8x128xbf16, #tpu.memory_space<vmem>>, vector<1x2x8x128xbf16>,
    return
  }
  func.func @transform_0(%arg0: i32, %arg1: i32) -> (i32, i32, i32, i32) {
    %c0_i32 = arith.constant 0 : i32
    %c0_i32_0 = arith.constant 0 : i32
    %c0_i32_1 = arith.constant 0 : i32
    %c0_i32_2 = arith.constant 0 : i32
    return %arg0, %c0_i32, %c0_i32_0, %c0_i32_1 : i32, i32, i32, i32
  }
  func.func @transform_1(%arg0: i32, %arg1: i32) -> (i32, i32, i32) {
    %c0_i32 = arith.constant 0 : i32
    %c0_i32_0 = arith.constant 0 : i32
    %c0_i32_1 = arith.constant 0 : i32
    %c0_i32_2 = arith.constant 0 : i32
    return %c0_i32, %c0_i32_0, %c0_i32_1 : i32, i32, i32
  }
  func.func @transform_2(%arg0: i32, %arg1: i32) -> (i32, i32) {
    %c0_i32 = arith.constant 0 : i32
    %c0_i32_0 = arith.constant 0 : i32
    %c0_i32_1 = arith.constant 0 : i32
    return %c0_i32, %c0_i32_0 : i32, i32
  }
  func.func @transform_3(%arg0: i32, %arg1: i32) -> (i32, i32, i32, i32) {
    %c0_i32 = arith.constant 0 : i32
    %c0_i32_0 = arith.constant 0 : i32
    %c0_i32_1 = arith.constant 0 : i32
    return %arg0, %arg1, %c0_i32, %c0_i32_0 : i32, i32, i32, i32
  }
}

</mosaic_0001>

<llo_original>
// kernel: darknet_forward.6
$region0: #{darknet_forward.6}
  #allocation0 [shape = 'u32[]', space=smem, size = 0x4, offset = 0x4, fixed_abs, tag = 'smem constant byte address 0x4 - core index']
  #allocation1 [shape = 'u32[144,128]{1,0:T(1,128)}', space=vmem, size = 0x12000, scoped, tag = 'internal scratch']
  %s0 = inlined_call_operand.vmem [shape: bf16[2,8,8,144], index: 0, kind: input, shape index: {}]
  %s1 = inlined_call_operand.vmem [shape: bf16[1,144,128], index: 1, kind: input, shape index: {}]
  %s2 = inlined_call_operand.vmem [shape: f32[1,128], index: 2, kind: input, shape index: {}]
  %s3 = inlined_call_operand.vmem [shape: bf16[2,8,8,128], index: 3, kind: output, shape index: {}]
  %s4 = sld [smem:[#allocation0]]
  $region45: #{darknet_forward.6} parent=0
    _
  %s6 = ssub.s32 1, %s4
  %s7 = scalar_select 0, %s6, %s4
  loop: start=0, step=1, limit=10
  $region2: #{darknet_forward.6} parent=0 // loop_pre_header
    _
  $region3: #{darknet_forward.6} parent=0 // loop_header
    %s9 = sphi 0, %s13
    %p10 = scmp.ge.s32.totalorder %s9, 10
    %s16 = sphi 0, %s28
    %s17 = sphi 0, %s24
    %s18 = sphi 0, %s16
    %s19 = sphi 0, %s17
    %s20 = sphi 0, %s18
    %s21 = sphi 0, %s19
    %s31 = sphi 0, %s33
    %s34 = sphi 0, %s31
    %s35 = sphi 0, %s34
    %s51 = sphi 0, %s35
    %s55 = sphi 0, %s55
    %s57 = sphi 0, %s55
    %s58 = sphi 0, %s57
    %s72 = sphi 0, %s58
    %s76 = sphi 0, %s76
    %s78 = sphi 0, %s76
    %s79 = sphi 0, %s78
    %s93 = sphi 0, %s79
    %s101 = sphi 0, %s103
    %s104 = sphi 0, %s101
    %s105 = sphi 0, %s104
    %s121 = sphi 0, %s105
  $region4: #{darknet_forward.6} parent=0 // loop_header_branch
    %12 = sbr.rel (%p10) target = $region8
  $region5: #{darknet_forward.6} parent=0 // loop_body
    %s14 = ssub.s32 %s9, 1
    %s15 = ssub.s32 %s9, 2
    %s22 = sadd.s32 1, %s17
    %p23 = scmp.ge.s32.totalorder %s22, 4
    %s24 = scalar_select %p23, 0, %s22
    %s25 = sadd.s32 1, %s16
    %s26 = scalar_select %p23, %s25, %s16
    %p27 = scmp.ge.s32.totalorder %s26, 2
    %s28 = scalar_select %p27, 0, %s26
    %s29 = ssub.s32 %s16, %s28
    %p30 = scmp.eq.s32.totalorder %s29, 0
    %s32 = sadd.s32 %s31, 1
    %s33 = scalar_select %p30, %s31, %s32
    %p36 = pneg %p30
    %p37 = scmp.eq.s32.totalorder %s9, 7
    %p38 = por %p36, %p37
    %p39 = scmp.ne.s32.totalorder %s31, %s34
    %p40 = scmp.eq.s32.totalorder %s9, 0
    %p41 = por %p39, %p40
    %p42 = scmp.ne.s32.totalorder %s31, %s34
    %p43 = scmp.eq.s32.totalorder %s14, 7
    %p44 = por %p42, %p43
    %p45 = scmp.ne.s32.totalorder %s34, %s35
    %p46 = scmp.eq.s32.totalorder %s14, 0
    %p47 = por %p45, %p46
    %p48 = scmp.ne.s32.totalorder %s34, %s35
    %p49 = scmp.eq.s32.totalorder %s15, 7
    %p50 = por %p48, %p49
    %p52 = scmp.ne.s32.totalorder %s35, %s51
    %p53 = scmp.eq.s32.totalorder %s15, 0
    %p54 = por %p52, %p53
    %s56 = sadd.s32 %s55, 1
    %p59 = scmp.eq.s32.totalorder %s9, 7
    %p60 = scmp.ne.s32.totalorder %s55, %s57
    %p61 = scmp.eq.s32.totalorder %s9, 0
    %p62 = por %p60, %p61
    %p63 = scmp.ne.s32.totalorder %s55, %s57
    %p64 = scmp.eq.s32.totalorder %s14, 7
    %p65 = por %p63, %p64
    %p66 = scmp.ne.s32.totalorder %s57, %s58
    %p67 = scmp.eq.s32.totalorder %s14, 0
    %p68 = por %p66, %p67
    %p69 = scmp.ne.s32.totalorder %s57, %s58
    %p70 = scmp.eq.s32.totalorder %s15, 7
    %p71 = por %p69, %p70
    %p73 = scmp.ne.s32.totalorder %s58, %s72
    %p74 = scmp.eq.s32.totalorder %s15, 0
    %p75 = por %p73, %p74
    %s77 = sadd.s32 %s76, 1
    %p80 = scmp.eq.s32.totalorder %s9, 7
    %p81 = scmp.ne.s32.totalorder %s76, %s78
    %p82 = scmp.eq.s32.totalorder %s9, 0
    %p83 = por %p81, %p82
    %p84 = scmp.ne.s32.totalorder %s76, %s78
    %p85 = scmp.eq.s32.totalorder %s14, 7
    %p86 = por %p84, %p85
    %p87 = scmp.ne.s32.totalorder %s78, %s79
    %p88 = scmp.eq.s32.totalorder %s14, 0
    %p89 = por %p87, %p88
    %p90 = scmp.ne.s32.totalorder %s78, %s79
    %p91 = scmp.eq.s32.totalorder %s15, 7
    %p92 = por %p90, %p91
    %p94 = scmp.ne.s32.totalorder %s79, %s93
    %p95 = scmp.eq.s32.totalorder %s15, 0
    %p96 = por %p94, %p95
    %s97 = ssub.s32 %s16, %s28
    %s98 = ssub.s32 %s17, %s24
    %s99 = sor.u32 %s97, %s98
    %p100 = scmp.eq.s32.totalorder %s99, 0
    %s102 = sadd.s32 %s101, 1
    %s103 = scalar_select %p100, %s101, %s102
    %p106 = pneg %p100
    %p107 = scmp.eq.s32.totalorder %s9, 7
    %p108 = por %p106, %p107
    %p109 = scmp.ne.s32.totalorder %s101, %s104
    %p110 = scmp.eq.s32.totalorder %s9, 0
    %p111 = por %p109, %p110
    %p112 = scmp.ne.s32.totalorder %s101, %s104
    %p113 = scmp.eq.s32.totalorder %s14, 7
    %p114 = por %p112, %p113
    %p115 = scmp.ne.s32.totalorder %s104, %s105
    %p116 = scmp.eq.s32.totalorder %s14, 0
    %p117 = por %p115, %p116
    %p118 = scmp.ne.s32.totalorder %s104, %s105
    %p119 = scmp.eq.s32.totalorder %s15, 7
    %p120 = por %p118, %p119
    %p122 = scmp.ne.s32.totalorder %s105, %s121
    %p123 = scmp.eq.s32.totalorder %s15, 0
    %p124 = por %p122, %p123
    %p125 = scmp.le.s32.totalorder 1, %s9
    %p126 = scmp.lt.s32.totalorder %s9, 9
    %p127 = pnand %p125, %p126
    %p128 = pneg %p127
    // Predicated region
    $region9: #{darknet_forward.6} parent=5 // pred_check
      _
    $region10: #{darknet_forward.6} parent=5 // pred_check_branch
      %130 = sbr.rel (%p127) target = $region12
    $region11: #{darknet_forward.6} parent=5 // pred_region
      %s131 = ssub.s32 %s9, 1
      // Predicated region
      $region13: #{darknet_forward.6} parent=11 // pred_check
        %p132 = pneg %p68
      $region14: #{darknet_forward.6} parent=11 // pred_check_branch
        %134 = sbr.rel (%p132) target = $region16
      $region15: #{darknet_forward.6} parent=11 // pred_region
        _
      $region16: #{darknet_forward.6} parent=11 // pred_fallthru
        _
      // Predicated region
      $region17: #{darknet_forward.6} parent=11 // pred_check
        %p135 = pneg %p89
      $region18: #{darknet_forward.6} parent=11 // pred_check_branch
        %137 = sbr.rel (%p135) target = $region20
      $region19: #{darknet_forward.6} parent=11 // pred_region
        _
      $region20: #{darknet_forward.6} parent=11 // pred_fallthru
        _
    $region12: #{darknet_forward.6} parent=5 // pred_fallthru
      _
    %p138 = scmp.lt.s32.totalorder %s9, 8
    // Predicated region
    $region21: #{darknet_forward.6} parent=5 // pred_check
      %p139 = pneg %p138
    $region22: #{darknet_forward.6} parent=5 // pred_check_branch
      %141 = sbr.rel (%p139) target = $region24
    $region23: #{darknet_forward.6} parent=5 // pred_region
      // Predicated region
      $region25: #{darknet_forward.6} parent=23 // pred_check
        %p142 = pneg %p41
      $region26: #{darknet_forward.6} parent=23 // pred_check_branch
        %144 = sbr.rel (%p142) target = $region28
      $region27: #{darknet_forward.6} parent=23 // pred_region
        %p145 = scmp.lt.s32.totalorder %s16, 1
        %s146 = scalar_select %p145, %s16, 1
        %s147 = smul.addr %s146, 16
        %s148 = smul.addr %s147, 4
        %s149 = scalar_lea.vmem %s0, %s148
      $region28: #{darknet_forward.6} parent=23 // pred_fallthru
        _
    $region24: #{darknet_forward.6} parent=5 // pred_fallthru
      _
    %p150 = scmp.le.s32.totalorder 1, %s9
    %p151 = scmp.lt.s32.totalorder %s9, 9
    %p152 = pnand %p150, %p151
    %p153 = pneg %p152
    // Predicated region
    $region29: #{darknet_forward.6} parent=5 // pred_check
      _
    $region30: #{darknet_forward.6} parent=5 // pred_check_branch
      %155 = sbr.rel (%p152) target = $region32
    $region31: #{darknet_forward.6} parent=5 // pred_region
      %s156 = ssub.s32 %s9, 1
      %p157 = scmp.lt.s32.totalorder %s18, 1
      %s158 = scalar_select %p157, %s18, 1
      %s159 = smul.addr %s158, 16
      %s160 = smul.addr %s159, 4
      %s161 = scalar_lea.vmem %s0, %s160
      %p162 = pneg %p47
      %p163 = pneg %p44
      %p164 = pneg %p68
      %p165 = pneg %p65
      %p166 = pneg %p89
      %p167 = pneg %p86
      %p168 = pneg %p117
      %p169 = pneg %p114
      %s170 = smul.u32 2, %s19
      %p171 = scmp.lt.s32.totalorder %s18, 1
      %s172 = scalar_select %p171, %s18, 1
      %p173 = scmp.lt.s32.totalorder %s170, 7
      %s174 = scalar_select %p173, %s170, 7
      %s175 = smul.addr %s172, 8
      %s176 = sadd.s32 %s174, %s175
      %s177 = smul.addr %s176, 4
      %s178 = scalar_lea.vmem %s3, %s177
      %p179 = scmp.lt.s32.totalorder %s18, 1
      %s180 = scalar_select %p179, %s18, 1
      %s181 = smul.addr %s180, 16
      %s182 = smul.addr %s181, 4
      %s183 = scalar_lea.vmem %s0, %s182
      %s184 = smul.u32 2, %s19
      %p185 = scmp.lt.s32.totalorder %s18, 1
      %s186 = scalar_select %p185, %s18, 1
      %p187 = scmp.lt.s32.totalorder %s184, 7
      %s188 = scalar_select %p187, %s184, 7
      %s189 = smul.addr %s186, 8
      %s190 = sadd.s32 %s188, %s189
      %s191 = smul.addr %s190, 4
      %s192 = scalar_lea.vmem %s3, %s191
      %s193 = smul.u32 2, %s19
      %s195 = smul.u32 %s19, 2
      %s196 = smul.u32 %s195, 2
      %s197 = smul.addr %s196, 4
      %s198 = scalar_lea.vmem %s183, %s197
      %v199 = vld [vmem:[%s198] sm:$0xff]
      %v200 = vld [vmem:[%s198 + $0x8] sm:$0xff]
      %v201 = vld [vmem:[%s1] sm:$0xf]
      %v202 = vld [vmem:[%s1 + $0x4] sm:$0xf]
      %v203 = vld [vmem:[%s1 + $0x8] sm:$0xf]
      %v204 = vld [vmem:[%s1 + $0xc] sm:$0xf]
      %v205 = vld [vmem:[%s1 + $0x10] sm:$0xf]
      %v206 = vld [vmem:[%s1 + $0x14] sm:$0xf]
      %v207 = vld [vmem:[%s1 + $0x18] sm:$0xf]
      %v208 = vld [vmem:[%s1 + $0x1c] sm:$0xf]
      %v209 = vld [vmem:[%s1 + $0x20] sm:$0xf]
      %v210 = vld [vmem:[%s1 + $0x24] sm:$0xf]
      %v211 = vld [vmem:[%s1 + $0x28] sm:$0xf]
      %v212 = vld [vmem:[%s1 + $0x2c] sm:$0xf]
      %v213 = vld [vmem:[%s1 + $0x30] sm:$0xf]
      %v214 = vld [vmem:[%s1 + $0x34] sm:$0xf]
      %v215 = vld [vmem:[%s1 + $0x38] sm:$0xf]
      %v216 = vld [vmem:[%s1 + $0x3c] sm:$0xf]
      %v217 = vld [vmem:[%s1 + $0x40] sm:$0xf]
      %v218 = vld [vmem:[%s1 + $0x44] sm:$0xf]
      %v219 = vld [vmem:[%s2] sm:$0x1]
      %v221 = vlaneseq
      %v222 = vshrl.u32 %v221, 7
      %v223 = vsub.s32 0, %v222
      %v224 = vrot.slane %v219, %v223
      %v228 = vunpack.c.l.b16 %v199
      %v229 = vunpack.c.h.b16 %v199
      %v230 = vunpack.c.l.b16 %v200
      %v231 = vunpack.c.h.b16 %v200
      %v232 = vpack.c.b16 %v230, %v228
      %v233 = vpack.c.b16 %v231, %v229
      %v253 = vunpack.c.l.b16 %v201
      %v254 = vunpack.c.l.b16 %v202
      %v255 = vunpack.c.l.b16 %v203
      %v256 = vunpack.c.l.b16 %v204
      %v257 = vunpack.c.l.b16 %v205
      %v258 = vunpack.c.l.b16 %v206
      %v259 = vunpack.c.l.b16 %v207
      %v260 = vunpack.c.l.b16 %v208
      %v261 = vunpack.c.l.b16 %v209
      %v262 = vunpack.c.l.b16 %v210
      %v263 = vunpack.c.l.b16 %v211
      %v264 = vunpack.c.l.b16 %v212
      %v265 = vunpack.c.l.b16 %v213
      %v266 = vunpack.c.l.b16 %v214
      %v267 = vunpack.c.l.b16 %v215
      %v268 = vunpack.c.l.b16 %v216
      %v269 = vunpack.c.l.b16 %v217
      %v270 = vunpack.c.l.b16 %v218
      %v271 = vpack.c.b16 %v254, %v253
      %v272 = vpack.c.b16 %v256, %v255
      %v273 = vpack.c.b16 %v258, %v257
      %v274 = vpack.c.b16 %v260, %v259
      %v275 = vpack.c.b16 %v262, %v261
      %v276 = vpack.c.b16 %v264, %v263
      %v277 = vpack.c.b16 %v266, %v265
      %v278 = vpack.c.b16 %v268, %v267
      %v279 = vpack.c.b16 %v270, %v269
      %vm289 = vcmask 130048
      %v291 = vsel %vm289, %v233, 0
      %293 = vmatprep.subr.bf16.mxu0 0
      %294 = vmatpush1.bf16.msra.mxu0 %v271
      %295 = vmatprep.subr.bf16.mxu0 0
      %296 = vmatpush1.bf16.msra.mxu0 %v272
      %297 = vmatprep.subr.bf16.mxu0 0
      %298 = vmatpush1.bf16.msra.mxu0 %v273
      %299 = vmatprep.subr.bf16.mxu0 0
      %300 = vmatpush1.bf16.msra.mxu0 %v274
      %301 = vmatprep.subr.bf16.mxu0 0
      %302 = vmatpush1.bf16.msra.mxu0 %v275
      %303 = vmatprep.subr.bf16.mxu0 0
      %304 = vmatpush1.bf16.msra.mxu0 %v276
      %305 = vmatprep.subr.bf16.mxu0 0
      %306 = vmatpush1.bf16.msra.mxu0 %v277
      %307 = vmatprep.subr.bf16.mxu0 0
      %308 = vmatpush1.bf16.msra.mxu0 %v278
      %309 = vmatprep.subr.bf16.mxu0 0
      %310 = vmatpush1.bf16.msra.mxu0 %v279
      %311 = vmatprep.subr.bf16.mxu0 0
      %312 = vmatpush1.bf16.msra.mxu0 0
      %313 = vmatprep.subr.bf16.mxu0 0
      %314 = vmatpush1.bf16.msra.mxu0 0
      %315 = vmatprep.subr.bf16.mxu0 0
      %316 = vmatpush1.bf16.msra.mxu0 0
      %317 = vmatprep.subr.bf16.mxu0 0
      %318 = vmatpush1.bf16.msra.mxu0 0
      %319 = vmatprep.subr.bf16.mxu0 0
      %320 = vmatpush1.bf16.msra.mxu0 0
      %321 = vmatprep.subr.bf16.mxu0 0
      %322 = vmatpush1.bf16.msra.mxu0 0
      %323 = vmatprep.subr.bf16.mxu0 0
      %324 = vmatpush1.bf16.msra.mxu0 0
      %325 = vmatprep.mubr.bf16.mxu0 %v291
      %326 = vmatmul.mubr.bf16.gmra.mrb[0].mxu0 %v232
      %v327 = vpop.f32.mrb[0].mxu0
      %v328 = vadd.f32 %v224, %v327
      %v329 = vpop.f32.mrb[0].mxu0
      %v330 = vpop.f32.mrb[0].mxu0
      %v331 = vadd.f32 %v224, %v330
      %v332 = vpop.f32.mrb[0].mxu0
      %333 = vdwg.mxu0
      %vm334 = vcmp.ge.f32.partialorder %v328, 0.0
      %vm335 = vcmp.ge.f32.partialorder %v331, 0.0
      %v336 = vmul.f32 %v328, 0.1
      %v337 = vmul.f32 %v331, 0.1
      %v338 = vsel %vm334, %v328, %v336
      %v339 = vsel %vm335, %v331, %v337
      %v340 = vpack.c.bf16 %v338, %v338
      %v341 = vpack.c.bf16 %v339, %v339
      %342 = vst [vmem:[%s192] sm:$0xf] %v340
      %343 = vst [vmem:[%s192 + $0x4] sm:$0xf] %v341
      %s344 = smul.u32 2, %s19
      %p345 = scmp.lt.s32.totalorder %s18, 1
      %s346 = scalar_select %p345, %s18, 1
      %p347 = scmp.lt.s32.totalorder %s344, 7
      %s348 = scalar_select %p347, %s344, 7
      %s349 = smul.addr %s346, 8
      %s350 = sadd.s32 %s348, %s349
      %s351 = smul.addr %s350, 4
      %s352 = scalar_lea.vmem %s3, %s351
      // Predicated region
      $region33: #{darknet_forward.6} parent=31 // pred_check
        %p353 = pneg %p114
      $region34: #{darknet_forward.6} parent=31 // pred_check_branch
        %355 = sbr.rel (%p353) target = $region36
      $region35: #{darknet_forward.6} parent=31 // pred_region
        %s356 = smul.u32 2, %s19
      $region36: #{darknet_forward.6} parent=31 // pred_fallthru
        _
    $region32: #{darknet_forward.6} parent=5 // pred_fallthru
      _
    %p357 = scmp.le.s32.totalorder 2, %s9
    // Predicated region
    $region37: #{darknet_forward.6} parent=5 // pred_check
      %p358 = pneg %p357
    $region38: #{darknet_forward.6} parent=5 // pred_check_branch
      %360 = sbr.rel (%p358) target = $region40
    $region39: #{darknet_forward.6} parent=5 // pred_region
      %s361 = ssub.s32 %s9, 2
      // Predicated region
      $region41: #{darknet_forward.6} parent=39 // pred_check
        %p362 = pneg %p120
      $region42: #{darknet_forward.6} parent=39 // pred_check_branch
        %364 = sbr.rel (%p362) target = $region44
      $region43: #{darknet_forward.6} parent=39 // pred_region
        %s365 = smul.u32 2, %s21
        %p366 = scmp.lt.s32.totalorder %s20, 1
        %s367 = scalar_select %p366, %s20, 1
        %p368 = scmp.lt.s32.totalorder %s365, 7
        %s369 = scalar_select %p368, %s365, 7
        %s370 = smul.addr %s367, 8
        %s371 = sadd.s32 %s369, %s370
        %s372 = smul.addr %s371, 4
        %s373 = scalar_lea.vmem %s3, %s372
      $region44: #{darknet_forward.6} parent=39 // pred_fallthru
        _
    $region40: #{darknet_forward.6} parent=5 // pred_fallthru
      _
  $region6: #{darknet_forward.6} parent=0 // loop_footer
    %s13 = sadd.s32 1, %s9
  $region7: #{darknet_forward.6} parent=0 // loop_footer_branch
    %8 = sbr.rel target = $region3
  $region8: #{darknet_forward.6} parent=0 // loop_exit
    _

// kernel: darknet_forward.7
$region0: #{darknet_forward.7}
  #allocation0 [shape = 'u32[]', space=smem, size = 0x4, offset = 0x4, fixed_abs, tag = 'smem constant byte address 0x4 - core index']
  #allocation1 [shape = 'u32[144,128]{1,0:T(1,128)}', space=vmem, size = 0x12000, scoped, tag = 'internal scratch']
  %s0 = inlined_call_operand.vmem [shape: bf16[2,8,8,32], index: 0, kind: input, shape index: {}]
  %s1 = inlined_call_operand.vmem [shape: bf16[1,32,128], index: 1, kind: input, shape index: {}]
  %s2 = inlined_call_operand.vmem [shape: f32[1,128], index: 2, kind: input, shape index: {}]
  %s3 = inlined_call_operand.vmem [shape: bf16[2,8,8,128], index: 3, kind: output, shape index: {}]
  %s4 = sld [smem:[#allocation0]]
  $region45: #{darknet_forward.7} parent=0
    _
  %s6 = ssub.s32 1, %s4
  %s7 = scalar_select 0, %s6, %s4
  loop: start=0, step=1, limit=10
  $region2: #{darknet_forward.7} parent=0 // loop_pre_header
    _
  $region3: #{darknet_forward.7} parent=0 // loop_header
    %s9 = sphi 0, %s13
    %p10 = scmp.ge.s32.totalorder %s9, 10
    %s16 = sphi 0, %s28
    %s17 = sphi 0, %s24
    %s18 = sphi 0, %s16
    %s19 = sphi 0, %s17
    %s20 = sphi 0, %s18
    %s21 = sphi 0, %s19
    %s31 = sphi 0, %s33
    %s34 = sphi 0, %s31
    %s35 = sphi 0, %s34
    %s51 = sphi 0, %s35
    %s55 = sphi 0, %s55
    %s57 = sphi 0, %s55
    %s58 = sphi 0, %s57
    %s72 = sphi 0, %s58
    %s76 = sphi 0, %s76
    %s78 = sphi 0, %s76
    %s79 = sphi 0, %s78
    %s93 = sphi 0, %s79
    %s101 = sphi 0, %s103
    %s104 = sphi 0, %s101
    %s105 = sphi 0, %s104
    %s121 = sphi 0, %s105
  $region4: #{darknet_forward.7} parent=0 // loop_header_branch
    %12 = sbr.rel (%p10) target = $region8
  $region5: #{darknet_forward.7} parent=0 // loop_body
    %s14 = ssub.s32 %s9, 1
    %s15 = ssub.s32 %s9, 2
    %s22 = sadd.s32 1, %s17
    %p23 = scmp.ge.s32.totalorder %s22, 4
    %s24 = scalar_select %p23, 0, %s22
    %s25 = sadd.s32 1, %s16
    %s26 = scalar_select %p23, %s25, %s16
    %p27 = scmp.ge.s32.totalorder %s26, 2
    %s28 = scalar_select %p27, 0, %s26
    %s29 = ssub.s32 %s16, %s28
    %p30 = scmp.eq.s32.totalorder %s29, 0
    %s32 = sadd.s32 %s31, 1
    %s33 = scalar_select %p30, %s31, %s32
    %p36 = pneg %p30
    %p37 = scmp.eq.s32.totalorder %s9, 7
    %p38 = por %p36, %p37
    %p39 = scmp.ne.s32.totalorder %s31, %s34
    %p40 = scmp.eq.s32.totalorder %s9, 0
    %p41 = por %p39, %p40
    %p42 = scmp.ne.s32.totalorder %s31, %s34
    %p43 = scmp.eq.s32.totalorder %s14, 7
    %p44 = por %p42, %p43
    %p45 = scmp.ne.s32.totalorder %s34, %s35
    %p46 = scmp.eq.s32.totalorder %s14, 0
    %p47 = por %p45, %p46
    %p48 = scmp.ne.s32.totalorder %s34, %s35
    %p49 = scmp.eq.s32.totalorder %s15, 7
    %p50 = por %p48, %p49
    %p52 = scmp.ne.s32.totalorder %s35, %s51
    %p53 = scmp.eq.s32.totalorder %s15, 0
    %p54 = por %p52, %p53
    %s56 = sadd.s32 %s55, 1
    %p59 = scmp.eq.s32.totalorder %s9, 7
    %p60 = scmp.ne.s32.totalorder %s55, %s57
    %p61 = scmp.eq.s32.totalorder %s9, 0
    %p62 = por %p60, %p61
    %p63 = scmp.ne.s32.totalorder %s55, %s57
    %p64 = scmp.eq.s32.totalorder %s14, 7
    %p65 = por %p63, %p64
    %p66 = scmp.ne.s32.totalorder %s57, %s58
    %p67 = scmp.eq.s32.totalorder %s14, 0
    %p68 = por %p66, %p67
    %p69 = scmp.ne.s32.totalorder %s57, %s58
    %p70 = scmp.eq.s32.totalorder %s15, 7
    %p71 = por %p69, %p70
    %p73 = scmp.ne.s32.totalorder %s58, %s72
    %p74 = scmp.eq.s32.totalorder %s15, 0
    %p75 = por %p73, %p74
    %s77 = sadd.s32 %s76, 1
    %p80 = scmp.eq.s32.totalorder %s9, 7
    %p81 = scmp.ne.s32.totalorder %s76, %s78
    %p82 = scmp.eq.s32.totalorder %s9, 0
    %p83 = por %p81, %p82
    %p84 = scmp.ne.s32.totalorder %s76, %s78
    %p85 = scmp.eq.s32.totalorder %s14, 7
    %p86 = por %p84, %p85
    %p87 = scmp.ne.s32.totalorder %s78, %s79
    %p88 = scmp.eq.s32.totalorder %s14, 0
    %p89 = por %p87, %p88
    %p90 = scmp.ne.s32.totalorder %s78, %s79
    %p91 = scmp.eq.s32.totalorder %s15, 7
    %p92 = por %p90, %p91
    %p94 = scmp.ne.s32.totalorder %s79, %s93
    %p95 = scmp.eq.s32.totalorder %s15, 0
    %p96 = por %p94, %p95
    %s97 = ssub.s32 %s16, %s28
    %s98 = ssub.s32 %s17, %s24
    %s99 = sor.u32 %s97, %s98
    %p100 = scmp.eq.s32.totalorder %s99, 0
    %s102 = sadd.s32 %s101, 1
    %s103 = scalar_select %p100, %s101, %s102
    %p106 = pneg %p100
    %p107 = scmp.eq.s32.totalorder %s9, 7
    %p108 = por %p106, %p107
    %p109 = scmp.ne.s32.totalorder %s101, %s104
    %p110 = scmp.eq.s32.totalorder %s9, 0
    %p111 = por %p109, %p110
    %p112 = scmp.ne.s32.totalorder %s101, %s104
    %p113 = scmp.eq.s32.totalorder %s14, 7
    %p114 = por %p112, %p113
    %p115 = scmp.ne.s32.totalorder %s104, %s105
    %p116 = scmp.eq.s32.totalorder %s14, 0
    %p117 = por %p115, %p116
    %p118 = scmp.ne.s32.totalorder %s104, %s105
    %p119 = scmp.eq.s32.totalorder %s15, 7
    %p120 = por %p118, %p119
    %p122 = scmp.ne.s32.totalorder %s105, %s121
    %p123 = scmp.eq.s32.totalorder %s15, 0
    %p124 = por %p122, %p123
    %p125 = scmp.le.s32.totalorder 1, %s9
    %p126 = scmp.lt.s32.totalorder %s9, 9
    %p127 = pnand %p125, %p126
    %p128 = pneg %p127
    // Predicated region
    $region9: #{darknet_forward.7} parent=5 // pred_check
      _
    $region10: #{darknet_forward.7} parent=5 // pred_check_branch
      %130 = sbr.rel (%p127) target = $region12
    $region11: #{darknet_forward.7} parent=5 // pred_region
      %s131 = ssub.s32 %s9, 1
      // Predicated region
      $region13: #{darknet_forward.7} parent=11 // pred_check
        %p132 = pneg %p68
      $region14: #{darknet_forward.7} parent=11 // pred_check_branch
        %134 = sbr.rel (%p132) target = $region16
      $region15: #{darknet_forward.7} parent=11 // pred_region
        _
      $region16: #{darknet_forward.7} parent=11 // pred_fallthru
        _
      // Predicated region
      $region17: #{darknet_forward.7} parent=11 // pred_check
        %p135 = pneg %p89
      $region18: #{darknet_forward.7} parent=11 // pred_check_branch
        %137 = sbr.rel (%p135) target = $region20
      $region19: #{darknet_forward.7} parent=11 // pred_region
        _
      $region20: #{darknet_forward.7} parent=11 // pred_fallthru
        _
    $region12: #{darknet_forward.7} parent=5 // pred_fallthru
      _
    %p138 = scmp.lt.s32.totalorder %s9, 8
    // Predicated region
    $region21: #{darknet_forward.7} parent=5 // pred_check
      %p139 = pneg %p138
    $region22: #{darknet_forward.7} parent=5 // pred_check_branch
      %141 = sbr.rel (%p139) target = $region24
    $region23: #{darknet_forward.7} parent=5 // pred_region
      // Predicated region
      $region25: #{darknet_forward.7} parent=23 // pred_check
        %p142 = pneg %p41
      $region26: #{darknet_forward.7} parent=23 // pred_check_branch
        %144 = sbr.rel (%p142) target = $region28
      $region27: #{darknet_forward.7} parent=23 // pred_region
        %p145 = scmp.lt.s32.totalorder %s16, 1
        %s146 = scalar_select %p145, %s16, 1
        %s147 = smul.addr %s146, 8
        %s148 = smul.addr %s147, 4
        %s149 = scalar_lea.vmem %s0, %s148
      $region28: #{darknet_forward.7} parent=23 // pred_fallthru
        _
    $region24: #{darknet_forward.7} parent=5 // pred_fallthru
      _
    %p150 = scmp.le.s32.totalorder 1, %s9
    %p151 = scmp.lt.s32.totalorder %s9, 9
    %p152 = pnand %p150, %p151
    %p153 = pneg %p152
    // Predicated region
    $region29: #{darknet_forward.7} parent=5 // pred_check
      _
    $region30: #{darknet_forward.7} parent=5 // pred_check_branch
      %155 = sbr.rel (%p152) target = $region32
    $region31: #{darknet_forward.7} parent=5 // pred_region
      %s156 = ssub.s32 %s9, 1
      %p157 = scmp.lt.s32.totalorder %s18, 1
      %s158 = scalar_select %p157, %s18, 1
      %s159 = smul.addr %s158, 8
      %s160 = smul.addr %s159, 4
      %s161 = scalar_lea.vmem %s0, %s160
      %p162 = pneg %p47
      %p163 = pneg %p44
      %p164 = pneg %p68
      %p165 = pneg %p65
      %p166 = pneg %p89
      %p167 = pneg %p86
      %p168 = pneg %p117
      %p169 = pneg %p114
      %s170 = smul.u32 2, %s19
      %p171 = scmp.lt.s32.totalorder %s18, 1
      %s172 = scalar_select %p171, %s18, 1
      %p173 = scmp.lt.s32.totalorder %s170, 7
      %s174 = scalar_select %p173, %s170, 7
      %s175 = smul.addr %s172, 8
      %s176 = sadd.s32 %s174, %s175
      %s177 = smul.addr %s176, 4
      %s178 = scalar_lea.vmem %s3, %s177
      %p179 = scmp.lt.s32.totalorder %s18, 1
      %s180 = scalar_select %p179, %s18, 1
      %s181 = smul.addr %s180, 8
      %s182 = smul.addr %s181, 4
      %s183 = scalar_lea.vmem %s0, %s182
      %s184 = smul.u32 2, %s19
      %p185 = scmp.lt.s32.totalorder %s18, 1
      %s186 = scalar_select %p185, %s18, 1
      %p187 = scmp.lt.s32.totalorder %s184, 7
      %s188 = scalar_select %p187, %s184, 7
      %s189 = smul.addr %s186, 8
      %s190 = sadd.s32 %s188, %s189
      %s191 = smul.addr %s190, 4
      %s192 = scalar_lea.vmem %s3, %s191
      %s193 = smul.u32 2, %s19
      %s195 = smul.u32 %s19, 2
      %s196 = smul.addr %s195, 4
      %s197 = scalar_lea.vmem %s183, %s196
      %v198 = vld [vmem:[%s197] sm:$0xf]
      %v199 = vld [vmem:[%s197 + $0x4] sm:$0xf]
      %v200 = vld [vmem:[%s1] sm:$0xf]
      %v201 = vld [vmem:[%s1 + $0x4] sm:$0xf]
      %v202 = vld [vmem:[%s1 + $0x8] sm:$0xf]
      %v203 = vld [vmem:[%s1 + $0xc] sm:$0xf]
      %v204 = vld [vmem:[%s2] sm:$0x1]
      %v206 = vlaneseq
      %v207 = vshrl.u32 %v206, 7
      %v208 = vsub.s32 0, %v207
      %v209 = vrot.slane %v204, %v208
      %v213 = vunpack.c.l.b16 %v198
      %v214 = vunpack.c.l.b16 %v199
      %v215 = vpack.c.b16 %v214, %v213
      %v220 = vunpack.c.l.b16 %v200
      %v221 = vunpack.c.l.b16 %v201
      %v222 = vunpack.c.l.b16 %v202
      %v223 = vunpack.c.l.b16 %v203
      %v224 = vpack.c.b16 %v221, %v220
      %v225 = vpack.c.b16 %v223, %v222
      %vm228 = vcmask 261120
      %v230 = vsel %vm228, %v215, 0
      %232 = vmatprep.subr.bf16.mxu0 0
      %233 = vmatpush1.bf16.msra.mxu0 %v224
      %234 = vmatprep.subr.bf16.mxu0 0
      %235 = vmatpush1.bf16.msra.mxu0 %v225
      %236 = vmatprep.subr.bf16.mxu0 0
      %237 = vmatpush1.bf16.msra.mxu0 0
      %238 = vmatprep.subr.bf16.mxu0 0
      %239 = vmatpush1.bf16.msra.mxu0 0
      %240 = vmatprep.subr.bf16.mxu0 0
      %241 = vmatpush1.bf16.msra.mxu0 0
      %242 = vmatprep.subr.bf16.mxu0 0
      %243 = vmatpush1.bf16.msra.mxu0 0
      %244 = vmatprep.subr.bf16.mxu0 0
      %245 = vmatpush1.bf16.msra.mxu0 0
      %246 = vmatprep.subr.bf16.mxu0 0
      %247 = vmatpush1.bf16.msra.mxu0 0
      %248 = vmatprep.subr.bf16.mxu0 0
      %249 = vmatpush1.bf16.msra.mxu0 0
      %250 = vmatprep.subr.bf16.mxu0 0
      %251 = vmatpush1.bf16.msra.mxu0 0
      %252 = vmatprep.subr.bf16.mxu0 0
      %253 = vmatpush1.bf16.msra.mxu0 0
      %254 = vmatprep.subr.bf16.mxu0 0
      %255 = vmatpush1.bf16.msra.mxu0 0
      %256 = vmatprep.subr.bf16.mxu0 0
      %257 = vmatpush1.bf16.msra.mxu0 0
      %258 = vmatprep.subr.bf16.mxu0 0
      %259 = vmatpush1.bf16.msra.mxu0 0
      %260 = vmatprep.subr.bf16.mxu0 0
      %261 = vmatpush1.bf16.msra.mxu0 0
      %262 = vmatprep.subr.bf16.mxu0 0
      %263 = vmatpush1.bf16.msra.mxu0 0
      %264 = vmatprep.mubr.bf16.mxu0 0
      %265 = vmatmul.mubr.bf16.gmra.mrb[0].mxu0 %v230
      %v266 = vpop.f32.mrb[0].mxu0
      %v267 = vadd.f32 %v209, %v266
      %v268 = vpop.f32.mrb[0].mxu0
      %v269 = vpop.f32.mrb[0].mxu0
      %v270 = vadd.f32 %v209, %v269
      %v271 = vpop.f32.mrb[0].mxu0
      %272 = vdwg.mxu0
      %vm273 = vcmp.ge.f32.partialorder %v267, 0.0
      %vm274 = vcmp.ge.f32.partialorder %v270, 0.0
      %v275 = vmul.f32 %v267, 0.1
      %v276 = vmul.f32 %v270, 0.1
      %v277 = vsel %vm273, %v267, %v275
      %v278 = vsel %vm274, %v270, %v276
      %v279 = vpack.c.bf16 %v277, %v277
      %v280 = vpack.c.bf16 %v278, %v278
      %281 = vst [vmem:[%s192] sm:$0xf] %v279
      %282 = vst [vmem:[%s192 + $0x4] sm:$0xf] %v280
      %s283 = smul.u32 2, %s19
      %p284 = scmp.lt.s32.totalorder %s18, 1
      %s285 = scalar_select %p284, %s18, 1
      %p286 = scmp.lt.s32.totalorder %s283, 7
      %s287 = scalar_select %p286, %s283, 7
      %s288 = smul.addr %s285, 8
      %s289 = sadd.s32 %s287, %s288
      %s290 = smul.addr %s289, 4
      %s291 = scalar_lea.vmem %s3, %s290
      // Predicated region
      $region33: #{darknet_forward.7} parent=31 // pred_check
        %p292 = pneg %p114
      $region34: #{darknet_forward.7} parent=31 // pred_check_branch
        %294 = sbr.rel (%p292) target = $region36
      $region35: #{darknet_forward.7} parent=31 // pred_region
        %s295 = smul.u32 2, %s19
      $region36: #{darknet_forward.7} parent=31 // pred_fallthru
        _
    $region32: #{darknet_forward.7} parent=5 // pred_fallthru
      _
    %p296 = scmp.le.s32.totalorder 2, %s9
    // Predicated region
    $region37: #{darknet_forward.7} parent=5 // pred_check
      %p297 = pneg %p296
    $region38: #{darknet_forward.7} parent=5 // pred_check_branch
      %299 = sbr.rel (%p297) target = $region40
    $region39: #{darknet_forward.7} parent=5 // pred_region
      %s300 = ssub.s32 %s9, 2
      // Predicated region
      $region41: #{darknet_forward.7} parent=39 // pred_check
        %p301 = pneg %p120
      $region42: #{darknet_forward.7} parent=39 // pred_check_branch
        %303 = sbr.rel (%p301) target = $region44
      $region43: #{darknet_forward.7} parent=39 // pred_region
        %s304 = smul.u32 2, %s21
        %p305 = scmp.lt.s32.totalorder %s20, 1
        %s306 = scalar_select %p305, %s20, 1
        %p307 = scmp.lt.s32.totalorder %s304, 7
        %s308 = scalar_select %p307, %s304, 7
        %s309 = smul.addr %s306, 8
        %s310 = sadd.s32 %s308, %s309
        %s311 = smul.addr %s310, 4
        %s312 = scalar_lea.vmem %s3, %s311
      $region44: #{darknet_forward.7} parent=39 // pred_fallthru
        _
    $region40: #{darknet_forward.7} parent=5 // pred_fallthru
      _
  $region6: #{darknet_forward.7} parent=0 // loop_footer
    %s13 = sadd.s32 1, %s9
  $region7: #{darknet_forward.7} parent=0 // loop_footer_branch
    %8 = sbr.rel target = $region3
  $region8: #{darknet_forward.7} parent=0 // loop_exit
    _

// kernel: darknet_forward.5
$region0: #{darknet_forward.5}
  #allocation0 [shape = 'u32[]', space=smem, size = 0x4, offset = 0x4, fixed_abs, tag = 'smem constant byte address 0x4 - core index']
  #allocation1 [shape = 'u32[144,128]{1,0:T(1,128)}', space=vmem, size = 0x12000, scoped, tag = 'internal scratch']
  %s0 = inlined_call_operand.vmem [shape: bf16[2,18,18,8], index: 0, kind: input, shape index: {}]
  %s1 = inlined_call_operand.vmem [shape: bf16[9,8,128], index: 1, kind: input, shape index: {}]
  %s2 = inlined_call_operand.vmem [shape: f32[1,128], index: 2, kind: input, shape index: {}]
  %s3 = inlined_call_operand.vmem [shape: bf16[2,16,16,128], index: 3, kind: output, shape index: {}]
  %s4 = sld [smem:[#allocation0]]
  $region45: #{darknet_forward.5} parent=0
    _
  %s6 = ssub.s32 1, %s4
  %s7 = scalar_select 0, %s6, %s4
  loop: start=0, step=1, limit=10
  $region2: #{darknet_forward.5} parent=0 // loop_pre_header
    _
  $region3: #{darknet_forward.5} parent=0 // loop_header
    %s9 = sphi 0, %s13
    %p10 = scmp.ge.s32.totalorder %s9, 10
    %s16 = sphi 0, %s28
    %s17 = sphi 0, %s24
    %s18 = sphi 0, %s16
    %s19 = sphi 0, %s17
    %s20 = sphi 0, %s18
    %s21 = sphi 0, %s19
    %s31 = sphi 0, %s33
    %s34 = sphi 0, %s31
    %s35 = sphi 0, %s34
    %s51 = sphi 0, %s35
    %s55 = sphi 0, %s55
    %s57 = sphi 0, %s55
    %s58 = sphi 0, %s57
    %s72 = sphi 0, %s58
    %s76 = sphi 0, %s76
    %s78 = sphi 0, %s76
    %s79 = sphi 0, %s78
    %s93 = sphi 0, %s79
    %s101 = sphi 0, %s103
    %s104 = sphi 0, %s101
    %s105 = sphi 0, %s104
    %s121 = sphi 0, %s105
  $region4: #{darknet_forward.5} parent=0 // loop_header_branch
    %12 = sbr.rel (%p10) target = $region8
  $region5: #{darknet_forward.5} parent=0 // loop_body
    %s14 = ssub.s32 %s9, 1
    %s15 = ssub.s32 %s9, 2
    %s22 = sadd.s32 1, %s17
    %p23 = scmp.ge.s32.totalorder %s22, 4
    %s24 = scalar_select %p23, 0, %s22
    %s25 = sadd.s32 1, %s16
    %s26 = scalar_select %p23, %s25, %s16
    %p27 = scmp.ge.s32.totalorder %s26, 2
    %s28 = scalar_select %p27, 0, %s26
    %s29 = ssub.s32 %s16, %s28
    %p30 = scmp.eq.s32.totalorder %s29, 0
    %s32 = sadd.s32 %s31, 1
    %s33 = scalar_select %p30, %s31, %s32
    %p36 = pneg %p30
    %p37 = scmp.eq.s32.totalorder %s9, 7
    %p38 = por %p36, %p37
    %p39 = scmp.ne.s32.totalorder %s31, %s34
    %p40 = scmp.eq.s32.totalorder %s9, 0
    %p41 = por %p39, %p40
    %p42 = scmp.ne.s32.totalorder %s31, %s34
    %p43 = scmp.eq.s32.totalorder %s14, 7
    %p44 = por %p42, %p43
    %p45 = scmp.ne.s32.totalorder %s34, %s35
    %p46 = scmp.eq.s32.totalorder %s14, 0
    %p47 = por %p45, %p46
    %p48 = scmp.ne.s32.totalorder %s34, %s35
    %p49 = scmp.eq.s32.totalorder %s15, 7
    %p50 = por %p48, %p49
    %p52 = scmp.ne.s32.totalorder %s35, %s51
    %p53 = scmp.eq.s32.totalorder %s15, 0
    %p54 = por %p52, %p53
    %s56 = sadd.s32 %s55, 1
    %p59 = scmp.eq.s32.totalorder %s9, 7
    %p60 = scmp.ne.s32.totalorder %s55, %s57
    %p61 = scmp.eq.s32.totalorder %s9, 0
    %p62 = por %p60, %p61
    %p63 = scmp.ne.s32.totalorder %s55, %s57
    %p64 = scmp.eq.s32.totalorder %s14, 7
    %p65 = por %p63, %p64
    %p66 = scmp.ne.s32.totalorder %s57, %s58
    %p67 = scmp.eq.s32.totalorder %s14, 0
    %p68 = por %p66, %p67
    %p69 = scmp.ne.s32.totalorder %s57, %s58
    %p70 = scmp.eq.s32.totalorder %s15, 7
    %p71 = por %p69, %p70
    %p73 = scmp.ne.s32.totalorder %s58, %s72
    %p74 = scmp.eq.s32.totalorder %s15, 0
    %p75 = por %p73, %p74
    %s77 = sadd.s32 %s76, 1
    %p80 = scmp.eq.s32.totalorder %s9, 7
    %p81 = scmp.ne.s32.totalorder %s76, %s78
    %p82 = scmp.eq.s32.totalorder %s9, 0
    %p83 = por %p81, %p82
    %p84 = scmp.ne.s32.totalorder %s76, %s78
    %p85 = scmp.eq.s32.totalorder %s14, 7
    %p86 = por %p84, %p85
    %p87 = scmp.ne.s32.totalorder %s78, %s79
    %p88 = scmp.eq.s32.totalorder %s14, 0
    %p89 = por %p87, %p88
    %p90 = scmp.ne.s32.totalorder %s78, %s79
    %p91 = scmp.eq.s32.totalorder %s15, 7
    %p92 = por %p90, %p91
    %p94 = scmp.ne.s32.totalorder %s79, %s93
    %p95 = scmp.eq.s32.totalorder %s15, 0
    %p96 = por %p94, %p95
    %s97 = ssub.s32 %s16, %s28
    %s98 = ssub.s32 %s17, %s24
    %s99 = sor.u32 %s97, %s98
    %p100 = scmp.eq.s32.totalorder %s99, 0
    %s102 = sadd.s32 %s101, 1
    %s103 = scalar_select %p100, %s101, %s102
    %p106 = pneg %p100
    %p107 = scmp.eq.s32.totalorder %s9, 7
    %p108 = por %p106, %p107
    %p109 = scmp.ne.s32.totalorder %s101, %s104
    %p110 = scmp.eq.s32.totalorder %s9, 0
    %p111 = por %p109, %p110
    %p112 = scmp.ne.s32.totalorder %s101, %s104
    %p113 = scmp.eq.s32.totalorder %s14, 7
    %p114 = por %p112, %p113
    %p115 = scmp.ne.s32.totalorder %s104, %s105
    %p116 = scmp.eq.s32.totalorder %s14, 0
    %p117 = por %p115, %p116
    %p118 = scmp.ne.s32.totalorder %s104, %s105
    %p119 = scmp.eq.s32.totalorder %s15, 7
    %p120 = por %p118, %p119
    %p122 = scmp.ne.s32.totalorder %s105, %s121
    %p123 = scmp.eq.s32.totalorder %s15, 0
    %p124 = por %p122, %p123
    %p125 = scmp.le.s32.totalorder 1, %s9
    %p126 = scmp.lt.s32.totalorder %s9, 9
    %p127 = pnand %p125, %p126
    %p128 = pneg %p127
    // Predicated region
    $region9: #{darknet_forward.5} parent=5 // pred_check
      _
    $region10: #{darknet_forward.5} parent=5 // pred_check_branch
      %130 = sbr.rel (%p127) target = $region12
    $region11: #{darknet_forward.5} parent=5 // pred_region
      %s131 = ssub.s32 %s9, 1
      // Predicated region
      $region13: #{darknet_forward.5} parent=11 // pred_check
        %p132 = pneg %p68
      $region14: #{darknet_forward.5} parent=11 // pred_check_branch
        %134 = sbr.rel (%p132) target = $region16
      $region15: #{darknet_forward.5} parent=11 // pred_region
        _
      $region16: #{darknet_forward.5} parent=11 // pred_fallthru
        _
      // Predicated region
      $region17: #{darknet_forward.5} parent=11 // pred_check
        %p135 = pneg %p89
      $region18: #{darknet_forward.5} parent=11 // pred_check_branch
        %137 = sbr.rel (%p135) target = $region20
      $region19: #{darknet_forward.5} parent=11 // pred_region
        _
      $region20: #{darknet_forward.5} parent=11 // pred_fallthru
        _
    $region12: #{darknet_forward.5} parent=5 // pred_fallthru
      _
    %p138 = scmp.lt.s32.totalorder %s9, 8
    // Predicated region
    $region21: #{darknet_forward.5} parent=5 // pred_check
      %p139 = pneg %p138
    $region22: #{darknet_forward.5} parent=5 // pred_check_branch
      %141 = sbr.rel (%p139) target = $region24
    $region23: #{darknet_forward.5} parent=5 // pred_region
      // Predicated region
      $region25: #{darknet_forward.5} parent=23 // pred_check
        %p142 = pneg %p41
      $region26: #{darknet_forward.5} parent=23 // pred_check_branch
        %144 = sbr.rel (%p142) target = $region28
      $region27: #{darknet_forward.5} parent=23 // pred_region
        %p145 = scmp.lt.s32.totalorder %s16, 1
        %s146 = scalar_select %p145, %s16, 1
        %s147 = smul.addr %s146, 54
        %s148 = smul.addr %s147, 4
        %s149 = scalar_lea.vmem %s0, %s148
      $region28: #{darknet_forward.5} parent=23 // pred_fallthru
        _
    $region24: #{darknet_forward.5} parent=5 // pred_fallthru
      _
    %p150 = scmp.le.s32.totalorder 1, %s9
    %p151 = scmp.lt.s32.totalorder %s9, 9
    %p152 = pnand %p150, %p151
    %p153 = pneg %p152
    // Predicated region
    $region29: #{darknet_forward.5} parent=5 // pred_check
      _
    $region30: #{darknet_forward.5} parent=5 // pred_check_branch
      %155 = sbr.rel (%p152) target = $region32
    $region31: #{darknet_forward.5} parent=5 // pred_region
      %s156 = ssub.s32 %s9, 1
      %p157 = scmp.lt.s32.totalorder %s18, 1
      %s158 = scalar_select %p157, %s18, 1
      %s159 = smul.addr %s158, 54
      %s160 = smul.addr %s159, 4
      %s161 = scalar_lea.vmem %s0, %s160
      %p162 = pneg %p47
      %p163 = pneg %p44
      %p164 = pneg %p68
      %p165 = pneg %p65
      %p166 = pneg %p89
      %p167 = pneg %p86
      %p168 = pneg %p117
      %p169 = pneg %p114
      %s170 = smul.u32 4, %s19
      %p171 = scmp.lt.s32.totalorder %s18, 1
      %s172 = scalar_select %p171, %s18, 1
      %p173 = scmp.lt.s32.totalorder %s170, 15
      %s174 = scalar_select %p173, %s170, 15
      %s175 = smul.addr %s174, 2
      %s176 = smul.addr %s172, 32
      %s177 = sadd.s32 %s175, %s176
      %s178 = smul.addr %s177, 4
      %s179 = scalar_lea.vmem %s3, %s178
      %p180 = scmp.lt.s32.totalorder %s18, 1
      %s181 = scalar_select %p180, %s18, 1
      %s182 = smul.addr %s181, 54
      %s183 = smul.addr %s182, 4
      %s184 = scalar_lea.vmem %s0, %s183
      %s185 = smul.u32 4, %s19
      %p186 = scmp.lt.s32.totalorder %s18, 1
      %s187 = scalar_select %p186, %s18, 1
      %p188 = scmp.lt.s32.totalorder %s185, 15
      %s189 = scalar_select %p188, %s185, 15
      %s190 = smul.addr %s189, 2
      %s191 = smul.addr %s187, 32
      %s192 = sadd.s32 %s190, %s191
      %s193 = smul.addr %s192, 4
      %s194 = scalar_lea.vmem %s3, %s193
      %s195 = smul.u32 4, %s19
      %s197 = smul.u32 %s19, 4
      %s198 = smul.u32 %s197, 3
      %s199 = smul.addr %s198, 4
      %s200 = scalar_lea.vmem %s184, %s199
      %v201 = vld [vmem:[%s200] sm:$0xf]
      %v202 = vld [vmem:[%s200 + $0x4] sm:$0xf]
      %v203 = vld [vmem:[%s200 + $0xc] sm:$0xf]
      %v204 = vld [vmem:[%s200 + $0x10] sm:$0xf]
      %v205 = vld [vmem:[%s200 + $0x18] sm:$0xf]
      %v206 = vld [vmem:[%s200 + $0x1c] sm:$0xf]
      %v207 = vld [vmem:[%s200 + $0x24] sm:$0xf]
      %v208 = vld [vmem:[%s200 + $0x28] sm:$0xf]
      %v209 = vld [vmem:[%s1] sm:$0xf]
      %v210 = vld [vmem:[%s200 + $0x8] sm:$0x1]
      %v211 = vld [vmem:[%s200 + $0x14] sm:$0x1]
      %v212 = vld [vmem:[%s200 + $0x20] sm:$0x1]
      %v213 = vld [vmem:[%s200 + $0x2c] sm:$0x1]
      %vm214 = vsmask.f32 3328
      %vm215 = vsmask.f32 7440
      %vm216 = vmor %vm214, %vm215
      %v218 = vshrl.u32 %v201, 16
      %v220 = vrot.slane %v218, 4
      %v221 = vshll.u32 %v201, 16
      %v223 = vrot.slane %v221, 5
      %v224 = vor.u32 %v220, %v223
      %v225 = vrot.slane %v224, 4
      %v227 = vshll.u32 %v202, 16
      %v229 = vrot.slane %v227, 5
      %v230 = vsel %vm216, %v225, %v229
      %v231 = vshrl.u32 %v202, 16
      %v233 = vrot.slane %v231, 4
      %v234 = vor.u32 %v233, %v229
      %v235 = vrot.slane %v234, 4
      %v237 = vshll.u32 %v210, 16
      %v239 = vrot.slane %v237, 5
      %v240 = vsel %vm216, %v235, %v239
      %v242 = vshrl.u32 %v203, 16
      %v244 = vrot.slane %v242, 4
      %v245 = vshll.u32 %v203, 16
      %v247 = vrot.slane %v245, 5
      %v248 = vor.u32 %v244, %v247
      %v249 = vrot.slane %v248, 4
      %v251 = vshll.u32 %v204, 16
      %v253 = vrot.slane %v251, 5
      %v254 = vsel %vm216, %v249, %v253
      %v255 = vshrl.u32 %v204, 16
      %v257 = vrot.slane %v255, 4
      %v258 = vor.u32 %v257, %v253
      %v259 = vrot.slane %v258, 4
      %v261 = vshll.u32 %v211, 16
      %v263 = vrot.slane %v261, 5
      %v264 = vsel %vm216, %v259, %v263
      %v266 = vshrl.u32 %v205, 16
      %v268 = vrot.slane %v266, 4
      %v269 = vshll.u32 %v205, 16
      %v271 = vrot.slane %v269, 5
      %v272 = vor.u32 %v268, %v271
      %v273 = vrot.slane %v272, 4
      %v275 = vshll.u32 %v206, 16
      %v277 = vrot.slane %v275, 5
      %v278 = vsel %vm216, %v273, %v277
      %v279 = vshrl.u32 %v206, 16
      %v281 = vrot.slane %v279, 4
      %v282 = vor.u32 %v281, %v277
      %v283 = vrot.slane %v282, 4
      %v285 = vshll.u32 %v212, 16
      %v287 = vrot.slane %v285, 5
      %v288 = vsel %vm216, %v283, %v287
      %v290 = vshrl.u32 %v207, 16
      %v292 = vrot.slane %v290, 4
      %v293 = vshll.u32 %v207, 16
      %v295 = vrot.slane %v293, 5
      %v296 = vor.u32 %v292, %v295
      %v297 = vrot.slane %v296, 4
      %v299 = vshll.u32 %v208, 16
      %v301 = vrot.slane %v299, 5
      %v302 = vsel %vm216, %v297, %v301
      %v303 = vshrl.u32 %v208, 16
      %v305 = vrot.slane %v303, 4
      %v306 = vor.u32 %v305, %v301
      %v307 = vrot.slane %v306, 4
      %v309 = vshll.u32 %v213, 16
      %v311 = vrot.slane %v309, 5
      %v312 = vsel %vm216, %v307, %v311
      %s313 = scalar_lea.vmem %s1, 4
      %v314 = vld [vmem:[%s313] sm:$0xf]
      %v315 = vunpack.c.l.b16 %v230
      %v316 = vunpack.c.l.b16 %v240
      %v317 = vunpack.c.l.b16 %v254
      %v318 = vunpack.c.l.b16 %v264
      %v319 = vunpack.c.l.b16 %v278
      %v320 = vunpack.c.l.b16 %v288
      %v321 = vunpack.c.l.b16 %v302
      %v322 = vunpack.c.l.b16 %v312
      %v323 = vpack.c.b16 %v316, %v315
      %v324 = vpack.c.b16 %v318, %v317
      %v325 = vpack.c.b16 %v320, %v319
      %v326 = vpack.c.b16 %v322, %v321
      %vm327 = vcmask 64512
      %v329 = vsel %vm327, %v323, 0
      %v332 = vsel %vm327, %v324, 0
      %v335 = vsel %vm327, %v325, 0
      %v338 = vsel %vm327, %v326, 0
      %vm340 = vcmask 1043456
      %v342 = vsel %vm340, %v314, 0
      %344 = vmatprep.subr.bf16.mxu0 0
      %345 = vmatpush1.bf16.msra.mxu0 %v342
      %346 = vmatprep.subr.bf16.mxu0 0
      %347 = vmatpush1.bf16.msra.mxu0 0
      %348 = vmatprep.subr.bf16.mxu0 0
      %349 = vmatpush1.bf16.msra.mxu0 0
      %350 = vmatprep.subr.bf16.mxu0 0
      %351 = vmatpush1.bf16.msra.mxu0 0
      %352 = vmatprep.subr.bf16.mxu0 0
      %353 = vmatpush1.bf16.msra.mxu0 0
      %354 = vmatprep.subr.bf16.mxu0 0
      %355 = vmatpush1.bf16.msra.mxu0 0
      %356 = vmatprep.subr.bf16.mxu0 0
      %357 = vmatpush1.bf16.msra.mxu0 0
      %358 = vmatprep.subr.bf16.mxu0 0
      %359 = vmatpush1.bf16.msra.mxu0 0
      %360 = vmatprep.subr.bf16.mxu0 0
      %361 = vmatpush1.bf16.msra.mxu0 0
      %362 = vmatprep.subr.bf16.mxu0 0
      %363 = vmatpush1.bf16.msra.mxu0 0
      %364 = vmatprep.subr.bf16.mxu0 0
      %365 = vmatpush1.bf16.msra.mxu0 0
      %366 = vmatprep.subr.bf16.mxu0 0
      %367 = vmatpush1.bf16.msra.mxu0 0
      %368 = vmatprep.subr.bf16.mxu0 0
      %369 = vmatpush1.bf16.msra.mxu0 0
      %370 = vmatprep.subr.bf16.mxu0 0
      %371 = vmatpush1.bf16.msra.mxu0 0
      %372 = vmatprep.subr.bf16.mxu0 0
      %373 = vmatpush1.bf16.msra.mxu0 0
      %374 = vmatprep.subr.bf16.mxu0 0
      %375 = vmatpush1.bf16.msra.mxu0 0
      %376 = vmatprep.mubr.bf16.mxu0 0
      %377 = vmatmul.mubr.bf16.gmra.mrb[0].mxu0 %v329
      %v378 = vpop.f32.mrb[0].mxu0
      %v379 = vadd.f32 0.0, %v378
      %v380 = vpop.f32.mrb[0].mxu0
      %v381 = vpop.f32.mrb[0].mxu0
      %v382 = vadd.f32 0.0, %v381
      %v383 = vpop.f32.mrb[0].mxu0
      %384 = vmatprep.mubr.bf16.mxu0 0
      %385 = vmatmul.mubr.bf16.gmra.mrb[0].mxu0 %v332
      %v386 = vpop.f32.mrb[0].mxu0
      %v387 = vadd.f32 0.0, %v386
      %v388 = vpop.f32.mrb[0].mxu0
      %v389 = vpop.f32.mrb[0].mxu0
      %v390 = vadd.f32 0.0, %v389
      %v391 = vpop.f32.mrb[0].mxu0
      %392 = vmatprep.mubr.bf16.mxu0 0
      %393 = vmatmul.mubr.bf16.gmra.mrb[0].mxu0 %v335
      %v394 = vpop.f32.mrb[0].mxu0
      %v395 = vadd.f32 0.0, %v394
      %v396 = vpop.f32.mrb[0].mxu0
      %v397 = vpop.f32.mrb[0].mxu0
      %v398 = vadd.f32 0.0, %v397
      %v399 = vpop.f32.mrb[0].mxu0
      %400 = vmatprep.mubr.bf16.mxu0 0
      %401 = vmatmul.mubr.bf16.gmra.mrb[0].mxu0 %v338
      %v402 = vpop.f32.mrb[0].mxu0
      %v403 = vadd.f32 0.0, %v402
      %v404 = vpop.f32.mrb[0].mxu0
      %v405 = vpop.f32.mrb[0].mxu0
      %v406 = vadd.f32 0.0, %v405
      %v407 = vpop.f32.mrb[0].mxu0
      %408 = vdwg.mxu0
      %v417 = vunpack.c.l.b16 %v201
      %v418 = vunpack.c.l.b16 %v202
      %v419 = vunpack.c.l.b16 %v203
      %v420 = vunpack.c.l.b16 %v204
      %v421 = vunpack.c.l.b16 %v205
      %v422 = vunpack.c.l.b16 %v206
      %v423 = vunpack.c.l.b16 %v207
      %v424 = vunpack.c.l.b16 %v208
      %v425 = vpack.c.b16 %v418, %v417
      %v426 = vpack.c.b16 %v420, %v419
      %v427 = vpack.c.b16 %v422, %v421
      %v428 = vpack.c.b16 %v424, %v423
      %v430 = vsel %vm327, %v425, 0
      %v433 = vsel %vm327, %v426, 0
      %v436 = vsel %vm327, %v427, 0
      %v439 = vsel %vm327, %v428, 0
      %v442 = vsel %vm340, %v209, 0
      %444 = vmatprep.subr.bf16.mxu0 0
      %445 = vmatpush1.bf16.msra.mxu0 %v442
      %446 = vmatprep.subr.bf16.mxu0 0
      %447 = vmatpush1.bf16.msra.mxu0 0
      %448 = vmatprep.subr.bf16.mxu0 0
      %449 = vmatpush1.bf16.msra.mxu0 0
      %450 = vmatprep.subr.bf16.mxu0 0
      %451 = vmatpush1.bf16.msra.mxu0 0
      %452 = vmatprep.subr.bf16.mxu0 0
      %453 = vmatpush1.bf16.msra.mxu0 0
      %454 = vmatprep.subr.bf16.mxu0 0
      %455 = vmatpush1.bf16.msra.mxu0 0
      %456 = vmatprep.subr.bf16.mxu0 0
      %457 = vmatpush1.bf16.msra.mxu0 0
      %458 = vmatprep.subr.bf16.mxu0 0
      %459 = vmatpush1.bf16.msra.mxu0 0
      %460 = vmatprep.subr.bf16.mxu0 0
      %461 = vmatpush1.bf16.msra.mxu0 0
      %462 = vmatprep.subr.bf16.mxu0 0
      %463 = vmatpush1.bf16.msra.mxu0 0
      %464 = vmatprep.subr.bf16.mxu0 0
      %465 = vmatpush1.bf16.msra.mxu0 0
      %466 = vmatprep.subr.bf16.mxu0 0
      %467 = vmatpush1.bf16.msra.mxu0 0
      %468 = vmatprep.subr.bf16.mxu0 0
      %469 = vmatpush1.bf16.msra.mxu0 0
      %470 = vmatprep.subr.bf16.mxu0 0
      %471 = vmatpush1.bf16.msra.mxu0 0
      %472 = vmatprep.subr.bf16.mxu0 0
      %473 = vmatpush1.bf16.msra.mxu0 0
      %474 = vmatprep.subr.bf16.mxu0 0
      %475 = vmatpush1.bf16.msra.mxu0 0
      %476 = vmatprep.mubr.bf16.mxu0 0
      %477 = vmatmul.mubr.bf16.gmra.mrb[0].mxu0 %v430
      %v478 = vpop.f32.mrb[0].mxu0
      %v479 = vadd.f32 %v379, %v478
      %v480 = vpop.f32.mrb[0].mxu0
      %v481 = vpop.f32.mrb[0].mxu0
      %v482 = vadd.f32 %v382, %v481
      %v483 = vpop.f32.mrb[0].mxu0
      %484 = vmatprep.mubr.bf16.mxu0 0
      %485 = vmatmul.mubr.bf16.gmra.mrb[0].mxu0 %v433
      %v486 = vpop.f32.mrb[0].mxu0
      %v487 = vadd.f32 %v387, %v486
      %v488 = vpop.f32.mrb[0].mxu0
      %v489 = vpop.f32.mrb[0].mxu0
      %v490 = vadd.f32 %v390, %v489
      %v491 = vpop.f32.mrb[0].mxu0
      %492 = vmatprep.mubr.bf16.mxu0 0
      %493 = vmatmul.mubr.bf16.gmra.mrb[0].mxu0 %v436
      %v494 = vpop.f32.mrb[0].mxu0
      %v495 = vadd.f32 %v395, %v494
      %v496 = vpop.f32.mrb[0].mxu0
      %v497 = vpop.f32.mrb[0].mxu0
      %v498 = vadd.f32 %v398, %v497
      %v499 = vpop.f32.mrb[0].mxu0
      %500 = vmatprep.mubr.bf16.mxu0 0
      %501 = vmatmul.mubr.bf16.gmra.mrb[0].mxu0 %v439
      %v502 = vpop.f32.mrb[0].mxu0
      %v503 = vadd.f32 %v403, %v502
      %v504 = vpop.f32.mrb[0].mxu0
      %v505 = vpop.f32.mrb[0].mxu0
      %v506 = vadd.f32 %v406, %v505
      %v507 = vpop.f32.mrb[0].mxu0
      %508 = vdwg.mxu0
      %v509 = vld [vmem:[%s200] sm:$0xe]
      %v510 = vld [vmem:[%s200 + $0xc] sm:$0xe]
      %v511 = vld [vmem:[%s200 + $0x18] sm:$0xe]
      %v512 = vld [vmem:[%s200 + $0x24] sm:$0xe]
      %vm521 = vcmask 1042432
      %vm522 = vcmask 1046532
      %vm523 = vmor %vm521, %vm522
      %v524 = vrot.slane %v509, 5
      %v525 = vrot.slane %v524, 4
      %v526 = vrot.slane %v202, 5
      %v527 = vsel %vm523, %v525, %v526
      %v528 = vrot.slane %v526, 4
      %v529 = vrot.slane %v210, 5
      %v530 = vsel %vm523, %v528, %v529
      %v531 = vrot.slane %v510, 5
      %v532 = vrot.slane %v531, 4
      %v533 = vrot.slane %v204, 5
      %v534 = vsel %vm523, %v532, %v533
      %v535 = vrot.slane %v533, 4
      %v536 = vrot.slane %v211, 5
      %v537 = vsel %vm523, %v535, %v536
      %v538 = vrot.slane %v511, 5
      %v539 = vrot.slane %v538, 4
      %v540 = vrot.slane %v206, 5
      %v541 = vsel %vm523, %v539, %v540
      %v542 = vrot.slane %v540, 4
      %v543 = vrot.slane %v212, 5
      %v544 = vsel %vm523, %v542, %v543
      %v545 = vrot.slane %v512, 5
      %v546 = vrot.slane %v545, 4
      %v547 = vrot.slane %v208, 5
      %v548 = vsel %vm523, %v546, %v547
      %v549 = vrot.slane %v547, 4
      %v550 = vrot.slane %v213, 5
      %v551 = vsel %vm523, %v549, %v550
      %s552 = scalar_lea.vmem %s1, 8
      %v553 = vld [vmem:[%s552] sm:$0xf]
      %v554 = vunpack.c.l.b16 %v527
      %v555 = vunpack.c.l.b16 %v530
      %v556 = vunpack.c.l.b16 %v534
      %v557 = vunpack.c.l.b16 %v537
      %v558 = vunpack.c.l.b16 %v541
      %v559 = vunpack.c.l.b16 %v544
      %v560 = vunpack.c.l.b16 %v548
      %v561 = vunpack.c.l.b16 %v551
      %v562 = vpack.c.b16 %v555, %v554
      %v563 = vpack.c.b16 %v557, %v556
      %v564 = vpack.c.b16 %v559, %v558
      %v565 = vpack.c.b16 %v561, %v560
      %v567 = vsel %vm327, %v562, 0
      %v570 = vsel %vm327, %v563, 0
      %v573 = vsel %vm327, %v564, 0
      %v576 = vsel %vm327, %v565, 0
      %v579 = vsel %vm340, %v553, 0
      %581 = vmatprep.subr.bf16.mxu0 0
      %582 = vmatpush1.bf16.msra.mxu0 %v579
      %583 = vmatprep.subr.bf16.mxu0 0
      %584 = vmatpush1.bf16.msra.mxu0 0
      %585 = vmatprep.subr.bf16.mxu0 0
      %586 = vmatpush1.bf16.msra.mxu0 0
      %587 = vmatprep.subr.bf16.mxu0 0
      %588 = vmatpush1.bf16.msra.mxu0 0
      %589 = vmatprep.subr.bf16.mxu0 0
      %590 = vmatpush1.bf16.msra.mxu0 0
      %591 = vmatprep.subr.bf16.mxu0 0
      %592 = vmatpush1.bf16.msra.mxu0 0
      %593 = vmatprep.subr.bf16.mxu0 0
      %594 = vmatpush1.bf16.msra.mxu0 0
      %595 = vmatprep.subr.bf16.mxu0 0
      %596 = vmatpush1.bf16.msra.mxu0 0
      %597 = vmatprep.subr.bf16.mxu0 0
      %598 = vmatpush1.bf16.msra.mxu0 0
      %599 = vmatprep.subr.bf16.mxu0 0
      %600 = vmatpush1.bf16.msra.mxu0 0
      %601 = vmatprep.subr.bf16.mxu0 0
      %602 = vmatpush1.bf16.msra.mxu0 0
      %603 = vmatprep.subr.bf16.mxu0 0
      %604 = vmatpush1.bf16.msra.mxu0 0
      %605 = vmatprep.subr.bf16.mxu0 0
      %606 = vmatpush1.bf16.msra.mxu0 0
      %607 = vmatprep.subr.bf16.mxu0 0
      %608 = vmatpush1.bf16.msra.mxu0 0
      %609 = vmatprep.subr.bf16.mxu0 0
      %610 = vmatpush1.bf16.msra.mxu0 0
      %611 = vmatprep.subr.bf16.mxu0 0
      %612 = vmatpush1.bf16.msra.mxu0 0
      %613 = vmatprep.mubr.bf16.mxu0 0
      %614 = vmatmul.mubr.bf16.gmra.mrb[0].mxu0 %v567
      %v615 = vpop.f32.mrb[0].mxu0
      %v616 = vadd.f32 0.0, %v615
      %v617 = vpop.f32.mrb[0].mxu0
      %v618 = vpop.f32.mrb[0].mxu0
      %v619 = vadd.f32 0.0, %v618
      %v620 = vpop.f32.mrb[0].mxu0
      %621 = vmatprep.mubr.bf16.mxu0 0
      %622 = vmatmul.mubr.bf16.gmra.mrb[0].mxu0 %v570
      %v623 = vpop.f32.mrb[0].mxu0
      %v624 = vadd.f32 0.0, %v623
      %v625 = vpop.f32.mrb[0].mxu0
      %v626 = vpop.f32.mrb[0].mxu0
      %v627 = vadd.f32 0.0, %v626
      %v628 = vpop.f32.mrb[0].mxu0
      %629 = vmatprep.mubr.bf16.mxu0 0
      %630 = vmatmul.mubr.bf16.gmra.mrb[0].mxu0 %v573
      %v631 = vpop.f32.mrb[0].mxu0
      %v632 = vadd.f32 0.0, %v631
      %v633 = vpop.f32.mrb[0].mxu0
      %v634 = vpop.f32.mrb[0].mxu0
      %v635 = vadd.f32 0.0, %v634
      %v636 = vpop.f32.mrb[0].mxu0
      %637 = vmatprep.mubr.bf16.mxu0 0
      %638 = vmatmul.mubr.bf16.gmra.mrb[0].mxu0 %v576
      %v639 = vpop.f32.mrb[0].mxu0
      %v640 = vadd.f32 0.0, %v639
      %v641 = vpop.f32.mrb[0].mxu0
      %v642 = vpop.f32.mrb[0].mxu0
      %v643 = vadd.f32 0.0, %v642
      %v644 = vpop.f32.mrb[0].mxu0
      %645 = vdwg.mxu0
      %v646 = vadd.f32 %v479, %v616
      %v647 = vadd.f32 %v482, %v619
      %v648 = vadd.f32 %v487, %v624
      %v649 = vadd.f32 %v490, %v627
      %v650 = vadd.f32 %v495, %v632
      %v651 = vadd.f32 %v498, %v635
      %v652 = vadd.f32 %v503, %v640
      %v653 = vadd.f32 %v506, %v643
      %s654 = sadd.s32 %s197, 1
      %s655 = smul.u32 %s654, 3
      %s656 = smul.addr %s655, 4
      %s657 = scalar_lea.vmem %s184, %s656
      %v658 = vld [vmem:[%s657] sm:$0xf]
      %v659 = vld [vmem:[%s657 + $0x4] sm:$0xf]
      %v660 = vld [vmem:[%s657 + $0xc] sm:$0xf]
      %v661 = vld [vmem:[%s657 + $0x10] sm:$0xf]
      %v662 = vld [vmem:[%s657 + $0x18] sm:$0xf]
      %v663 = vld [vmem:[%s657 + $0x1c] sm:$0xf]
      %v664 = vld [vmem:[%s657 + $0x24] sm:$0xf]
      %v665 = vld [vmem:[%s657 + $0x28] sm:$0xf]
      %s666 = scalar_lea.vmem %s1, 12
      %v667 = vld [vmem:[%s666] sm:$0xf]
      %v676 = vunpack.c.l.b16 %v658
      %v677 = vunpack.c.l.b16 %v659
      %v678 = vunpack.c.l.b16 %v660
      %v679 = vunpack.c.l.b16 %v661
      %v680 = vunpack.c.l.b16 %v662
      %v681 = vunpack.c.l.b16 %v663
      %v682 = vunpack.c.l.b16 %v664
      %v683 = vunpack.c.l.b16 %v665
      %v684 = vpack.c.b16 %v677, %v676
      %v685 = vpack.c.b16 %v679, %v678
      %v686 = vpack.c.b16 %v681, %v680
      %v687 = vpack.c.b16 %v683, %v682
      %v689 = vsel %vm327, %v684, 0
      %v692 = vsel %vm327, %v685, 0
      %v695 = vsel %vm327, %v686, 0
      %v698 = vsel %vm327, %v687, 0
      %v701 = vsel %vm340, %v667, 0
      %703 = vmatprep.subr.bf16.mxu0 0
      %704 = vmatpush1.bf16.msra.mxu0 %v701
      %705 = vmatprep.subr.bf16.mxu0 0
      %706 = vmatpush1.bf16.msra.mxu0 0
      %707 = vmatprep.subr.bf16.mxu0 0
      %708 = vmatpush1.bf16.msra.mxu0 0
      %709 = vmatprep.subr.bf16.mxu0 0
      %710 = vmatpush1.bf16.msra.mxu0 0
      %711 = vmatprep.subr.bf16.mxu0 0
      %712 = vmatpush1.bf16.msra.mxu0 0
      %713 = vmatprep.subr.bf16.mxu0 0
      %714 = vmatpush1.bf16.msra.mxu0 0
      %715 = vmatprep.subr.bf16.mxu0 0
      %716 = vmatpush1.bf16.msra.mxu0 0
      %717 = vmatprep.subr.bf16.mxu0 0
      %718 = vmatpush1.bf16.msra.mxu0 0
      %719 = vmatprep.subr.bf16.mxu0 0
      %720 = vmatpush1.bf16.msra.mxu0 0
      %721 = vmatprep.subr.bf16.mxu0 0
      %722 = vmatpush1.bf16.msra.mxu0 0
      %723 = vmatprep.subr.bf16.mxu0 0
      %724 = vmatpush1.bf16.msra.mxu0 0
      %725 = vmatprep.subr.bf16.mxu0 0
      %726 = vmatpush1.bf16.msra.mxu0 0
      %727 = vmatprep.subr.bf16.mxu0 0
      %728 = vmatpush1.bf16.msra.mxu0 0
      %729 = vmatprep.subr.bf16.mxu0 0
      %730 = vmatpush1.bf16.msra.mxu0 0
      %731 = vmatprep.subr.bf16.mxu0 0
      %732 = vmatpush1.bf16.msra.mxu0 0
      %733 = vmatprep.subr.bf16.mxu0 0
      %734 = vmatpush1.bf16.msra.mxu0 0
      %735 = vmatprep.mubr.bf16.mxu0 0
      %736 = vmatmul.mubr.bf16.gmra.mrb[0].mxu0 %v689
      %v737 = vpop.f32.mrb[0].mxu0
      %v738 = vadd.f32 0.0, %v737
      %v739 = vpop.f32.mrb[0].mxu0
      %v740 = vpop.f32.mrb[0].mxu0
      %v741 = vadd.f32 0.0, %v740
      %v742 = vpop.f32.mrb[0].mxu0
      %743 = vmatprep.mubr.bf16.mxu0 0
      %744 = vmatmul.mubr.bf16.gmra.mrb[0].mxu0 %v692
      %v745 = vpop.f32.mrb[0].mxu0
      %v746 = vadd.f32 0.0, %v745
      %v747 = vpop.f32.mrb[0].mxu0
      %v748 = vpop.f32.mrb[0].mxu0
      %v749 = vadd.f32 0.0, %v748
      %v750 = vpop.f32.mrb[0].mxu0
      %751 = vmatprep.mubr.bf16.mxu0 0
      %752 = vmatmul.mubr.bf16.gmra.mrb[0].mxu0 %v695
      %v753 = vpop.f32.mrb[0].mxu0
      %v754 = vadd.f32 0.0, %v753
      %v755 = vpop.f32.mrb[0].mxu0
      %v756 = vpop.f32.mrb[0].mxu0
      %v757 = vadd.f32 0.0, %v756
      %v758 = vpop.f32.mrb[0].mxu0
      %759 = vmatprep.mubr.bf16.mxu0 0
      %760 = vmatmul.mubr.bf16.gmra.mrb[0].mxu0 %v698
      %v761 = vpop.f32.mrb[0].mxu0
      %v762 = vadd.f32 0.0, %v761
      %v763 = vpop.f32.mrb[0].mxu0
      %v764 = vpop.f32.mrb[0].mxu0
      %v765 = vadd.f32 0.0, %v764
      %v766 = vpop.f32.mrb[0].mxu0
      %767 = vdwg.mxu0
      %v768 = vadd.f32 %v646, %v738
      %v769 = vadd.f32 %v647, %v741
      %v770 = vadd.f32 %v648, %v746
      %v771 = vadd.f32 %v649, %v749
      %v772 = vadd.f32 %v650, %v754
      %v773 = vadd.f32 %v651, %v757
      %v774 = vadd.f32 %v652, %v762
      %v775 = vadd.f32 %v653, %v765
      %v776 = vld [vmem:[%s657] sm:$0xf]
      %v777 = vld [vmem:[%s657 + $0x4] sm:$0xf]
      %v778 = vld [vmem:[%s657 + $0x8] sm:$0x1]
      %v779 = vld [vmem:[%s657 + $0xc] sm:$0xf]
      %v780 = vld [vmem:[%s657 + $0x10] sm:$0xf]
      %v781 = vld [vmem:[%s657 + $0x14] sm:$0x1]
      %v782 = vld [vmem:[%s657 + $0x18] sm:$0xf]
      %v783 = vld [vmem:[%s657 + $0x1c] sm:$0xf]
      %v784 = vld [vmem:[%s657 + $0x20] sm:$0x1]
      %v785 = vld [vmem:[%s657 + $0x24] sm:$0xf]
      %v786 = vld [vmem:[%s657 + $0x28] sm:$0xf]
      %v787 = vld [vmem:[%s657 + $0x2c] sm:$0x1]
      %v789 = vshrl.u32 %v776, 16
      %v791 = vrot.slane %v789, 4
      %v792 = vshll.u32 %v776, 16
      %v794 = vrot.slane %v792, 5
      %v795 = vor.u32 %v791, %v794
      %v796 = vrot.slane %v795, 4
      %v798 = vshll.u32 %v777, 16
      %v800 = vrot.slane %v798, 5
      %v801 = vsel %vm216, %v796, %v800
      %v802 = vshrl.u32 %v777, 16
      %v804 = vrot.slane %v802, 4
      %v805 = vor.u32 %v804, %v800
      %v806 = vrot.slane %v805, 4
      %v808 = vshll.u32 %v778, 16
      %v810 = vrot.slane %v808, 5
      %v811 = vsel %vm216, %v806, %v810
      %v813 = vshrl.u32 %v779, 16
      %v815 = vrot.slane %v813, 4
      %v816 = vshll.u32 %v779, 16
      %v818 = vrot.slane %v816, 5
      %v819 = vor.u32 %v815, %v818
      %v820 = vrot.slane %v819, 4
      %v822 = vshll.u32 %v780, 16
      %v824 = vrot.slane %v822, 5
      %v825 = vsel %vm216, %v820, %v824
      %v826 = vshrl.u32 %v780, 16
      %v828 = vrot.slane %v826, 4
      %v829 = vor.u32 %v828, %v824
      %v830 = vrot.slane %v829, 4
      %v832 = vshll.u32 %v781, 16
      %v834 = vrot.slane %v832, 5
      %v835 = vsel %vm216, %v830, %v834
      %v837 = vshrl.u32 %v782, 16
      %v839 = vrot.slane %v837, 4
      %v840 = vshll.u32 %v782, 16
      %v842 = vrot.slane %v840, 5
      %v843 = vor.u32 %v839, %v842
      %v844 = vrot.slane %v843, 4
      %v846 = vshll.u32 %v783, 16
      %v848 = vrot.slane %v846, 5
      %v849 = vsel %vm216, %v844, %v848
      %v850 = vshrl.u32 %v783, 16
      %v852 = vrot.slane %v850, 4
      %v853 = vor.u32 %v852, %v848
      %v854 = vrot.slane %v853, 4
      %v856 = vshll.u32 %v784, 16
      %v858 = vrot.slane %v856, 5
      %v859 = vsel %vm216, %v854, %v858
      %v861 = vshrl.u32 %v785, 16
      %v863 = vrot.slane %v861, 4
      %v864 = vshll.u32 %v785, 16
      %v866 = vrot.slane %v864, 5
      %v867 = vor.u32 %v863, %v866
      %v868 = vrot.slane %v867, 4
      %v870 = vshll.u32 %v786, 16
      %v872 = vrot.slane %v870, 5
      %v873 = vsel %vm216, %v868, %v872
      %v874 = vshrl.u32 %v786, 16
      %v876 = vrot.slane %v874, 4
      %v877 = vor.u32 %v876, %v872
      %v878 = vrot.slane %v877, 4
      %v880 = vshll.u32 %v787, 16
      %v882 = vrot.slane %v880, 5
      %v883 = vsel %vm216, %v878, %v882
      %s884 = scalar_lea.vmem %s1, 16
      %v885 = vld [vmem:[%s884] sm:$0xf]
      %v886 = vunpack.c.l.b16 %v801
      %v887 = vunpack.c.l.b16 %v811
      %v888 = vunpack.c.l.b16 %v825
      %v889 = vunpack.c.l.b16 %v835
      %v890 = vunpack.c.l.b16 %v849
      %v891 = vunpack.c.l.b16 %v859
      %v892 = vunpack.c.l.b16 %v873
      %v893 = vunpack.c.l.b16 %v883
      %v894 = vpack.c.b16 %v887, %v886
      %v895 = vpack.c.b16 %v889, %v888
      %v896 = vpack.c.b16 %v891, %v890
      %v897 = vpack.c.b16 %v893, %v892
      %v899 = vsel %vm327, %v894, 0
      %v902 = vsel %vm327, %v895, 0
      %v905 = vsel %vm327, %v896, 0
      %v908 = vsel %vm327, %v897, 0
      %v911 = vsel %vm340, %v885, 0
      %913 = vmatprep.subr.bf16.mxu0 0
      %914 = vmatpush1.bf16.msra.mxu0 %v911
      %915 = vmatprep.subr.bf16.mxu0 0
      %916 = vmatpush1.bf16.msra.mxu0 0
      %917 = vmatprep.subr.bf16.mxu0 0
      %918 = vmatpush1.bf16.msra.mxu0 0
      %919 = vmatprep.subr.bf16.mxu0 0
      %920 = vmatpush1.bf16.msra.mxu0 0
      %921 = vmatprep.subr.bf16.mxu0 0
      %922 = vmatpush1.bf16.msra.mxu0 0
      %923 = vmatprep.subr.bf16.mxu0 0
      %924 = vmatpush1.bf16.msra.mxu0 0
      %925 = vmatprep.subr.bf16.mxu0 0
      %926 = vmatpush1.bf16.msra.mxu0 0
      %927 = vmatprep.subr.bf16.mxu0 0
      %928 = vmatpush1.bf16.msra.mxu0 0
      %929 = vmatprep.subr.bf16.mxu0 0
      %930 = vmatpush1.bf16.msra.mxu0 0
      %931 = vmatprep.subr.bf16.mxu0 0
      %932 = vmatpush1.bf16.msra.mxu0 0
      %933 = vmatprep.subr.bf16.mxu0 0
      %934 = vmatpush1.bf16.msra.mxu0 0
      %935 = vmatprep.subr.bf16.mxu0 0
      %936 = vmatpush1.bf16.msra.mxu0 0
      %937 = vmatprep.subr.bf16.mxu0 0
      %938 = vmatpush1.bf16.msra.mxu0 0
      %939 = vmatprep.subr.bf16.mxu0 0
      %940 = vmatpush1.bf16.msra.mxu0 0
      %941 = vmatprep.subr.bf16.mxu0 0
      %942 = vmatpush1.bf16.msra.mxu0 0
      %943 = vmatprep.subr.bf16.mxu0 0
      %944 = vmatpush1.bf16.msra.mxu0 0
      %945 = vmatprep.mubr.bf16.mxu0 0
      %946 = vmatmul.mubr.bf16.gmra.mrb[0].mxu0 %v899
      %v947 = vpop.f32.mrb[0].mxu0
      %v948 = vadd.f32 0.0, %v947
      %v949 = vpop.f32.mrb[0].mxu0
      %v950 = vpop.f32.mrb[0].mxu0
      %v951 = vadd.f32 0.0, %v950
      %v952 = vpop.f32.mrb[0].mxu0
      %953 = vmatprep.mubr.bf16.mxu0 0
      %954 = vmatmul.mubr.bf16.gmra.mrb[0].mxu0 %v902
      %v955 = vpop.f32.mrb[0].mxu0
      %v956 = vadd.f32 0.0, %v955
      %v957 = vpop.f32.mrb[0].mxu0
      %v958 = vpop.f32.mrb[0].mxu0
      %v959 = vadd.f32 0.0, %v958
      %v960 = vpop.f32.mrb[0].mxu0
      %961 = vmatprep.mubr.bf16.mxu0 0
      %962 = vmatmul.mubr.bf16.gmra.mrb[0].mxu0 %v905
      %v963 = vpop.f32.mrb[0].mxu0
      %v964 = vadd.f32 0.0, %v963
      %v965 = vpop.f32.mrb[0].mxu0
      %v966 = vpop.f32.mrb[0].mxu0
      %v967 = vadd.f32 0.0, %v966
      %v968 = vpop.f32.mrb[0].mxu0
      %969 = vmatprep.mubr.bf16.mxu0 0
      %970 = vmatmul.mubr.bf16.gmra.mrb[0].mxu0 %v908
      %v971 = vpop.f32.mrb[0].mxu0
      %v972 = vadd.f32 0.0, %v971
      %v973 = vpop.f32.mrb[0].mxu0
      %v974 = vpop.f32.mrb[0].mxu0
      %v975 = vadd.f32 0.0, %v974
      %v976 = vpop.f32.mrb[0].mxu0
      %977 = vdwg.mxu0
      %v978 = vadd.f32 %v768, %v948
      %v979 = vadd.f32 %v769, %v951
      %v980 = vadd.f32 %v770, %v956
      %v981 = vadd.f32 %v771, %v959
      %v982 = vadd.f32 %v772, %v964
      %v983 = vadd.f32 %v773, %v967
      %v984 = vadd.f32 %v774, %v972
      %v985 = vadd.f32 %v775, %v975
      %v986 = vld [vmem:[%s657] sm:$0xe]
      %v987 = vld [vmem:[%s657 + $0xc] sm:$0xe]
      %v988 = vld [vmem:[%s657 + $0x18] sm:$0xe]
      %v989 = vld [vmem:[%s657 + $0x24] sm:$0xe]
      %v1002 = vrot.slane %v986, 5
      %v1003 = vrot.slane %v1002, 4
      %v1004 = vrot.slane %v777, 5
      %v1005 = vsel %vm523, %v1003, %v1004
      %v1006 = vrot.slane %v1004, 4
      %v1007 = vrot.slane %v778, 5
      %v1008 = vsel %vm523, %v1006, %v1007
      %v1009 = vrot.slane %v987, 5
      %v1010 = vrot.slane %v1009, 4
      %v1011 = vrot.slane %v780, 5
      %v1012 = vsel %vm523, %v1010, %v1011
      %v1013 = vrot.slane %v1011, 4
      %v1014 = vrot.slane %v781, 5
      %v1015 = vsel %vm523, %v1013, %v1014
      %v1016 = vrot.slane %v988, 5
      %v1017 = vrot.slane %v1016, 4
      %v1018 = vrot.slane %v783, 5
      %v1019 = vsel %vm523, %v1017, %v1018
      %v1020 = vrot.slane %v1018, 4
      %v1021 = vrot.slane %v784, 5
      %v1022 = vsel %vm523, %v1020, %v1021
      %v1023 = vrot.slane %v989, 5
      %v1024 = vrot.slane %v1023, 4
      %v1025 = vrot.slane %v786, 5
      %v1026 = vsel %vm523, %v1024, %v1025
      %v1027 = vrot.slane %v1025, 4
      %v1028 = vrot.slane %v787, 5
      %v1029 = vsel %vm523, %v1027, %v1028
      %s1030 = scalar_lea.vmem %s1, 20
      %v1031 = vld [vmem:[%s1030] sm:$0xf]
      %v1032 = vunpack.c.l.b16 %v1005
      %v1033 = vunpack.c.l.b16 %v1008
      %v1034 = vunpack.c.l.b16 %v1012
      %v1035 = vunpack.c.l.b16 %v1015
      %v1036 = vunpack.c.l.b16 %v1019
      %v1037 = vunpack.c.l.b16 %v1022
      %v1038 = vunpack.c.l.b16 %v1026
      %v1039 = vunpack.c.l.b16 %v1029
      %v1040 = vpack.c.b16 %v1033, %v1032
      %v1041 = vpack.c.b16 %v1035, %v1034
      %v1042 = vpack.c.b16 %v1037, %v1036
      %v1043 = vpack.c.b16 %v1039, %v1038
      %v1045 = vsel %vm327, %v1040, 0
      %v1048 = vsel %vm327, %v1041, 0
      %v1051 = vsel %vm327, %v1042, 0
      %v1054 = vsel %vm327, %v1043, 0
      %v1057 = vsel %vm340, %v1031, 0
      %1059 = vmatprep.subr.bf16.mxu0 0
      %1060 = vmatpush1.bf16.msra.mxu0 %v1057
      %1061 = vmatprep.subr.bf16.mxu0 0
      %1062 = vmatpush1.bf16.msra.mxu0 0
      %1063 = vmatprep.subr.bf16.mxu0 0
      %1064 = vmatpush1.bf16.msra.mxu0 0
      %1065 = vmatprep.subr.bf16.mxu0 0
      %1066 = vmatpush1.bf16.msra.mxu0 0
      %1067 = vmatprep.subr.bf16.mxu0 0
      %1068 = vmatpush1.bf16.msra.mxu0 0
      %1069 = vmatprep.subr.bf16.mxu0 0
      %1070 = vmatpush1.bf16.msra.mxu0 0
      %1071 = vmatprep.subr.bf16.mxu0 0
      %1072 = vmatpush1.bf16.msra.mxu0 0
      %1073 = vmatprep.subr.bf16.mxu0 0
      %1074 = vmatpush1.bf16.msra.mxu0 0
      %1075 = vmatprep.subr.bf16.mxu0 0
      %1076 = vmatpush1.bf16.msra.mxu0 0
      %1077 = vmatprep.subr.bf16.mxu0 0
      %1078 = vmatpush1.bf16.msra.mxu0 0
      %1079 = vmatprep.subr.bf16.mxu0 0
      %1080 = vmatpush1.bf16.msra.mxu0 0
      %1081 = vmatprep.subr.bf16.mxu0 0
      %1082 = vmatpush1.bf16.msra.mxu0 0
      %1083 = vmatprep.subr.bf16.mxu0 0
      %1084 = vmatpush1.bf16.msra.mxu0 0
      %1085 = vmatprep.subr.bf16.mxu0 0
      %1086 = vmatpush1.bf16.msra.mxu0 0
      %1087 = vmatprep.subr.bf16.mxu0 0
      %1088 = vmatpush1.bf16.msra.mxu0 0
      %1089 = vmatprep.subr.bf16.mxu0 0
      %1090 = vmatpush1.bf16.msra.mxu0 0
      %1091 = vmatprep.mubr.bf16.mxu0 0
      %1092 = vmatmul.mubr.bf16.gmra.mrb[0].mxu0 %v1045
      %v1093 = vpop.f32.mrb[0].mxu0
      %v1094 = vadd.f32 0.0, %v1093
      %v1095 = vpop.f32.mrb[0].mxu0
      %v1096 = vpop.f32.mrb[0].mxu0
      %v1097 = vadd.f32 0.0, %v1096
      %v1098 = vpop.f32.mrb[0].mxu0
      %1099 = vmatprep.mubr.bf16.mxu0 0
      %1100 = vmatmul.mubr.bf16.gmra.mrb[0].mxu0 %v1048
      %v1101 = vpop.f32.mrb[0].mxu0
      %v1102 = vadd.f32 0.0, %v1101
      %v1103 = vpop.f32.mrb[0].mxu0
      %v1104 = vpop.f32.mrb[0].mxu0
      %v1105 = vadd.f32 0.0, %v1104
      %v1106 = vpop.f32.mrb[0].mxu0
      %1107 = vmatprep.mubr.bf16.mxu0 0
      %1108 = vmatmul.mubr.bf16.gmra.mrb[0].mxu0 %v1051
      %v1109 = vpop.f32.mrb[0].mxu0
      %v1110 = vadd.f32 0.0, %v1109
      %v1111 = vpop.f32.mrb[0].mxu0
      %v1112 = vpop.f32.mrb[0].mxu0
      %v1113 = vadd.f32 0.0, %v1112
      %v1114 = vpop.f32.mrb[0].mxu0
      %1115 = vmatprep.mubr.bf16.mxu0 0
      %1116 = vmatmul.mubr.bf16.gmra.mrb[0].mxu0 %v1054
      %v1117 = vpop.f32.mrb[0].mxu0
      %v1118 = vadd.f32 0.0, %v1117
      %v1119 = vpop.f32.mrb[0].mxu0
      %v1120 = vpop.f32.mrb[0].mxu0
      %v1121 = vadd.f32 0.0, %v1120
      %v1122 = vpop.f32.mrb[0].mxu0
      %1123 = vdwg.mxu0
      %v1124 = vadd.f32 %v978, %v1094
      %v1125 = vadd.f32 %v979, %v1097
      %v1126 = vadd.f32 %v980, %v1102
      %v1127 = vadd.f32 %v981, %v1105
      %v1128 = vadd.f32 %v982, %v1110
      %v1129 = vadd.f32 %v983, %v1113
      %v1130 = vadd.f32 %v984, %v1118
      %v1131 = vadd.f32 %v985, %v1121
      %s1132 = sadd.s32 %s197, 2
      %s1133 = smul.u32 %s1132, 3
      %s1134 = smul.addr %s1133, 4
      %s1135 = scalar_lea.vmem %s184, %s1134
      %v1136 = vld [vmem:[%s1135] sm:$0xf]
      %v1137 = vld [vmem:[%s1135 + $0x4] sm:$0xf]
      %v1138 = vld [vmem:[%s1135 + $0xc] sm:$0xf]
      %v1139 = vld [vmem:[%s1135 + $0x10] sm:$0xf]
      %v1140 = vld [vmem:[%s1135 + $0x18] sm:$0xf]
      %v1141 = vld [vmem:[%s1135 + $0x1c] sm:$0xf]
      %v1142 = vld [vmem:[%s1135 + $0x24] sm:$0xf]
      %v1143 = vld [vmem:[%s1135 + $0x28] sm:$0xf]
      %s1144 = scalar_lea.vmem %s1, 24
      %v1145 = vld [vmem:[%s1144] sm:$0xf]
      %v1154 = vunpack.c.l.b16 %v1136
      %v1155 = vunpack.c.l.b16 %v1137
      %v1156 = vunpack.c.l.b16 %v1138
      %v1157 = vunpack.c.l.b16 %v1139
      %v1158 = vunpack.c.l.b16 %v1140
      %v1159 = vunpack.c.l.b16 %v1141
      %v1160 = vunpack.c.l.b16 %v1142
      %v1161 = vunpack.c.l.b16 %v1143
      %v1162 = vpack.c.b16 %v1155, %v1154
      %v1163 = vpack.c.b16 %v1157, %v1156
      %v1164 = vpack.c.b16 %v1159, %v1158
      %v1165 = vpack.c.b16 %v1161, %v1160
      %v1167 = vsel %vm327, %v1162, 0
      %v1170 = vsel %vm327, %v1163, 0
      %v1173 = vsel %vm327, %v1164, 0
      %v1176 = vsel %vm327, %v1165, 0
      %v1179 = vsel %vm340, %v1145, 0
      %1181 = vmatprep.subr.bf16.mxu0 0
      %1182 = vmatpush1.bf16.msra.mxu0 %v1179
      %1183 = vmatprep.subr.bf16.mxu0 0
      %1184 = vmatpush1.bf16.msra.mxu0 0
      %1185 = vmatprep.subr.bf16.mxu0 0
      %1186 = vmatpush1.bf16.msra.mxu0 0
      %1187 = vmatprep.subr.bf16.mxu0 0
      %1188 = vmatpush1.bf16.msra.mxu0 0
      %1189 = vmatprep.subr.bf16.mxu0 0
      %1190 = vmatpush1.bf16.msra.mxu0 0
      %1191 = vmatprep.subr.bf16.mxu0 0
      %1192 = vmatpush1.bf16.msra.mxu0 0
      %1193 = vmatprep.subr.bf16.mxu0 0
      %1194 = vmatpush1.bf16.msra.mxu0 0
      %1195 = vmatprep.subr.bf16.mxu0 0
      %1196 = vmatpush1.bf16.msra.mxu0 0
      %1197 = vmatprep.subr.bf16.mxu0 0
      %1198 = vmatpush1.bf16.msra.mxu0 0
      %1199 = vmatprep.subr.bf16.mxu0 0
      %1200 = vmatpush1.bf16.msra.mxu0 0
      %1201 = vmatprep.subr.bf16.mxu0 0
      %1202 = vmatpush1.bf16.msra.mxu0 0
      %1203 = vmatprep.subr.bf16.mxu0 0
      %1204 = vmatpush1.bf16.msra.mxu0 0
      %1205 = vmatprep.subr.bf16.mxu0 0
      %1206 = vmatpush1.bf16.msra.mxu0 0
      %1207 = vmatprep.subr.bf16.mxu0 0
      %1208 = vmatpush1.bf16.msra.mxu0 0
      %1209 = vmatprep.subr.bf16.mxu0 0
      %1210 = vmatpush1.bf16.msra.mxu0 0
      %1211 = vmatprep.subr.bf16.mxu0 0
      %1212 = vmatpush1.bf16.msra.mxu0 0
      %1213 = vmatprep.mubr.bf16.mxu0 0
      %1214 = vmatmul.mubr.bf16.gmra.mrb[0].mxu0 %v1167
      %v1215 = vpop.f32.mrb[0].mxu0
      %v1216 = vadd.f32 0.0, %v1215
      %v1217 = vpop.f32.mrb[0].mxu0
      %v1218 = vpop.f32.mrb[0].mxu0
      %v1219 = vadd.f32 0.0, %v1218
      %v1220 = vpop.f32.mrb[0].mxu0
      %1221 = vmatprep.mubr.bf16.mxu0 0
      %1222 = vmatmul.mubr.bf16.gmra.mrb[0].mxu0 %v1170
      %v1223 = vpop.f32.mrb[0].mxu0
      %v1224 = vadd.f32 0.0, %v1223
      %v1225 = vpop.f32.mrb[0].mxu0
      %v1226 = vpop.f32.mrb[0].mxu0
      %v1227 = vadd.f32 0.0, %v1226
      %v1228 = vpop.f32.mrb[0].mxu0
      %1229 = vmatprep.mubr.bf16.mxu0 0
      %1230 = vmatmul.mubr.bf16.gmra.mrb[0].mxu0 %v1173
      %v1231 = vpop.f32.mrb[0].mxu0
      %v1232 = vadd.f32 0.0, %v1231
      %v1233 = vpop.f32.mrb[0].mxu0
      %v1234 = vpop.f32.mrb[0].mxu0
      %v1235 = vadd.f32 0.0, %v1234
      %v1236 = vpop.f32.mrb[0].mxu0
      %1237 = vmatprep.mubr.bf16.mxu0 0
      %1238 = vmatmul.mubr.bf16.gmra.mrb[0].mxu0 %v1176
      %v1239 = vpop.f32.mrb[0].mxu0
      %v1240 = vadd.f32 0.0, %v1239
      %v1241 = vpop.f32.mrb[0].mxu0
      %v1242 = vpop.f32.mrb[0].mxu0
      %v1243 = vadd.f32 0.0, %v1242
      %v1244 = vpop.f32.mrb[0].mxu0
      %1245 = vdwg.mxu0
      %v1246 = vadd.f32 %v1124, %v1216
      %v1247 = vadd.f32 %v1125, %v1219
      %v1248 = vadd.f32 %v1126, %v1224
      %v1249 = vadd.f32 %v1127, %v1227
      %v1250 = vadd.f32 %v1128, %v1232
      %v1251 = vadd.f32 %v1129, %v1235
      %v1252 = vadd.f32 %v1130, %v1240
      %v1253 = vadd.f32 %v1131, %v1243
      %v1254 = vld [vmem:[%s1135] sm:$0xf]
      %v1255 = vld [vmem:[%s1135 + $0x4] sm:$0xf]
      %v1256 = vld [vmem:[%s1135 + $0x8] sm:$0x1]
      %v1257 = vld [vmem:[%s1135 + $0xc] sm:$0xf]
      %v1258 = vld [vmem:[%s1135 + $0x10] sm:$0xf]
      %v1259 = vld [vmem:[%s1135 + $0x14] sm:$0x1]
      %v1260 = vld [vmem:[%s1135 + $0x18] sm:$0xf]
      %v1261 = vld [vmem:[%s1135 + $0x1c] sm:$0xf]
      %v1262 = vld [vmem:[%s1135 + $0x20] sm:$0x1]
      %v1263 = vld [vmem:[%s1135 + $0x24] sm:$0xf]
      %v1264 = vld [vmem:[%s1135 + $0x28] sm:$0xf]
      %v1265 = vld [vmem:[%s1135 + $0x2c] sm:$0x1]
      %v1267 = vshrl.u32 %v1254, 16
      %v1269 = vrot.slane %v1267, 4
      %v1270 = vshll.u32 %v1254, 16
      %v1272 = vrot.slane %v1270, 5
      %v1273 = vor.u32 %v1269, %v1272
      %v1274 = vrot.slane %v1273, 4
      %v1276 = vshll.u32 %v1255, 16
      %v1278 = vrot.slane %v1276, 5
      %v1279 = vsel %vm216, %v1274, %v1278
      %v1280 = vshrl.u32 %v1255, 16
      %v1282 = vrot.slane %v1280, 4
      %v1283 = vor.u32 %v1282, %v1278
      %v1284 = vrot.slane %v1283, 4
      %v1286 = vshll.u32 %v1256, 16
      %v1288 = vrot.slane %v1286, 5
      %v1289 = vsel %vm216, %v1284, %v1288
      %v1291 = vshrl.u32 %v1257, 16
      %v1293 = vrot.slane %v1291, 4
      %v1294 = vshll.u32 %v1257, 16
      %v1296 = vrot.slane %v1294, 5
      %v1297 = vor.u32 %v1293, %v1296
      %v1298 = vrot.slane %v1297, 4
      %v1300 = vshll.u32 %v1258, 16
      %v1302 = vrot.slane %v1300, 5
      %v1303 = vsel %vm216, %v1298, %v1302
      %v1304 = vshrl.u32 %v1258, 16
      %v1306 = vrot.slane %v1304, 4
      %v1307 = vor.u32 %v1306, %v1302
      %v1308 = vrot.slane %v1307, 4
      %v1310 = vshll.u32 %v1259, 16
      %v1312 = vrot.slane %v1310, 5
      %v1313 = vsel %vm216, %v1308, %v1312
      %v1315 = vshrl.u32 %v1260, 16
      %v1317 = vrot.slane %v1315, 4
      %v1318 = vshll.u32 %v1260, 16
      %v1320 = vrot.slane %v1318, 5
      %v1321 = vor.u32 %v1317, %v1320
      %v1322 = vrot.slane %v1321, 4
      %v1324 = vshll.u32 %v1261, 16
      %v1326 = vrot.slane %v1324, 5
      %v1327 = vsel %vm216, %v1322, %v1326
      %v1328 = vshrl.u32 %v1261, 16
      %v1330 = vrot.slane %v1328, 4
      %v1331 = vor.u32 %v1330, %v1326
      %v1332 = vrot.slane %v1331, 4
      %v1334 = vshll.u32 %v1262, 16
      %v1336 = vrot.slane %v1334, 5
      %v1337 = vsel %vm216, %v1332, %v1336
      %v1339 = vshrl.u32 %v1263, 16
      %v1341 = vrot.slane %v1339, 4
      %v1342 = vshll.u32 %v1263, 16
      %v1344 = vrot.slane %v1342, 5
      %v1345 = vor.u32 %v1341, %v1344
      %v1346 = vrot.slane %v1345, 4
      %v1348 = vshll.u32 %v1264, 16
      %v1350 = vrot.slane %v1348, 5
      %v1351 = vsel %vm216, %v1346, %v1350
      %v1352 = vshrl.u32 %v1264, 16
      %v1354 = vrot.slane %v1352, 4
      %v1355 = vor.u32 %v1354, %v1350
      %v1356 = vrot.slane %v1355, 4
      %v1358 = vshll.u32 %v1265, 16
      %v1360 = vrot.slane %v1358, 5
      %v1361 = vsel %vm216, %v1356, %v1360
      %s1362 = scalar_lea.vmem %s1, 28
      %v1363 = vld [vmem:[%s1362] sm:$0xf]
      %v1364 = vunpack.c.l.b16 %v1279
      %v1365 = vunpack.c.l.b16 %v1289
      %v1366 = vunpack.c.l.b16 %v1303
      %v1367 = vunpack.c.l.b16 %v1313
      %v1368 = vunpack.c.l.b16 %v1327
      %v1369 = vunpack.c.l.b16 %v1337
      %v1370 = vunpack.c.l.b16 %v1351
      %v1371 = vunpack.c.l.b16 %v1361
      %v1372 = vpack.c.b16 %v1365, %v1364
      %v1373 = vpack.c.b16 %v1367, %v1366
      %v1374 = vpack.c.b16 %v1369, %v1368
      %v1375 = vpack.c.b16 %v1371, %v1370
      %v1377 = vsel %vm327, %v1372, 0
      %v1380 = vsel %vm327, %v1373, 0
      %v1383 = vsel %vm327, %v1374, 0
      %v1386 = vsel %vm327, %v1375, 0
      %v1389 = vsel %vm340, %v1363, 0
      %1391 = vmatprep.subr.bf16.mxu0 0
      %1392 = vmatpush1.bf16.msra.mxu0 %v1389
      %1393 = vmatprep.subr.bf16.mxu0 0
      %1394 = vmatpush1.bf16.msra.mxu0 0
      %1395 = vmatprep.subr.bf16.mxu0 0
      %1396 = vmatpush1.bf16.msra.mxu0 0
      %1397 = vmatprep.subr.bf16.mxu0 0
      %1398 = vmatpush1.bf16.msra.mxu0 0
      %1399 = vmatprep.subr.bf16.mxu0 0
      %1400 = vmatpush1.bf16.msra.mxu0 0
      %1401 = vmatprep.subr.bf16.mxu0 0
      %1402 = vmatpush1.bf16.msra.mxu0 0
      %1403 = vmatprep.subr.bf16.mxu0 0
      %1404 = vmatpush1.bf16.msra.mxu0 0
      %1405 = vmatprep.subr.bf16.mxu0 0
      %1406 = vmatpush1.bf16.msra.mxu0 0
      %1407 = vmatprep.subr.bf16.mxu0 0
      %1408 = vmatpush1.bf16.msra.mxu0 0
      %1409 = vmatprep.subr.bf16.mxu0 0
      %1410 = vmatpush1.bf16.msra.mxu0 0
      %1411 = vmatprep.subr.bf16.mxu0 0
      %1412 = vmatpush1.bf16.msra.mxu0 0
      %1413 = vmatprep.subr.bf16.mxu0 0
      %1414 = vmatpush1.bf16.msra.mxu0 0
      %1415 = vmatprep.subr.bf16.mxu0 0
      %1416 = vmatpush1.bf16.msra.mxu0 0
      %1417 = vmatprep.subr.bf16.mxu0 0
      %1418 = vmatpush1.bf16.msra.mxu0 0
      %1419 = vmatprep.subr.bf16.mxu0 0
      %1420 = vmatpush1.bf16.msra.mxu0 0
      %1421 = vmatprep.subr.bf16.mxu0 0
      %1422 = vmatpush1.bf16.msra.mxu0 0
      %1423 = vmatprep.mubr.bf16.mxu0 0
      %1424 = vmatmul.mubr.bf16.gmra.mrb[0].mxu0 %v1377
      %v1425 = vpop.f32.mrb[0].mxu0
      %v1426 = vadd.f32 0.0, %v1425
      %v1427 = vpop.f32.mrb[0].mxu0
      %v1428 = vpop.f32.mrb[0].mxu0
      %v1429 = vadd.f32 0.0, %v1428
      %v1430 = vpop.f32.mrb[0].mxu0
      %1431 = vmatprep.mubr.bf16.mxu0 0
      %1432 = vmatmul.mubr.bf16.gmra.mrb[0].mxu0 %v1380
      %v1433 = vpop.f32.mrb[0].mxu0
      %v1434 = vadd.f32 0.0, %v1433
      %v1435 = vpop.f32.mrb[0].mxu0
      %v1436 = vpop.f32.mrb[0].mxu0
      %v1437 = vadd.f32 0.0, %v1436
      %v1438 = vpop.f32.mrb[0].mxu0
      %1439 = vmatprep.mubr.bf16.mxu0 0
      %1440 = vmatmul.mubr.bf16.gmra.mrb[0].mxu0 %v1383
      %v1441 = vpop.f32.mrb[0].mxu0
      %v1442 = vadd.f32 0.0, %v1441
      %v1443 = vpop.f32.mrb[0].mxu0
      %v1444 = vpop.f32.mrb[0].mxu0
      %v1445 = vadd.f32 0.0, %v1444
      %v1446 = vpop.f32.mrb[0].mxu0
      %1447 = vmatprep.mubr.bf16.mxu0 0
      %1448 = vmatmul.mubr.bf16.gmra.mrb[0].mxu0 %v1386
      %v1449 = vpop.f32.mrb[0].mxu0
      %v1450 = vadd.f32 0.0, %v1449
      %v1451 = vpop.f32.mrb[0].mxu0
      %v1452 = vpop.f32.mrb[0].mxu0
      %v1453 = vadd.f32 0.0, %v1452
      %v1454 = vpop.f32.mrb[0].mxu0
      %1455 = vdwg.mxu0
      %v1456 = vadd.f32 %v1246, %v1426
      %v1457 = vadd.f32 %v1247, %v1429
      %v1458 = vadd.f32 %v1248, %v1434
      %v1459 = vadd.f32 %v1249, %v1437
      %v1460 = vadd.f32 %v1250, %v1442
      %v1461 = vadd.f32 %v1251, %v1445
      %v1462 = vadd.f32 %v1252, %v1450
      %v1463 = vadd.f32 %v1253, %v1453
      %v1464 = vld [vmem:[%s1135] sm:$0xe]
      %v1465 = vld [vmem:[%s1135 + $0xc] sm:$0xe]
      %v1466 = vld [vmem:[%s1135 + $0x18] sm:$0xe]
      %v1467 = vld [vmem:[%s1135 + $0x24] sm:$0xe]
      %v1480 = vrot.slane %v1464, 5
      %v1481 = vrot.slane %v1480, 4
      %v1482 = vrot.slane %v1255, 5
      %v1483 = vsel %vm523, %v1481, %v1482
      %v1484 = vrot.slane %v1482, 4
      %v1485 = vrot.slane %v1256, 5
      %v1486 = vsel %vm523, %v1484, %v1485
      %v1487 = vrot.slane %v1465, 5
      %v1488 = vrot.slane %v1487, 4
      %v1489 = vrot.slane %v1258, 5
      %v1490 = vsel %vm523, %v1488, %v1489
      %v1491 = vrot.slane %v1489, 4
      %v1492 = vrot.slane %v1259, 5
      %v1493 = vsel %vm523, %v1491, %v1492
      %v1494 = vrot.slane %v1466, 5
      %v1495 = vrot.slane %v1494, 4
      %v1496 = vrot.slane %v1261, 5
      %v1497 = vsel %vm523, %v1495, %v1496
      %v1498 = vrot.slane %v1496, 4
      %v1499 = vrot.slane %v1262, 5
      %v1500 = vsel %vm523, %v1498, %v1499
      %v1501 = vrot.slane %v1467, 5
      %v1502 = vrot.slane %v1501, 4
      %v1503 = vrot.slane %v1264, 5
      %v1504 = vsel %vm523, %v1502, %v1503
      %v1505 = vrot.slane %v1503, 4
      %v1506 = vrot.slane %v1265, 5
      %v1507 = vsel %vm523, %v1505, %v1506
      %s1508 = scalar_lea.vmem %s1, 32
      %v1509 = vld [vmem:[%s1508] sm:$0xf]
      %v1510 = vunpack.c.l.b16 %v1483
      %v1511 = vunpack.c.l.b16 %v1486
      %v1512 = vunpack.c.l.b16 %v1490
      %v1513 = vunpack.c.l.b16 %v1493
      %v1514 = vunpack.c.l.b16 %v1497
      %v1515 = vunpack.c.l.b16 %v1500
      %v1516 = vunpack.c.l.b16 %v1504
      %v1517 = vunpack.c.l.b16 %v1507
      %v1518 = vpack.c.b16 %v1511, %v1510
      %v1519 = vpack.c.b16 %v1513, %v1512
      %v1520 = vpack.c.b16 %v1515, %v1514
      %v1521 = vpack.c.b16 %v1517, %v1516
      %v1523 = vsel %vm327, %v1518, 0
      %v1526 = vsel %vm327, %v1519, 0
      %v1529 = vsel %vm327, %v1520, 0
      %v1532 = vsel %vm327, %v1521, 0
      %v1535 = vsel %vm340, %v1509, 0
      %1537 = vmatprep.subr.bf16.mxu0 0
      %1538 = vmatpush1.bf16.msra.mxu0 %v1535
      %1539 = vmatprep.subr.bf16.mxu0 0
      %1540 = vmatpush1.bf16.msra.mxu0 0
      %1541 = vmatprep.subr.bf16.mxu0 0
      %1542 = vmatpush1.bf16.msra.mxu0 0
      %1543 = vmatprep.subr.bf16.mxu0 0
      %1544 = vmatpush1.bf16.msra.mxu0 0
      %1545 = vmatprep.subr.bf16.mxu0 0
      %1546 = vmatpush1.bf16.msra.mxu0 0
      %1547 = vmatprep.subr.bf16.mxu0 0
      %1548 = vmatpush1.bf16.msra.mxu0 0
      %1549 = vmatprep.subr.bf16.mxu0 0
      %1550 = vmatpush1.bf16.msra.mxu0 0
      %1551 = vmatprep.subr.bf16.mxu0 0
      %1552 = vmatpush1.bf16.msra.mxu0 0
      %1553 = vmatprep.subr.bf16.mxu0 0
      %1554 = vmatpush1.bf16.msra.mxu0 0
      %1555 = vmatprep.subr.bf16.mxu0 0
      %1556 = vmatpush1.bf16.msra.mxu0 0
      %1557 = vmatprep.subr.bf16.mxu0 0
      %1558 = vmatpush1.bf16.msra.mxu0 0
      %1559 = vmatprep.subr.bf16.mxu0 0
      %1560 = vmatpush1.bf16.msra.mxu0 0
      %1561 = vmatprep.subr.bf16.mxu0 0
      %1562 = vmatpush1.bf16.msra.mxu0 0
      %1563 = vmatprep.subr.bf16.mxu0 0
      %1564 = vmatpush1.bf16.msra.mxu0 0
      %1565 = vmatprep.subr.bf16.mxu0 0
      %1566 = vmatpush1.bf16.msra.mxu0 0
      %1567 = vmatprep.subr.bf16.mxu0 0
      %1568 = vmatpush1.bf16.msra.mxu0 0
      %1569 = vmatprep.mubr.bf16.mxu0 0
      %1570 = vmatmul.mubr.bf16.gmra.mrb[0].mxu0 %v1523
      %v1571 = vpop.f32.mrb[0].mxu0
      %v1572 = vadd.f32 0.0, %v1571
      %v1573 = vpop.f32.mrb[0].mxu0
      %v1574 = vpop.f32.mrb[0].mxu0
      %v1575 = vadd.f32 0.0, %v1574
      %v1576 = vpop.f32.mrb[0].mxu0
      %1577 = vmatprep.mubr.bf16.mxu0 0
      %1578 = vmatmul.mubr.bf16.gmra.mrb[0].mxu0 %v1526
      %v1579 = vpop.f32.mrb[0].mxu0
      %v1580 = vadd.f32 0.0, %v1579
      %v1581 = vpop.f32.mrb[0].mxu0
      %v1582 = vpop.f32.mrb[0].mxu0
      %v1583 = vadd.f32 0.0, %v1582
      %v1584 = vpop.f32.mrb[0].mxu0
      %1585 = vmatprep.mubr.bf16.mxu0 0
      %1586 = vmatmul.mubr.bf16.gmra.mrb[0].mxu0 %v1529
      %v1587 = vpop.f32.mrb[0].mxu0
      %v1588 = vadd.f32 0.0, %v1587
      %v1589 = vpop.f32.mrb[0].mxu0
      %v1590 = vpop.f32.mrb[0].mxu0
      %v1591 = vadd.f32 0.0, %v1590
      %v1592 = vpop.f32.mrb[0].mxu0
      %1593 = vmatprep.mubr.bf16.mxu0 0
      %1594 = vmatmul.mubr.bf16.gmra.mrb[0].mxu0 %v1532
      %v1595 = vpop.f32.mrb[0].mxu0
      %v1596 = vadd.f32 0.0, %v1595
      %v1597 = vpop.f32.mrb[0].mxu0
      %v1598 = vpop.f32.mrb[0].mxu0
      %v1599 = vadd.f32 0.0, %v1598
      %v1600 = vpop.f32.mrb[0].mxu0
      %1601 = vdwg.mxu0
      %v1602 = vadd.f32 %v1456, %v1572
      %v1603 = vadd.f32 %v1457, %v1575
      %v1604 = vadd.f32 %v1458, %v1580
      %v1605 = vadd.f32 %v1459, %v1583
      %v1606 = vadd.f32 %v1460, %v1588
      %v1607 = vadd.f32 %v1461, %v1591
      %v1608 = vadd.f32 %v1462, %v1596
      %v1609 = vadd.f32 %v1463, %v1599
      %v1610 = vld [vmem:[%s2] sm:$0x1]
      %v1612 = vlaneseq
      %v1613 = vshrl.u32 %v1612, 7
      %v1614 = vsub.s32 0, %v1613
      %v1615 = vrot.slane %v1610, %v1614
      %v1617 = vadd.f32 %v1602, %v1615
      %v1618 = vadd.f32 %v1603, %v1615
      %v1619 = vadd.f32 %v1604, %v1615
      %v1620 = vadd.f32 %v1605, %v1615
      %v1621 = vadd.f32 %v1606, %v1615
      %v1622 = vadd.f32 %v1607, %v1615
      %v1623 = vadd.f32 %v1608, %v1615
      %v1624 = vadd.f32 %v1609, %v1615
      %vm1625 = vcmp.ge.f32.partialorder %v1617, 0.0
      %vm1626 = vcmp.ge.f32.partialorder %v1618, 0.0
      %vm1627 = vcmp.ge.f32.partialorder %v1619, 0.0
      %vm1628 = vcmp.ge.f32.partialorder %v1620, 0.0
      %vm1629 = vcmp.ge.f32.partialorder %v1621, 0.0
      %vm1630 = vcmp.ge.f32.partialorder %v1622, 0.0
      %vm1631 = vcmp.ge.f32.partialorder %v1623, 0.0
      %vm1632 = vcmp.ge.f32.partialorder %v1624, 0.0
      %v1633 = vmul.f32 %v1617, 0.1
      %v1634 = vmul.f32 %v1618, 0.1
      %v1635 = vmul.f32 %v1619, 0.1
      %v1636 = vmul.f32 %v1620, 0.1
      %v1637 = vmul.f32 %v1621, 0.1
      %v1638 = vmul.f32 %v1622, 0.1
      %v1639 = vmul.f32 %v1623, 0.1
      %v1640 = vmul.f32 %v1624, 0.1
      %v1641 = vsel %vm1625, %v1617, %v1633
      %v1642 = vsel %vm1626, %v1618, %v1634
      %v1643 = vsel %vm1627, %v1619, %v1635
      %v1644 = vsel %vm1628, %v1620, %v1636
      %v1645 = vsel %vm1629, %v1621, %v1637
      %v1646 = vsel %vm1630, %v1622, %v1638
      %v1647 = vsel %vm1631, %v1623, %v1639
      %v1648 = vsel %vm1632, %v1624, %v1640
      %v1649 = vpack.c.bf16 %v1642, %v1641
      %v1650 = vpack.c.bf16 %v1644, %v1643
      %v1651 = vpack.c.bf16 %v1646, %v1645
      %v1652 = vpack.c.bf16 %v1648, %v1647
      %v1657 = vunpack.c.l.b16 %v1649
      %v1658 = vunpack.c.h.b16 %v1649
      %v1659 = vunpack.c.l.b16 %v1650
      %v1660 = vunpack.c.h.b16 %v1650
      %v1661 = vunpack.c.l.b16 %v1651
      %v1662 = vunpack.c.h.b16 %v1651
      %v1663 = vunpack.c.l.b16 %v1652
      %v1664 = vunpack.c.h.b16 %v1652
      %v1665 = vpack.c.b16 %v1657, %v1657
      %v1666 = vpack.c.b16 %v1658, %v1658
      %v1667 = vpack.c.b16 %v1659, %v1659
      %v1668 = vpack.c.b16 %v1660, %v1660
      %v1669 = vpack.c.b16 %v1661, %v1661
      %v1670 = vpack.c.b16 %v1662, %v1662
      %v1671 = vpack.c.b16 %v1663, %v1663
      %v1672 = vpack.c.b16 %v1664, %v1664
      %1681 = vst [vmem:[%s194] sm:$0xf] %v1665
      %1682 = vst [vmem:[%s194 + $0x4] sm:$0xf] %v1666
      %1683 = vst [vmem:[%s194 + $0x8] sm:$0xf] %v1667
      %1684 = vst [vmem:[%s194 + $0xc] sm:$0xf] %v1668
      %1685 = vst [vmem:[%s194 + $0x10] sm:$0xf] %v1669
      %1686 = vst [vmem:[%s194 + $0x14] sm:$0xf] %v1670
      %1687 = vst [vmem:[%s194 + $0x18] sm:$0xf] %v1671
      %1688 = vst [vmem:[%s194 + $0x1c] sm:$0xf] %v1672
      %s1689 = smul.u32 4, %s19
      %p1690 = scmp.lt.s32.totalorder %s18, 1
      %s1691 = scalar_select %p1690, %s18, 1
      %p1692 = scmp.lt.s32.totalorder %s1689, 15
      %s1693 = scalar_select %p1692, %s1689, 15
      %s1694 = smul.addr %s1693, 2
      %s1695 = smul.addr %s1691, 32
      %s1696 = sadd.s32 %s1694, %s1695
      %s1697 = smul.addr %s1696, 4
      %s1698 = scalar_lea.vmem %s3, %s1697
      // Predicated region
      $region33: #{darknet_forward.5} parent=31 // pred_check
        %p1699 = pneg %p114
      $region34: #{darknet_forward.5} parent=31 // pred_check_branch
        %1701 = sbr.rel (%p1699) target = $region36
      $region35: #{darknet_forward.5} parent=31 // pred_region
        %s1702 = smul.u32 4, %s19
      $region36: #{darknet_forward.5} parent=31 // pred_fallthru
        _
    $region32: #{darknet_forward.5} parent=5 // pred_fallthru
      _
    %p1703 = scmp.le.s32.totalorder 2, %s9
    // Predicated region
    $region37: #{darknet_forward.5} parent=5 // pred_check
      %p1704 = pneg %p1703
    $region38: #{darknet_forward.5} parent=5 // pred_check_branch
      %1706 = sbr.rel (%p1704) target = $region40
    $region39: #{darknet_forward.5} parent=5 // pred_region
      %s1707 = ssub.s32 %s9, 2
      // Predicated region
      $region41: #{darknet_forward.5} parent=39 // pred_check
        %p1708 = pneg %p120
      $region42: #{darknet_forward.5} parent=39 // pred_check_branch
        %1710 = sbr.rel (%p1708) target = $region44
      $region43: #{darknet_forward.5} parent=39 // pred_region
        %s1711 = smul.u32 4, %s21
        %p1712 = scmp.lt.s32.totalorder %s20, 1
        %s1713 = scalar_select %p1712, %s20, 1
        %p1714 = scmp.lt.s32.totalorder %s1711, 15
        %s1715 = scalar_select %p1714, %s1711, 15
        %s1716 = smul.addr %s1715, 2
        %s1717 = smul.addr %s1713, 32
        %s1718 = sadd.s32 %s1716, %s1717
        %s1719 = smul.addr %s1718, 4
        %s1720 = scalar_lea.vmem %s3, %s1719
      $region44: #{darknet_forward.5} parent=39 // pred_fallthru
        _
    $region40: #{darknet_forward.5} parent=5 // pred_fallthru
      _
  $region6: #{darknet_forward.5} parent=0 // loop_footer
    %s13 = sadd.s32 1, %s9
  $region7: #{darknet_forward.5} parent=0 // loop_footer_branch
    %8 = sbr.rel target = $region3
  $region8: #{darknet_forward.5} parent=0 // loop_exit
    _

// kernel: darknet_forward.9
$region0: #{darknet_forward.9}
  #allocation0 [shape = 'u32[]', space=smem, size = 0x4, offset = 0x4, fixed_abs, tag = 'smem constant byte address 0x4 - core index']
  #allocation1 [shape = 'u32[144,128]{1,0:T(1,128)}', space=vmem, size = 0x12000, scoped, tag = 'internal scratch']
  %s0 = inlined_call_operand.vmem [shape: bf16[2,8,8,64], index: 0, kind: input, shape index: {}]
  %s1 = inlined_call_operand.vmem [shape: bf16[1,64,128], index: 1, kind: input, shape index: {}]
  %s2 = inlined_call_operand.vmem [shape: f32[1,128], index: 2, kind: input, shape index: {}]
  %s3 = inlined_call_operand.vmem [shape: bf16[2,8,8,128], index: 3, kind: output, shape index: {}]
  %s4 = sld [smem:[#allocation0]]
  $region45: #{darknet_forward.9} parent=0
    _
  %s6 = ssub.s32 1, %s4
  %s7 = scalar_select 0, %s6, %s4
  loop: start=0, step=1, limit=10
  $region2: #{darknet_forward.9} parent=0 // loop_pre_header
    _
  $region3: #{darknet_forward.9} parent=0 // loop_header
    %s9 = sphi 0, %s13
    %p10 = scmp.ge.s32.totalorder %s9, 10
    %s16 = sphi 0, %s28
    %s17 = sphi 0, %s24
    %s18 = sphi 0, %s16
    %s19 = sphi 0, %s17
    %s20 = sphi 0, %s18
    %s21 = sphi 0, %s19
    %s31 = sphi 0, %s33
    %s34 = sphi 0, %s31
    %s35 = sphi 0, %s34
    %s51 = sphi 0, %s35
    %s55 = sphi 0, %s55
    %s57 = sphi 0, %s55
    %s58 = sphi 0, %s57
    %s72 = sphi 0, %s58
    %s76 = sphi 0, %s76
    %s78 = sphi 0, %s76
    %s79 = sphi 0, %s78
    %s93 = sphi 0, %s79
    %s101 = sphi 0, %s103
    %s104 = sphi 0, %s101
    %s105 = sphi 0, %s104
    %s121 = sphi 0, %s105
  $region4: #{darknet_forward.9} parent=0 // loop_header_branch
    %12 = sbr.rel (%p10) target = $region8
  $region5: #{darknet_forward.9} parent=0 // loop_body
    %s14 = ssub.s32 %s9, 1
    %s15 = ssub.s32 %s9, 2
    %s22 = sadd.s32 1, %s17
    %p23 = scmp.ge.s32.totalorder %s22, 4
    %s24 = scalar_select %p23, 0, %s22
    %s25 = sadd.s32 1, %s16
    %s26 = scalar_select %p23, %s25, %s16
    %p27 = scmp.ge.s32.totalorder %s26, 2
    %s28 = scalar_select %p27, 0, %s26
    %s29 = ssub.s32 %s16, %s28
    %p30 = scmp.eq.s32.totalorder %s29, 0
    %s32 = sadd.s32 %s31, 1
    %s33 = scalar_select %p30, %s31, %s32
    %p36 = pneg %p30
    %p37 = scmp.eq.s32.totalorder %s9, 7
    %p38 = por %p36, %p37
    %p39 = scmp.ne.s32.totalorder %s31, %s34
    %p40 = scmp.eq.s32.totalorder %s9, 0
    %p41 = por %p39, %p40
    %p42 = scmp.ne.s32.totalorder %s31, %s34
    %p43 = scmp.eq.s32.totalorder %s14, 7
    %p44 = por %p42, %p43
    %p45 = scmp.ne.s32.totalorder %s34, %s35
    %p46 = scmp.eq.s32.totalorder %s14, 0
    %p47 = por %p45, %p46
    %p48 = scmp.ne.s32.totalorder %s34, %s35
    %p49 = scmp.eq.s32.totalorder %s15, 7
    %p50 = por %p48, %p49
    %p52 = scmp.ne.s32.totalorder %s35, %s51
    %p53 = scmp.eq.s32.totalorder %s15, 0
    %p54 = por %p52, %p53
    %s56 = sadd.s32 %s55, 1
    %p59 = scmp.eq.s32.totalorder %s9, 7
    %p60 = scmp.ne.s32.totalorder %s55, %s57
    %p61 = scmp.eq.s32.totalorder %s9, 0
    %p62 = por %p60, %p61
    %p63 = scmp.ne.s32.totalorder %s55, %s57
    %p64 = scmp.eq.s32.totalorder %s14, 7
    %p65 = por %p63, %p64
    %p66 = scmp.ne.s32.totalorder %s57, %s58
    %p67 = scmp.eq.s32.totalorder %s14, 0
    %p68 = por %p66, %p67
    %p69 = scmp.ne.s32.totalorder %s57, %s58
    %p70 = scmp.eq.s32.totalorder %s15, 7
    %p71 = por %p69, %p70
    %p73 = scmp.ne.s32.totalorder %s58, %s72
    %p74 = scmp.eq.s32.totalorder %s15, 0
    %p75 = por %p73, %p74
    %s77 = sadd.s32 %s76, 1
    %p80 = scmp.eq.s32.totalorder %s9, 7
    %p81 = scmp.ne.s32.totalorder %s76, %s78
    %p82 = scmp.eq.s32.totalorder %s9, 0
    %p83 = por %p81, %p82
    %p84 = scmp.ne.s32.totalorder %s76, %s78
    %p85 = scmp.eq.s32.totalorder %s14, 7
    %p86 = por %p84, %p85
    %p87 = scmp.ne.s32.totalorder %s78, %s79
    %p88 = scmp.eq.s32.totalorder %s14, 0
    %p89 = por %p87, %p88
    %p90 = scmp.ne.s32.totalorder %s78, %s79
    %p91 = scmp.eq.s32.totalorder %s15, 7
    %p92 = por %p90, %p91
    %p94 = scmp.ne.s32.totalorder %s79, %s93
    %p95 = scmp.eq.s32.totalorder %s15, 0
    %p96 = por %p94, %p95
    %s97 = ssub.s32 %s16, %s28
    %s98 = ssub.s32 %s17, %s24
    %s99 = sor.u32 %s97, %s98
    %p100 = scmp.eq.s32.totalorder %s99, 0
    %s102 = sadd.s32 %s101, 1
    %s103 = scalar_select %p100, %s101, %s102
    %p106 = pneg %p100
    %p107 = scmp.eq.s32.totalorder %s9, 7
    %p108 = por %p106, %p107
    %p109 = scmp.ne.s32.totalorder %s101, %s104
    %p110 = scmp.eq.s32.totalorder %s9, 0
    %p111 = por %p109, %p110
    %p112 = scmp.ne.s32.totalorder %s101, %s104
    %p113 = scmp.eq.s32.totalorder %s14, 7
    %p114 = por %p112, %p113
    %p115 = scmp.ne.s32.totalorder %s104, %s105
    %p116 = scmp.eq.s32.totalorder %s14, 0
    %p117 = por %p115, %p116
    %p118 = scmp.ne.s32.totalorder %s104, %s105
    %p119 = scmp.eq.s32.totalorder %s15, 7
    %p120 = por %p118, %p119
    %p122 = scmp.ne.s32.totalorder %s105, %s121
    %p123 = scmp.eq.s32.totalorder %s15, 0
    %p124 = por %p122, %p123
    %p125 = scmp.le.s32.totalorder 1, %s9
    %p126 = scmp.lt.s32.totalorder %s9, 9
    %p127 = pnand %p125, %p126
    %p128 = pneg %p127
    // Predicated region
    $region9: #{darknet_forward.9} parent=5 // pred_check
      _
    $region10: #{darknet_forward.9} parent=5 // pred_check_branch
      %130 = sbr.rel (%p127) target = $region12
    $region11: #{darknet_forward.9} parent=5 // pred_region
      %s131 = ssub.s32 %s9, 1
      // Predicated region
      $region13: #{darknet_forward.9} parent=11 // pred_check
        %p132 = pneg %p68
      $region14: #{darknet_forward.9} parent=11 // pred_check_branch
        %134 = sbr.rel (%p132) target = $region16
      $region15: #{darknet_forward.9} parent=11 // pred_region
        _
      $region16: #{darknet_forward.9} parent=11 // pred_fallthru
        _
      // Predicated region
      $region17: #{darknet_forward.9} parent=11 // pred_check
        %p135 = pneg %p89
      $region18: #{darknet_forward.9} parent=11 // pred_check_branch
        %137 = sbr.rel (%p135) target = $region20
      $region19: #{darknet_forward.9} parent=11 // pred_region
        _
      $region20: #{darknet_forward.9} parent=11 // pred_fallthru
        _
    $region12: #{darknet_forward.9} parent=5 // pred_fallthru
      _
    %p138 = scmp.lt.s32.totalorder %s9, 8
    // Predicated region
    $region21: #{darknet_forward.9} parent=5 // pred_check
      %p139 = pneg %p138
    $region22: #{darknet_forward.9} parent=5 // pred_check_branch
      %141 = sbr.rel (%p139) target = $region24
    $region23: #{darknet_forward.9} parent=5 // pred_region
      // Predicated region
      $region25: #{darknet_forward.9} parent=23 // pred_check
        %p142 = pneg %p41
      $region26: #{darknet_forward.9} parent=23 // pred_check_branch
        %144 = sbr.rel (%p142) target = $region28
      $region27: #{darknet_forward.9} parent=23 // pred_region
        %p145 = scmp.lt.s32.totalorder %s16, 1
        %s146 = scalar_select %p145, %s16, 1
        %s147 = smul.addr %s146, 8
        %s148 = smul.addr %s147, 4
        %s149 = scalar_lea.vmem %s0, %s148
      $region28: #{darknet_forward.9} parent=23 // pred_fallthru
        _
    $region24: #{darknet_forward.9} parent=5 // pred_fallthru
      _
    %p150 = scmp.le.s32.totalorder 1, %s9
    %p151 = scmp.lt.s32.totalorder %s9, 9
    %p152 = pnand %p150, %p151
    %p153 = pneg %p152
    // Predicated region
    $region29: #{darknet_forward.9} parent=5 // pred_check
      _
    $region30: #{darknet_forward.9} parent=5 // pred_check_branch
      %155 = sbr.rel (%p152) target = $region32
    $region31: #{darknet_forward.9} parent=5 // pred_region
      %s156 = ssub.s32 %s9, 1
      %p157 = scmp.lt.s32.totalorder %s18, 1
      %s158 = scalar_select %p157, %s18, 1
      %s159 = smul.addr %s158, 8
      %s160 = smul.addr %s159, 4
      %s161 = scalar_lea.vmem %s0, %s160
      %p162 = pneg %p47
      %p163 = pneg %p44
      %p164 = pneg %p68
      %p165 = pneg %p65
      %p166 = pneg %p89
      %p167 = pneg %p86
      %p168 = pneg %p117
      %p169 = pneg %p114
      %s170 = smul.u32 2, %s19
      %p171 = scmp.lt.s32.totalorder %s18, 1
      %s172 = scalar_select %p171, %s18, 1
      %p173 = scmp.lt.s32.totalorder %s170, 7
      %s174 = scalar_select %p173, %s170, 7
      %s175 = smul.addr %s172, 8
      %s176 = sadd.s32 %s174, %s175
      %s177 = smul.addr %s176, 4
      %s178 = scalar_lea.vmem %s3, %s177
      %p179 = scmp.lt.s32.totalorder %s18, 1
      %s180 = scalar_select %p179, %s18, 1
      %s181 = smul.addr %s180, 8
      %s182 = smul.addr %s181, 4
      %s183 = scalar_lea.vmem %s0, %s182
      %s184 = smul.u32 2, %s19
      %p185 = scmp.lt.s32.totalorder %s18, 1
      %s186 = scalar_select %p185, %s18, 1
      %p187 = scmp.lt.s32.totalorder %s184, 7
      %s188 = scalar_select %p187, %s184, 7
      %s189 = smul.addr %s186, 8
      %s190 = sadd.s32 %s188, %s189
      %s191 = smul.addr %s190, 4
      %s192 = scalar_lea.vmem %s3, %s191
      %s193 = smul.u32 2, %s19
      %s195 = smul.u32 %s19, 2
      %s196 = smul.addr %s195, 4
      %s197 = scalar_lea.vmem %s183, %s196
      %v198 = vld [vmem:[%s197] sm:$0xf]
      %v199 = vld [vmem:[%s197 + $0x4] sm:$0xf]
      %v200 = vld [vmem:[%s1] sm:$0xf]
      %v201 = vld [vmem:[%s1 + $0x4] sm:$0xf]
      %v202 = vld [vmem:[%s1 + $0x8] sm:$0xf]
      %v203 = vld [vmem:[%s1 + $0xc] sm:$0xf]
      %v204 = vld [vmem:[%s1 + $0x10] sm:$0xf]
      %v205 = vld [vmem:[%s1 + $0x14] sm:$0xf]
      %v206 = vld [vmem:[%s1 + $0x18] sm:$0xf]
      %v207 = vld [vmem:[%s1 + $0x1c] sm:$0xf]
      %v208 = vld [vmem:[%s2] sm:$0x1]
      %v210 = vlaneseq
      %v211 = vshrl.u32 %v210, 7
      %v212 = vsub.s32 0, %v211
      %v213 = vrot.slane %v208, %v212
      %v217 = vunpack.c.l.b16 %v198
      %v218 = vunpack.c.l.b16 %v199
      %v219 = vpack.c.b16 %v218, %v217
      %v228 = vunpack.c.l.b16 %v200
      %v229 = vunpack.c.l.b16 %v201
      %v230 = vunpack.c.l.b16 %v202
      %v231 = vunpack.c.l.b16 %v203
      %v232 = vunpack.c.l.b16 %v204
      %v233 = vunpack.c.l.b16 %v205
      %v234 = vunpack.c.l.b16 %v206
      %v235 = vunpack.c.l.b16 %v207
      %v236 = vpack.c.b16 %v229, %v228
      %v237 = vpack.c.b16 %v231, %v230
      %v238 = vpack.c.b16 %v233, %v232
      %v239 = vpack.c.b16 %v235, %v234
      %vm244 = vcmask 523264
      %v246 = vsel %vm244, %v219, 0
      %248 = vmatprep.subr.bf16.mxu0 0
      %249 = vmatpush1.bf16.msra.mxu0 %v236
      %250 = vmatprep.subr.bf16.mxu0 0
      %251 = vmatpush1.bf16.msra.mxu0 %v237
      %252 = vmatprep.subr.bf16.mxu0 0
      %253 = vmatpush1.bf16.msra.mxu0 %v238
      %254 = vmatprep.subr.bf16.mxu0 0
      %255 = vmatpush1.bf16.msra.mxu0 %v239
      %256 = vmatprep.subr.bf16.mxu0 0
      %257 = vmatpush1.bf16.msra.mxu0 0
      %258 = vmatprep.subr.bf16.mxu0 0
      %259 = vmatpush1.bf16.msra.mxu0 0
      %260 = vmatprep.subr.bf16.mxu0 0
      %261 = vmatpush1.bf16.msra.mxu0 0
      %262 = vmatprep.subr.bf16.mxu0 0
      %263 = vmatpush1.bf16.msra.mxu0 0
      %264 = vmatprep.subr.bf16.mxu0 0
      %265 = vmatpush1.bf16.msra.mxu0 0
      %266 = vmatprep.subr.bf16.mxu0 0
      %267 = vmatpush1.bf16.msra.mxu0 0
      %268 = vmatprep.subr.bf16.mxu0 0
      %269 = vmatpush1.bf16.msra.mxu0 0
      %270 = vmatprep.subr.bf16.mxu0 0
      %271 = vmatpush1.bf16.msra.mxu0 0
      %272 = vmatprep.subr.bf16.mxu0 0
      %273 = vmatpush1.bf16.msra.mxu0 0
      %274 = vmatprep.subr.bf16.mxu0 0
      %275 = vmatpush1.bf16.msra.mxu0 0
      %276 = vmatprep.subr.bf16.mxu0 0
      %277 = vmatpush1.bf16.msra.mxu0 0
      %278 = vmatprep.subr.bf16.mxu0 0
      %279 = vmatpush1.bf16.msra.mxu0 0
      %280 = vmatprep.mubr.bf16.mxu0 0
      %281 = vmatmul.mubr.bf16.gmra.mrb[0].mxu0 %v246
      %v282 = vpop.f32.mrb[0].mxu0
      %v283 = vadd.f32 %v213, %v282
      %v284 = vpop.f32.mrb[0].mxu0
      %v285 = vpop.f32.mrb[0].mxu0
      %v286 = vadd.f32 %v213, %v285
      %v287 = vpop.f32.mrb[0].mxu0
      %288 = vdwg.mxu0
      %vm289 = vcmp.ge.f32.partialorder %v283, 0.0
      %vm290 = vcmp.ge.f32.partialorder %v286, 0.0
      %v291 = vmul.f32 %v283, 0.1
      %v292 = vmul.f32 %v286, 0.1
      %v293 = vsel %vm289, %v283, %v291
      %v294 = vsel %vm290, %v286, %v292
      %v295 = vpack.c.bf16 %v293, %v293
      %v296 = vpack.c.bf16 %v294, %v294
      %297 = vst [vmem:[%s192] sm:$0xf] %v295
      %298 = vst [vmem:[%s192 + $0x4] sm:$0xf] %v296
      %s299 = smul.u32 2, %s19
      %p300 = scmp.lt.s32.totalorder %s18, 1
      %s301 = scalar_select %p300, %s18, 1
      %p302 = scmp.lt.s32.totalorder %s299, 7
      %s303 = scalar_select %p302, %s299, 7
      %s304 = smul.addr %s301, 8
      %s305 = sadd.s32 %s303, %s304
      %s306 = smul.addr %s305, 4
      %s307 = scalar_lea.vmem %s3, %s306
      // Predicated region
      $region33: #{darknet_forward.9} parent=31 // pred_check
        %p308 = pneg %p114
      $region34: #{darknet_forward.9} parent=31 // pred_check_branch
        %310 = sbr.rel (%p308) target = $region36
      $region35: #{darknet_forward.9} parent=31 // pred_region
        %s311 = smul.u32 2, %s19
      $region36: #{darknet_forward.9} parent=31 // pred_fallthru
        _
    $region32: #{darknet_forward.9} parent=5 // pred_fallthru
      _
    %p312 = scmp.le.s32.totalorder 2, %s9
    // Predicated region
    $region37: #{darknet_forward.9} parent=5 // pred_check
      %p313 = pneg %p312
    $region38: #{darknet_forward.9} parent=5 // pred_check_branch
      %315 = sbr.rel (%p313) target = $region40
    $region39: #{darknet_forward.9} parent=5 // pred_region
      %s316 = ssub.s32 %s9, 2
      // Predicated region
      $region41: #{darknet_forward.9} parent=39 // pred_check
        %p317 = pneg %p120
      $region42: #{darknet_forward.9} parent=39 // pred_check_branch
        %319 = sbr.rel (%p317) target = $region44
      $region43: #{darknet_forward.9} parent=39 // pred_region
        %s320 = smul.u32 2, %s21
        %p321 = scmp.lt.s32.totalorder %s20, 1
        %s322 = scalar_select %p321, %s20, 1
        %p323 = scmp.lt.s32.totalorder %s320, 7
        %s324 = scalar_select %p323, %s320, 7
        %s325 = smul.addr %s322, 8
        %s326 = sadd.s32 %s324, %s325
        %s327 = smul.addr %s326, 4
        %s328 = scalar_lea.vmem %s3, %s327
      $region44: #{darknet_forward.9} parent=39 // pred_fallthru
        _
    $region40: #{darknet_forward.9} parent=5 // pred_fallthru
      _
  $region6: #{darknet_forward.9} parent=0 // loop_footer
    %s13 = sadd.s32 1, %s9
  $region7: #{darknet_forward.9} parent=0 // loop_footer_branch
    %8 = sbr.rel target = $region3
  $region8: #{darknet_forward.9} parent=0 // loop_exit
    _

// kernel: darknet_forward.8
$region0: #{darknet_forward.8}
  #allocation0 [shape = 'u32[]', space=smem, size = 0x4, offset = 0x4, fixed_abs, tag = 'smem constant byte address 0x4 - core index']
  #allocation1 [shape = 'u32[144,128]{1,0:T(1,128)}', space=vmem, size = 0x12000, scoped, tag = 'internal scratch']
  %s0 = inlined_call_operand.vmem [shape: bf16[2,10,10,32], index: 0, kind: input, shape index: {}]
  %s1 = inlined_call_operand.vmem [shape: bf16[9,32,128], index: 1, kind: input, shape index: {}]
  %s2 = inlined_call_operand.vmem [shape: f32[1,128], index: 2, kind: input, shape index: {}]
  %s3 = inlined_call_operand.vmem [shape: bf16[2,8,8,128], index: 3, kind: input, shape index: {}]
  %s4 = inlined_call_operand.vmem [shape: bf16[2,8,8,128], index: 4, kind: output, shape index: {}]
  %s5 = sld [smem:[#allocation0]]
  $region49: #{darknet_forward.8} parent=0
    _
  %s7 = ssub.s32 1, %s5
  %s8 = scalar_select 0, %s7, %s5
  loop: start=0, step=1, limit=10
  $region2: #{darknet_forward.8} parent=0 // loop_pre_header
    _
  $region3: #{darknet_forward.8} parent=0 // loop_header
    %s10 = sphi 0, %s14
    %p11 = scmp.ge.s32.totalorder %s10, 10
    %s17 = sphi 0, %s29
    %s18 = sphi 0, %s25
    %s19 = sphi 0, %s17
    %s20 = sphi 0, %s18
    %s21 = sphi 0, %s19
    %s22 = sphi 0, %s20
    %s32 = sphi 0, %s34
    %s35 = sphi 0, %s32
    %s36 = sphi 0, %s35
    %s52 = sphi 0, %s36
    %s56 = sphi 0, %s56
    %s58 = sphi 0, %s56
    %s59 = sphi 0, %s58
    %s73 = sphi 0, %s59
    %s77 = sphi 0, %s77
    %s79 = sphi 0, %s77
    %s80 = sphi 0, %s79
    %s94 = sphi 0, %s80
    %s102 = sphi 0, %s104
    %s105 = sphi 0, %s102
    %s106 = sphi 0, %s105
    %s122 = sphi 0, %s106
    %s130 = sphi 0, %s132
    %s133 = sphi 0, %s130
    %s134 = sphi 0, %s133
    %s150 = sphi 0, %s134
  $region4: #{darknet_forward.8} parent=0 // loop_header_branch
    %13 = sbr.rel (%p11) target = $region8
  $region5: #{darknet_forward.8} parent=0 // loop_body
    %s15 = ssub.s32 %s10, 1
    %s16 = ssub.s32 %s10, 2
    %s23 = sadd.s32 1, %s18
    %p24 = scmp.ge.s32.totalorder %s23, 4
    %s25 = scalar_select %p24, 0, %s23
    %s26 = sadd.s32 1, %s17
    %s27 = scalar_select %p24, %s26, %s17
    %p28 = scmp.ge.s32.totalorder %s27, 2
    %s29 = scalar_select %p28, 0, %s27
    %s30 = ssub.s32 %s17, %s29
    %p31 = scmp.eq.s32.totalorder %s30, 0
    %s33 = sadd.s32 %s32, 1
    %s34 = scalar_select %p31, %s32, %s33
    %p37 = pneg %p31
    %p38 = scmp.eq.s32.totalorder %s10, 7
    %p39 = por %p37, %p38
    %p40 = scmp.ne.s32.totalorder %s32, %s35
    %p41 = scmp.eq.s32.totalorder %s10, 0
    %p42 = por %p40, %p41
    %p43 = scmp.ne.s32.totalorder %s32, %s35
    %p44 = scmp.eq.s32.totalorder %s15, 7
    %p45 = por %p43, %p44
    %p46 = scmp.ne.s32.totalorder %s35, %s36
    %p47 = scmp.eq.s32.totalorder %s15, 0
    %p48 = por %p46, %p47
    %p49 = scmp.ne.s32.totalorder %s35, %s36
    %p50 = scmp.eq.s32.totalorder %s16, 7
    %p51 = por %p49, %p50
    %p53 = scmp.ne.s32.totalorder %s36, %s52
    %p54 = scmp.eq.s32.totalorder %s16, 0
    %p55 = por %p53, %p54
    %s57 = sadd.s32 %s56, 1
    %p60 = scmp.eq.s32.totalorder %s10, 7
    %p61 = scmp.ne.s32.totalorder %s56, %s58
    %p62 = scmp.eq.s32.totalorder %s10, 0
    %p63 = por %p61, %p62
    %p64 = scmp.ne.s32.totalorder %s56, %s58
    %p65 = scmp.eq.s32.totalorder %s15, 7
    %p66 = por %p64, %p65
    %p67 = scmp.ne.s32.totalorder %s58, %s59
    %p68 = scmp.eq.s32.totalorder %s15, 0
    %p69 = por %p67, %p68
    %p70 = scmp.ne.s32.totalorder %s58, %s59
    %p71 = scmp.eq.s32.totalorder %s16, 7
    %p72 = por %p70, %p71
    %p74 = scmp.ne.s32.totalorder %s59, %s73
    %p75 = scmp.eq.s32.totalorder %s16, 0
    %p76 = por %p74, %p75
    %s78 = sadd.s32 %s77, 1
    %p81 = scmp.eq.s32.totalorder %s10, 7
    %p82 = scmp.ne.s32.totalorder %s77, %s79
    %p83 = scmp.eq.s32.totalorder %s10, 0
    %p84 = por %p82, %p83
    %p85 = scmp.ne.s32.totalorder %s77, %s79
    %p86 = scmp.eq.s32.totalorder %s15, 7
    %p87 = por %p85, %p86
    %p88 = scmp.ne.s32.totalorder %s79, %s80
    %p89 = scmp.eq.s32.totalorder %s15, 0
    %p90 = por %p88, %p89
    %p91 = scmp.ne.s32.totalorder %s79, %s80
    %p92 = scmp.eq.s32.totalorder %s16, 7
    %p93 = por %p91, %p92
    %p95 = scmp.ne.s32.totalorder %s80, %s94
    %p96 = scmp.eq.s32.totalorder %s16, 0
    %p97 = por %p95, %p96
    %s98 = ssub.s32 %s17, %s29
    %s99 = ssub.s32 %s18, %s25
    %s100 = sor.u32 %s98, %s99
    %p101 = scmp.eq.s32.totalorder %s100, 0
    %s103 = sadd.s32 %s102, 1
    %s104 = scalar_select %p101, %s102, %s103
    %p107 = pneg %p101
    %p108 = scmp.eq.s32.totalorder %s10, 7
    %p109 = por %p107, %p108
    %p110 = scmp.ne.s32.totalorder %s102, %s105
    %p111 = scmp.eq.s32.totalorder %s10, 0
    %p112 = por %p110, %p111
    %p113 = scmp.ne.s32.totalorder %s102, %s105
    %p114 = scmp.eq.s32.totalorder %s15, 7
    %p115 = por %p113, %p114
    %p116 = scmp.ne.s32.totalorder %s105, %s106
    %p117 = scmp.eq.s32.totalorder %s15, 0
    %p118 = por %p116, %p117
    %p119 = scmp.ne.s32.totalorder %s105, %s106
    %p120 = scmp.eq.s32.totalorder %s16, 7
    %p121 = por %p119, %p120
    %p123 = scmp.ne.s32.totalorder %s106, %s122
    %p124 = scmp.eq.s32.totalorder %s16, 0
    %p125 = por %p123, %p124
    %s126 = ssub.s32 %s17, %s29
    %s127 = ssub.s32 %s18, %s25
    %s128 = sor.u32 %s126, %s127
    %p129 = scmp.eq.s32.totalorder %s128, 0
    %s131 = sadd.s32 %s130, 1
    %s132 = scalar_select %p129, %s130, %s131
    %p135 = pneg %p129
    %p136 = scmp.eq.s32.totalorder %s10, 7
    %p137 = por %p135, %p136
    %p138 = scmp.ne.s32.totalorder %s130, %s133
    %p139 = scmp.eq.s32.totalorder %s10, 0
    %p140 = por %p138, %p139
    %p141 = scmp.ne.s32.totalorder %s130, %s133
    %p142 = scmp.eq.s32.totalorder %s15, 7
    %p143 = por %p141, %p142
    %p144 = scmp.ne.s32.totalorder %s133, %s134
    %p145 = scmp.eq.s32.totalorder %s15, 0
    %p146 = por %p144, %p145
    %p147 = scmp.ne.s32.totalorder %s133, %s134
    %p148 = scmp.eq.s32.totalorder %s16, 7
    %p149 = por %p147, %p148
    %p151 = scmp.ne.s32.totalorder %s134, %s150
    %p152 = scmp.eq.s32.totalorder %s16, 0
    %p153 = por %p151, %p152
    %p154 = scmp.le.s32.totalorder 1, %s10
    %p155 = scmp.lt.s32.totalorder %s10, 9
    %p156 = pnand %p154, %p155
    %p157 = pneg %p156
    // Predicated region
    $region9: #{darknet_forward.8} parent=5 // pred_check
      _
    $region10: #{darknet_forward.8} parent=5 // pred_check_branch
      %159 = sbr.rel (%p156) target = $region12
    $region11: #{darknet_forward.8} parent=5 // pred_region
      %s160 = ssub.s32 %s10, 1
      // Predicated region
      $region13: #{darknet_forward.8} parent=11 // pred_check
        %p161 = pneg %p69
      $region14: #{darknet_forward.8} parent=11 // pred_check_branch
        %163 = sbr.rel (%p161) target = $region16
      $region15: #{darknet_forward.8} parent=11 // pred_region
        _
      $region16: #{darknet_forward.8} parent=11 // pred_fallthru
        _
      // Predicated region
      $region17: #{darknet_forward.8} parent=11 // pred_check
        %p164 = pneg %p90
      $region18: #{darknet_forward.8} parent=11 // pred_check_branch
        %166 = sbr.rel (%p164) target = $region20
      $region19: #{darknet_forward.8} parent=11 // pred_region
        _
      $region20: #{darknet_forward.8} parent=11 // pred_fallthru
        _
    $region12: #{darknet_forward.8} parent=5 // pred_fallthru
      _
    %p167 = scmp.lt.s32.totalorder %s10, 8
    // Predicated region
    $region21: #{darknet_forward.8} parent=5 // pred_check
      %p168 = pneg %p167
    $region22: #{darknet_forward.8} parent=5 // pred_check_branch
      %170 = sbr.rel (%p168) target = $region24
    $region23: #{darknet_forward.8} parent=5 // pred_region
      // Predicated region
      $region25: #{darknet_forward.8} parent=23 // pred_check
        %p171 = pneg %p42
      $region26: #{darknet_forward.8} parent=23 // pred_check_branch
        %173 = sbr.rel (%p171) target = $region28
      $region27: #{darknet_forward.8} parent=23 // pred_region
        %p174 = scmp.lt.s32.totalorder %s17, 1
        %s175 = scalar_select %p174, %s17, 1
        %s176 = smul.addr %s175, 20
        %s177 = smul.addr %s176, 4
        %s178 = scalar_lea.vmem %s0, %s177
      $region28: #{darknet_forward.8} parent=23 // pred_fallthru
        _
      // Predicated region
      $region29: #{darknet_forward.8} parent=23 // pred_check
        %p179 = pneg %p112
      $region30: #{darknet_forward.8} parent=23 // pred_check_branch
        %181 = sbr.rel (%p179) target = $region32
      $region31: #{darknet_forward.8} parent=23 // pred_region
        %s182 = smul.u32 2, %s18
        %p183 = scmp.lt.s32.totalorder %s17, 1
        %s184 = scalar_select %p183, %s17, 1
        %p185 = scmp.lt.s32.totalorder %s182, 7
        %s186 = scalar_select %p185, %s182, 7
        %s187 = smul.addr %s184, 8
        %s188 = sadd.s32 %s186, %s187
        %s189 = smul.addr %s188, 4
        %s190 = scalar_lea.vmem %s3, %s189
        %s191 = smul.u32 2, %s18
      $region32: #{darknet_forward.8} parent=23 // pred_fallthru
        _
    $region24: #{darknet_forward.8} parent=5 // pred_fallthru
      _
    %p192 = scmp.le.s32.totalorder 1, %s10
    %p193 = scmp.lt.s32.totalorder %s10, 9
    %p194 = pnand %p192, %p193
    %p195 = pneg %p194
    // Predicated region
    $region33: #{darknet_forward.8} parent=5 // pred_check
      _
    $region34: #{darknet_forward.8} parent=5 // pred_check_branch
      %197 = sbr.rel (%p194) target = $region36
    $region35: #{darknet_forward.8} parent=5 // pred_region
      %s198 = ssub.s32 %s10, 1
      %p199 = scmp.lt.s32.totalorder %s19, 1
      %s200 = scalar_select %p199, %s19, 1
      %s201 = smul.addr %s200, 20
      %s202 = smul.addr %s201, 4
      %s203 = scalar_lea.vmem %s0, %s202
      %p204 = pneg %p48
      %p205 = pneg %p45
      %p206 = pneg %p69
      %p207 = pneg %p66
      %p208 = pneg %p90
      %p209 = pneg %p87
      %s210 = smul.u32 2, %s20
      %p211 = scmp.lt.s32.totalorder %s19, 1
      %s212 = scalar_select %p211, %s19, 1
      %p213 = scmp.lt.s32.totalorder %s210, 7
      %s214 = scalar_select %p213, %s210, 7
      %s215 = smul.addr %s212, 8
      %s216 = sadd.s32 %s214, %s215
      %s217 = smul.addr %s216, 4
      %s218 = scalar_lea.vmem %s3, %s217
      %p219 = pneg %p118
      %p220 = pneg %p115
      %p221 = pneg %p146
      %p222 = pneg %p143
      %s223 = smul.u32 2, %s20
      %p224 = scmp.lt.s32.totalorder %s19, 1
      %s225 = scalar_select %p224, %s19, 1
      %p226 = scmp.lt.s32.totalorder %s223, 7
      %s227 = scalar_select %p226, %s223, 7
      %s228 = smul.addr %s225, 8
      %s229 = sadd.s32 %s227, %s228
      %s230 = smul.addr %s229, 4
      %s231 = scalar_lea.vmem %s4, %s230
      %p232 = scmp.lt.s32.totalorder %s19, 1
      %s233 = scalar_select %p232, %s19, 1
      %s234 = smul.addr %s233, 20
      %s235 = smul.addr %s234, 4
      %s236 = scalar_lea.vmem %s0, %s235
      %s237 = smul.u32 2, %s20
      %p238 = scmp.lt.s32.totalorder %s19, 1
      %s239 = scalar_select %p238, %s19, 1
      %p240 = scmp.lt.s32.totalorder %s237, 7
      %s241 = scalar_select %p240, %s237, 7
      %s242 = smul.addr %s239, 8
      %s243 = sadd.s32 %s241, %s242
      %s244 = smul.addr %s243, 4
      %s245 = scalar_lea.vmem %s3, %s244
      %s246 = smul.u32 2, %s20
      %s247 = smul.u32 2, %s20
      %p248 = scmp.lt.s32.totalorder %s19, 1
      %s249 = scalar_select %p248, %s19, 1
      %p250 = scmp.lt.s32.totalorder %s247, 7
      %s251 = scalar_select %p250, %s247, 7
      %s252 = smul.addr %s249, 8
      %s253 = sadd.s32 %s251, %s252
      %s254 = smul.addr %s253, 4
      %s255 = scalar_lea.vmem %s4, %s254
      %s256 = smul.u32 2, %s20
      %s258 = smul.u32 %s20, 2
      %s259 = smul.u32 %s258, 2
      %s260 = smul.addr %s259, 4
      %s261 = scalar_lea.vmem %s236, %s260
      %v262 = vld [vmem:[%s261] sm:$0xf]
      %v263 = vld [vmem:[%s261 + $0x8] sm:$0xf]
      %v264 = vld [vmem:[%s1] sm:$0xf]
      %v265 = vld [vmem:[%s1 + $0x4] sm:$0xf]
      %v266 = vld [vmem:[%s1 + $0x8] sm:$0xf]
      %v267 = vld [vmem:[%s1 + $0xc] sm:$0xf]
      %v268 = vld [vmem:[%s261 + $0x4] sm:$0x1]
      %v269 = vld [vmem:[%s261 + $0xc] sm:$0x1]
      %vm270 = vsmask.f32 3328
      %vm271 = vsmask.f32 7440
      %vm272 = vmor %vm270, %vm271
      %v274 = vshrl.u32 %v262, 16
      %v276 = vrot.slane %v274, 4
      %v277 = vshll.u32 %v262, 16
      %v279 = vrot.slane %v277, 5
      %v280 = vor.u32 %v276, %v279
      %v281 = vrot.slane %v280, 4
      %v283 = vshll.u32 %v268, 16
      %v285 = vrot.slane %v283, 5
      %v286 = vsel %vm272, %v281, %v285
      %v288 = vshrl.u32 %v263, 16
      %v290 = vrot.slane %v288, 4
      %v291 = vshll.u32 %v263, 16
      %v293 = vrot.slane %v291, 5
      %v294 = vor.u32 %v290, %v293
      %v295 = vrot.slane %v294, 4
      %v297 = vshll.u32 %v269, 16
      %v299 = vrot.slane %v297, 5
      %v300 = vsel %vm272, %v295, %v299
      %s301 = scalar_lea.vmem %s1, 16
      %v302 = vld [vmem:[%s301] sm:$0xf]
      %v303 = vld [vmem:[%s301 + $0x4] sm:$0xf]
      %v304 = vld [vmem:[%s301 + $0x8] sm:$0xf]
      %v305 = vld [vmem:[%s301 + $0xc] sm:$0xf]
      %v306 = vunpack.c.l.b16 %v286
      %v307 = vunpack.c.l.b16 %v300
      %v308 = vpack.c.b16 %v307, %v306
      %v313 = vunpack.c.l.b16 %v302
      %v314 = vunpack.c.l.b16 %v303
      %v315 = vunpack.c.l.b16 %v304
      %v316 = vunpack.c.l.b16 %v305
      %v317 = vpack.c.b16 %v314, %v313
      %v318 = vpack.c.b16 %v316, %v315
      %vm321 = vcmask 261120
      %v323 = vsel %vm321, %v308, 0
      %325 = vmatprep.subr.bf16.mxu0 0
      %326 = vmatpush1.bf16.msra.mxu0 %v317
      %327 = vmatprep.subr.bf16.mxu0 0
      %328 = vmatpush1.bf16.msra.mxu0 %v318
      %329 = vmatprep.subr.bf16.mxu0 0
      %330 = vmatpush1.bf16.msra.mxu0 0
      %331 = vmatprep.subr.bf16.mxu0 0
      %332 = vmatpush1.bf16.msra.mxu0 0
      %333 = vmatprep.subr.bf16.mxu0 0
      %334 = vmatpush1.bf16.msra.mxu0 0
      %335 = vmatprep.subr.bf16.mxu0 0
      %336 = vmatpush1.bf16.msra.mxu0 0
      %337 = vmatprep.subr.bf16.mxu0 0
      %338 = vmatpush1.bf16.msra.mxu0 0
      %339 = vmatprep.subr.bf16.mxu0 0
      %340 = vmatpush1.bf16.msra.mxu0 0
      %341 = vmatprep.subr.bf16.mxu0 0
      %342 = vmatpush1.bf16.msra.mxu0 0
      %343 = vmatprep.subr.bf16.mxu0 0
      %344 = vmatpush1.bf16.msra.mxu0 0
      %345 = vmatprep.subr.bf16.mxu0 0
      %346 = vmatpush1.bf16.msra.mxu0 0
      %347 = vmatprep.subr.bf16.mxu0 0
      %348 = vmatpush1.bf16.msra.mxu0 0
      %349 = vmatprep.subr.bf16.mxu0 0
      %350 = vmatpush1.bf16.msra.mxu0 0
      %351 = vmatprep.subr.bf16.mxu0 0
      %352 = vmatpush1.bf16.msra.mxu0 0
      %353 = vmatprep.subr.bf16.mxu0 0
      %354 = vmatpush1.bf16.msra.mxu0 0
      %355 = vmatprep.subr.bf16.mxu0 0
      %356 = vmatpush1.bf16.msra.mxu0 0
      %357 = vmatprep.mubr.bf16.mxu0 0
      %358 = vmatmul.mubr.bf16.gmra.mrb[0].mxu0 %v323
      %v359 = vpop.f32.mrb[0].mxu0
      %v360 = vadd.f32 0.0, %v359
      %v361 = vpop.f32.mrb[0].mxu0
      %v362 = vpop.f32.mrb[0].mxu0
      %v363 = vadd.f32 0.0, %v362
      %v364 = vpop.f32.mrb[0].mxu0
      %365 = vdwg.mxu0
      %v368 = vunpack.c.l.b16 %v262
      %v369 = vunpack.c.l.b16 %v263
      %v370 = vpack.c.b16 %v369, %v368
      %v375 = vunpack.c.l.b16 %v264
      %v376 = vunpack.c.l.b16 %v265
      %v377 = vunpack.c.l.b16 %v266
      %v378 = vunpack.c.l.b16 %v267
      %v379 = vpack.c.b16 %v376, %v375
      %v380 = vpack.c.b16 %v378, %v377
      %v384 = vsel %vm321, %v370, 0
      %386 = vmatprep.subr.bf16.mxu0 0
      %387 = vmatpush1.bf16.msra.mxu0 %v379
      %388 = vmatprep.subr.bf16.mxu0 0
      %389 = vmatpush1.bf16.msra.mxu0 %v380
      %390 = vmatprep.subr.bf16.mxu0 0
      %391 = vmatpush1.bf16.msra.mxu0 0
      %392 = vmatprep.subr.bf16.mxu0 0
      %393 = vmatpush1.bf16.msra.mxu0 0
      %394 = vmatprep.subr.bf16.mxu0 0
      %395 = vmatpush1.bf16.msra.mxu0 0
      %396 = vmatprep.subr.bf16.mxu0 0
      %397 = vmatpush1.bf16.msra.mxu0 0
      %398 = vmatprep.subr.bf16.mxu0 0
      %399 = vmatpush1.bf16.msra.mxu0 0
      %400 = vmatprep.subr.bf16.mxu0 0
      %401 = vmatpush1.bf16.msra.mxu0 0
      %402 = vmatprep.subr.bf16.mxu0 0
      %403 = vmatpush1.bf16.msra.mxu0 0
      %404 = vmatprep.subr.bf16.mxu0 0
      %405 = vmatpush1.bf16.msra.mxu0 0
      %406 = vmatprep.subr.bf16.mxu0 0
      %407 = vmatpush1.bf16.msra.mxu0 0
      %408 = vmatprep.subr.bf16.mxu0 0
      %409 = vmatpush1.bf16.msra.mxu0 0
      %410 = vmatprep.subr.bf16.mxu0 0
      %411 = vmatpush1.bf16.msra.mxu0 0
      %412 = vmatprep.subr.bf16.mxu0 0
      %413 = vmatpush1.bf16.msra.mxu0 0
      %414 = vmatprep.subr.bf16.mxu0 0
      %415 = vmatpush1.bf16.msra.mxu0 0
      %416 = vmatprep.subr.bf16.mxu0 0
      %417 = vmatpush1.bf16.msra.mxu0 0
      %418 = vmatprep.mubr.bf16.mxu0 0
      %419 = vmatmul.mubr.bf16.gmra.mrb[0].mxu0 %v384
      %v420 = vpop.f32.mrb[0].mxu0
      %v421 = vadd.f32 %v360, %v420
      %v422 = vpop.f32.mrb[0].mxu0
      %v423 = vpop.f32.mrb[0].mxu0
      %v424 = vadd.f32 %v363, %v423
      %v425 = vpop.f32.mrb[0].mxu0
      %426 = vdwg.mxu0
      %v427 = vld [vmem:[%s261] sm:$0xe]
      %v428 = vld [vmem:[%s261 + $0x8] sm:$0xe]
      %vm433 = vcmask 1042432
      %vm434 = vcmask 1046532
      %vm435 = vmor %vm433, %vm434
      %v436 = vrot.slane %v427, 5
      %v437 = vrot.slane %v436, 4
      %v438 = vrot.slane %v268, 5
      %v439 = vsel %vm435, %v437, %v438
      %v440 = vrot.slane %v428, 5
      %v441 = vrot.slane %v440, 4
      %v442 = vrot.slane %v269, 5
      %v443 = vsel %vm435, %v441, %v442
      %s444 = scalar_lea.vmem %s1, 32
      %v445 = vld [vmem:[%s444] sm:$0xf]
      %v446 = vld [vmem:[%s444 + $0x4] sm:$0xf]
      %v447 = vld [vmem:[%s444 + $0x8] sm:$0xf]
      %v448 = vld [vmem:[%s444 + $0xc] sm:$0xf]
      %v449 = vunpack.c.l.b16 %v439
      %v450 = vunpack.c.l.b16 %v443
      %v451 = vpack.c.b16 %v450, %v449
      %v456 = vunpack.c.l.b16 %v445
      %v457 = vunpack.c.l.b16 %v446
      %v458 = vunpack.c.l.b16 %v447
      %v459 = vunpack.c.l.b16 %v448
      %v460 = vpack.c.b16 %v457, %v456
      %v461 = vpack.c.b16 %v459, %v458
      %v465 = vsel %vm321, %v451, 0
      %467 = vmatprep.subr.bf16.mxu0 0
      %468 = vmatpush1.bf16.msra.mxu0 %v460
      %469 = vmatprep.subr.bf16.mxu0 0
      %470 = vmatpush1.bf16.msra.mxu0 %v461
      %471 = vmatprep.subr.bf16.mxu0 0
      %472 = vmatpush1.bf16.msra.mxu0 0
      %473 = vmatprep.subr.bf16.mxu0 0
      %474 = vmatpush1.bf16.msra.mxu0 0
      %475 = vmatprep.subr.bf16.mxu0 0
      %476 = vmatpush1.bf16.msra.mxu0 0
      %477 = vmatprep.subr.bf16.mxu0 0
      %478 = vmatpush1.bf16.msra.mxu0 0
      %479 = vmatprep.subr.bf16.mxu0 0
      %480 = vmatpush1.bf16.msra.mxu0 0
      %481 = vmatprep.subr.bf16.mxu0 0
      %482 = vmatpush1.bf16.msra.mxu0 0
      %483 = vmatprep.subr.bf16.mxu0 0
      %484 = vmatpush1.bf16.msra.mxu0 0
      %485 = vmatprep.subr.bf16.mxu0 0
      %486 = vmatpush1.bf16.msra.mxu0 0
      %487 = vmatprep.subr.bf16.mxu0 0
      %488 = vmatpush1.bf16.msra.mxu0 0
      %489 = vmatprep.subr.bf16.mxu0 0
      %490 = vmatpush1.bf16.msra.mxu0 0
      %491 = vmatprep.subr.bf16.mxu0 0
      %492 = vmatpush1.bf16.msra.mxu0 0
      %493 = vmatprep.subr.bf16.mxu0 0
      %494 = vmatpush1.bf16.msra.mxu0 0
      %495 = vmatprep.subr.bf16.mxu0 0
      %496 = vmatpush1.bf16.msra.mxu0 0
      %497 = vmatprep.subr.bf16.mxu0 0
      %498 = vmatpush1.bf16.msra.mxu0 0
      %499 = vmatprep.mubr.bf16.mxu0 0
      %500 = vmatmul.mubr.bf16.gmra.mrb[0].mxu0 %v465
      %v501 = vpop.f32.mrb[0].mxu0
      %v502 = vadd.f32 0.0, %v501
      %v503 = vpop.f32.mrb[0].mxu0
      %v504 = vpop.f32.mrb[0].mxu0
      %v505 = vadd.f32 0.0, %v504
      %v506 = vpop.f32.mrb[0].mxu0
      %507 = vdwg.mxu0
      %v508 = vadd.f32 %v421, %v502
      %v509 = vadd.f32 %v424, %v505
      %s510 = sadd.s32 %s258, 1
      %s511 = smul.u32 %s510, 2
      %s512 = smul.addr %s511, 4
      %s513 = scalar_lea.vmem %s236, %s512
      %v514 = vld [vmem:[%s513] sm:$0xf]
      %v515 = vld [vmem:[%s513 + $0x8] sm:$0xf]
      %s516 = scalar_lea.vmem %s1, 48
      %v517 = vld [vmem:[%s516] sm:$0xf]
      %v518 = vld [vmem:[%s516 + $0x4] sm:$0xf]
      %v519 = vld [vmem:[%s516 + $0x8] sm:$0xf]
      %v520 = vld [vmem:[%s516 + $0xc] sm:$0xf]
      %v523 = vunpack.c.l.b16 %v514
      %v524 = vunpack.c.l.b16 %v515
      %v525 = vpack.c.b16 %v524, %v523
      %v530 = vunpack.c.l.b16 %v517
      %v531 = vunpack.c.l.b16 %v518
      %v532 = vunpack.c.l.b16 %v519
      %v533 = vunpack.c.l.b16 %v520
      %v534 = vpack.c.b16 %v531, %v530
      %v535 = vpack.c.b16 %v533, %v532
      %v539 = vsel %vm321, %v525, 0
      %541 = vmatprep.subr.bf16.mxu0 0
      %542 = vmatpush1.bf16.msra.mxu0 %v534
      %543 = vmatprep.subr.bf16.mxu0 0
      %544 = vmatpush1.bf16.msra.mxu0 %v535
      %545 = vmatprep.subr.bf16.mxu0 0
      %546 = vmatpush1.bf16.msra.mxu0 0
      %547 = vmatprep.subr.bf16.mxu0 0
      %548 = vmatpush1.bf16.msra.mxu0 0
      %549 = vmatprep.subr.bf16.mxu0 0
      %550 = vmatpush1.bf16.msra.mxu0 0
      %551 = vmatprep.subr.bf16.mxu0 0
      %552 = vmatpush1.bf16.msra.mxu0 0
      %553 = vmatprep.subr.bf16.mxu0 0
      %554 = vmatpush1.bf16.msra.mxu0 0
      %555 = vmatprep.subr.bf16.mxu0 0
      %556 = vmatpush1.bf16.msra.mxu0 0
      %557 = vmatprep.subr.bf16.mxu0 0
      %558 = vmatpush1.bf16.msra.mxu0 0
      %559 = vmatprep.subr.bf16.mxu0 0
      %560 = vmatpush1.bf16.msra.mxu0 0
      %561 = vmatprep.subr.bf16.mxu0 0
      %562 = vmatpush1.bf16.msra.mxu0 0
      %563 = vmatprep.subr.bf16.mxu0 0
      %564 = vmatpush1.bf16.msra.mxu0 0
      %565 = vmatprep.subr.bf16.mxu0 0
      %566 = vmatpush1.bf16.msra.mxu0 0
      %567 = vmatprep.subr.bf16.mxu0 0
      %568 = vmatpush1.bf16.msra.mxu0 0
      %569 = vmatprep.subr.bf16.mxu0 0
      %570 = vmatpush1.bf16.msra.mxu0 0
      %571 = vmatprep.subr.bf16.mxu0 0
      %572 = vmatpush1.bf16.msra.mxu0 0
      %573 = vmatprep.mubr.bf16.mxu0 0
      %574 = vmatmul.mubr.bf16.gmra.mrb[0].mxu0 %v539
      %v575 = vpop.f32.mrb[0].mxu0
      %v576 = vadd.f32 0.0, %v575
      %v577 = vpop.f32.mrb[0].mxu0
      %v578 = vpop.f32.mrb[0].mxu0
      %v579 = vadd.f32 0.0, %v578
      %v580 = vpop.f32.mrb[0].mxu0
      %581 = vdwg.mxu0
      %v582 = vadd.f32 %v508, %v576
      %v583 = vadd.f32 %v509, %v579
      %v584 = vld [vmem:[%s513] sm:$0xf]
      %v585 = vld [vmem:[%s513 + $0x4] sm:$0x1]
      %v586 = vld [vmem:[%s513 + $0x8] sm:$0xf]
      %v587 = vld [vmem:[%s513 + $0xc] sm:$0x1]
      %v589 = vshrl.u32 %v584, 16
      %v591 = vrot.slane %v589, 4
      %v592 = vshll.u32 %v584, 16
      %v594 = vrot.slane %v592, 5
      %v595 = vor.u32 %v591, %v594
      %v596 = vrot.slane %v595, 4
      %v598 = vshll.u32 %v585, 16
      %v600 = vrot.slane %v598, 5
      %v601 = vsel %vm272, %v596, %v600
      %v603 = vshrl.u32 %v586, 16
      %v605 = vrot.slane %v603, 4
      %v606 = vshll.u32 %v586, 16
      %v608 = vrot.slane %v606, 5
      %v609 = vor.u32 %v605, %v608
      %v610 = vrot.slane %v609, 4
      %v612 = vshll.u32 %v587, 16
      %v614 = vrot.slane %v612, 5
      %v615 = vsel %vm272, %v610, %v614
      %s616 = scalar_lea.vmem %s1, 64
      %v617 = vld [vmem:[%s616] sm:$0xf]
      %v618 = vld [vmem:[%s616 + $0x4] sm:$0xf]
      %v619 = vld [vmem:[%s616 + $0x8] sm:$0xf]
      %v620 = vld [vmem:[%s616 + $0xc] sm:$0xf]
      %v621 = vunpack.c.l.b16 %v601
      %v622 = vunpack.c.l.b16 %v615
      %v623 = vpack.c.b16 %v622, %v621
      %v628 = vunpack.c.l.b16 %v617
      %v629 = vunpack.c.l.b16 %v618
      %v630 = vunpack.c.l.b16 %v619
      %v631 = vunpack.c.l.b16 %v620
      %v632 = vpack.c.b16 %v629, %v628
      %v633 = vpack.c.b16 %v631, %v630
      %v637 = vsel %vm321, %v623, 0
      %639 = vmatprep.subr.bf16.mxu0 0
      %640 = vmatpush1.bf16.msra.mxu0 %v632
      %641 = vmatprep.subr.bf16.mxu0 0
      %642 = vmatpush1.bf16.msra.mxu0 %v633
      %643 = vmatprep.subr.bf16.mxu0 0
      %644 = vmatpush1.bf16.msra.mxu0 0
      %645 = vmatprep.subr.bf16.mxu0 0
      %646 = vmatpush1.bf16.msra.mxu0 0
      %647 = vmatprep.subr.bf16.mxu0 0
      %648 = vmatpush1.bf16.msra.mxu0 0
      %649 = vmatprep.subr.bf16.mxu0 0
      %650 = vmatpush1.bf16.msra.mxu0 0
      %651 = vmatprep.subr.bf16.mxu0 0
      %652 = vmatpush1.bf16.msra.mxu0 0
      %653 = vmatprep.subr.bf16.mxu0 0
      %654 = vmatpush1.bf16.msra.mxu0 0
      %655 = vmatprep.subr.bf16.mxu0 0
      %656 = vmatpush1.bf16.msra.mxu0 0
      %657 = vmatprep.subr.bf16.mxu0 0
      %658 = vmatpush1.bf16.msra.mxu0 0
      %659 = vmatprep.subr.bf16.mxu0 0
      %660 = vmatpush1.bf16.msra.mxu0 0
      %661 = vmatprep.subr.bf16.mxu0 0
      %662 = vmatpush1.bf16.msra.mxu0 0
      %663 = vmatprep.subr.bf16.mxu0 0
      %664 = vmatpush1.bf16.msra.mxu0 0
      %665 = vmatprep.subr.bf16.mxu0 0
      %666 = vmatpush1.bf16.msra.mxu0 0
      %667 = vmatprep.subr.bf16.mxu0 0
      %668 = vmatpush1.bf16.msra.mxu0 0
      %669 = vmatprep.subr.bf16.mxu0 0
      %670 = vmatpush1.bf16.msra.mxu0 0
      %671 = vmatprep.mubr.bf16.mxu0 0
      %672 = vmatmul.mubr.bf16.gmra.mrb[0].mxu0 %v637
      %v673 = vpop.f32.mrb[0].mxu0
      %v674 = vadd.f32 0.0, %v673
      %v675 = vpop.f32.mrb[0].mxu0
      %v676 = vpop.f32.mrb[0].mxu0
      %v677 = vadd.f32 0.0, %v676
      %v678 = vpop.f32.mrb[0].mxu0
      %679 = vdwg.mxu0
      %v680 = vadd.f32 %v582, %v674
      %v681 = vadd.f32 %v583, %v677
      %v682 = vld [vmem:[%s513] sm:$0xe]
      %v683 = vld [vmem:[%s513 + $0x8] sm:$0xe]
      %v688 = vrot.slane %v682, 5
      %v689 = vrot.slane %v688, 4
      %v690 = vrot.slane %v585, 5
      %v691 = vsel %vm435, %v689, %v690
      %v692 = vrot.slane %v683, 5
      %v693 = vrot.slane %v692, 4
      %v694 = vrot.slane %v587, 5
      %v695 = vsel %vm435, %v693, %v694
      %s696 = scalar_lea.vmem %s1, 80
      %v697 = vld [vmem:[%s696] sm:$0xf]
      %v698 = vld [vmem:[%s696 + $0x4] sm:$0xf]
      %v699 = vld [vmem:[%s696 + $0x8] sm:$0xf]
      %v700 = vld [vmem:[%s696 + $0xc] sm:$0xf]
      %v701 = vunpack.c.l.b16 %v691
      %v702 = vunpack.c.l.b16 %v695
      %v703 = vpack.c.b16 %v702, %v701
      %v708 = vunpack.c.l.b16 %v697
      %v709 = vunpack.c.l.b16 %v698
      %v710 = vunpack.c.l.b16 %v699
      %v711 = vunpack.c.l.b16 %v700
      %v712 = vpack.c.b16 %v709, %v708
      %v713 = vpack.c.b16 %v711, %v710
      %v717 = vsel %vm321, %v703, 0
      %719 = vmatprep.subr.bf16.mxu0 0
      %720 = vmatpush1.bf16.msra.mxu0 %v712
      %721 = vmatprep.subr.bf16.mxu0 0
      %722 = vmatpush1.bf16.msra.mxu0 %v713
      %723 = vmatprep.subr.bf16.mxu0 0
      %724 = vmatpush1.bf16.msra.mxu0 0
      %725 = vmatprep.subr.bf16.mxu0 0
      %726 = vmatpush1.bf16.msra.mxu0 0
      %727 = vmatprep.subr.bf16.mxu0 0
      %728 = vmatpush1.bf16.msra.mxu0 0
      %729 = vmatprep.subr.bf16.mxu0 0
      %730 = vmatpush1.bf16.msra.mxu0 0
      %731 = vmatprep.subr.bf16.mxu0 0
      %732 = vmatpush1.bf16.msra.mxu0 0
      %733 = vmatprep.subr.bf16.mxu0 0
      %734 = vmatpush1.bf16.msra.mxu0 0
      %735 = vmatprep.subr.bf16.mxu0 0
      %736 = vmatpush1.bf16.msra.mxu0 0
      %737 = vmatprep.subr.bf16.mxu0 0
      %738 = vmatpush1.bf16.msra.mxu0 0
      %739 = vmatprep.subr.bf16.mxu0 0
      %740 = vmatpush1.bf16.msra.mxu0 0
      %741 = vmatprep.subr.bf16.mxu0 0
      %742 = vmatpush1.bf16.msra.mxu0 0
      %743 = vmatprep.subr.bf16.mxu0 0
      %744 = vmatpush1.bf16.msra.mxu0 0
      %745 = vmatprep.subr.bf16.mxu0 0
      %746 = vmatpush1.bf16.msra.mxu0 0
      %747 = vmatprep.subr.bf16.mxu0 0
      %748 = vmatpush1.bf16.msra.mxu0 0
      %749 = vmatprep.subr.bf16.mxu0 0
      %750 = vmatpush1.bf16.msra.mxu0 0
      %751 = vmatprep.mubr.bf16.mxu0 0
      %752 = vmatmul.mubr.bf16.gmra.mrb[0].mxu0 %v717
      %v753 = vpop.f32.mrb[0].mxu0
      %v754 = vadd.f32 0.0, %v753
      %v755 = vpop.f32.mrb[0].mxu0
      %v756 = vpop.f32.mrb[0].mxu0
      %v757 = vadd.f32 0.0, %v756
      %v758 = vpop.f32.mrb[0].mxu0
      %759 = vdwg.mxu0
      %v760 = vadd.f32 %v680, %v754
      %v761 = vadd.f32 %v681, %v757
      %s762 = sadd.s32 %s258, 2
      %s763 = smul.u32 %s762, 2
      %s764 = smul.addr %s763, 4
      %s765 = scalar_lea.vmem %s236, %s764
      %v766 = vld [vmem:[%s765] sm:$0xf]
      %v767 = vld [vmem:[%s765 + $0x8] sm:$0xf]
      %s768 = scalar_lea.vmem %s1, 96
      %v769 = vld [vmem:[%s768] sm:$0xf]
      %v770 = vld [vmem:[%s768 + $0x4] sm:$0xf]
      %v771 = vld [vmem:[%s768 + $0x8] sm:$0xf]
      %v772 = vld [vmem:[%s768 + $0xc] sm:$0xf]
      %v775 = vunpack.c.l.b16 %v766
      %v776 = vunpack.c.l.b16 %v767
      %v777 = vpack.c.b16 %v776, %v775
      %v782 = vunpack.c.l.b16 %v769
      %v783 = vunpack.c.l.b16 %v770
      %v784 = vunpack.c.l.b16 %v771
      %v785 = vunpack.c.l.b16 %v772
      %v786 = vpack.c.b16 %v783, %v782
      %v787 = vpack.c.b16 %v785, %v784
      %v791 = vsel %vm321, %v777, 0
      %793 = vmatprep.subr.bf16.mxu0 0
      %794 = vmatpush1.bf16.msra.mxu0 %v786
      %795 = vmatprep.subr.bf16.mxu0 0
      %796 = vmatpush1.bf16.msra.mxu0 %v787
      %797 = vmatprep.subr.bf16.mxu0 0
      %798 = vmatpush1.bf16.msra.mxu0 0
      %799 = vmatprep.subr.bf16.mxu0 0
      %800 = vmatpush1.bf16.msra.mxu0 0
      %801 = vmatprep.subr.bf16.mxu0 0
      %802 = vmatpush1.bf16.msra.mxu0 0
      %803 = vmatprep.subr.bf16.mxu0 0
      %804 = vmatpush1.bf16.msra.mxu0 0
      %805 = vmatprep.subr.bf16.mxu0 0
      %806 = vmatpush1.bf16.msra.mxu0 0
      %807 = vmatprep.subr.bf16.mxu0 0
      %808 = vmatpush1.bf16.msra.mxu0 0
      %809 = vmatprep.subr.bf16.mxu0 0
      %810 = vmatpush1.bf16.msra.mxu0 0
      %811 = vmatprep.subr.bf16.mxu0 0
      %812 = vmatpush1.bf16.msra.mxu0 0
      %813 = vmatprep.subr.bf16.mxu0 0
      %814 = vmatpush1.bf16.msra.mxu0 0
      %815 = vmatprep.subr.bf16.mxu0 0
      %816 = vmatpush1.bf16.msra.mxu0 0
      %817 = vmatprep.subr.bf16.mxu0 0
      %818 = vmatpush1.bf16.msra.mxu0 0
      %819 = vmatprep.subr.bf16.mxu0 0
      %820 = vmatpush1.bf16.msra.mxu0 0
      %821 = vmatprep.subr.bf16.mxu0 0
      %822 = vmatpush1.bf16.msra.mxu0 0
      %823 = vmatprep.subr.bf16.mxu0 0
      %824 = vmatpush1.bf16.msra.mxu0 0
      %825 = vmatprep.mubr.bf16.mxu0 0
      %826 = vmatmul.mubr.bf16.gmra.mrb[0].mxu0 %v791
      %v827 = vpop.f32.mrb[0].mxu0
      %v828 = vadd.f32 0.0, %v827
      %v829 = vpop.f32.mrb[0].mxu0
      %v830 = vpop.f32.mrb[0].mxu0
      %v831 = vadd.f32 0.0, %v830
      %v832 = vpop.f32.mrb[0].mxu0
      %833 = vdwg.mxu0
      %v834 = vadd.f32 %v760, %v828
      %v835 = vadd.f32 %v761, %v831
      %v836 = vld [vmem:[%s765] sm:$0xf]
      %v837 = vld [vmem:[%s765 + $0x4] sm:$0x1]
      %v838 = vld [vmem:[%s765 + $0x8] sm:$0xf]
      %v839 = vld [vmem:[%s765 + $0xc] sm:$0x1]
      %v841 = vshrl.u32 %v836, 16
      %v843 = vrot.slane %v841, 4
      %v844 = vshll.u32 %v836, 16
      %v846 = vrot.slane %v844, 5
      %v847 = vor.u32 %v843, %v846
      %v848 = vrot.slane %v847, 4
      %v850 = vshll.u32 %v837, 16
      %v852 = vrot.slane %v850, 5
      %v853 = vsel %vm272, %v848, %v852
      %v855 = vshrl.u32 %v838, 16
      %v857 = vrot.slane %v855, 4
      %v858 = vshll.u32 %v838, 16
      %v860 = vrot.slane %v858, 5
      %v861 = vor.u32 %v857, %v860
      %v862 = vrot.slane %v861, 4
      %v864 = vshll.u32 %v839, 16
      %v866 = vrot.slane %v864, 5
      %v867 = vsel %vm272, %v862, %v866
      %s868 = scalar_lea.vmem %s1, 112
      %v869 = vld [vmem:[%s868] sm:$0xf]
      %v870 = vld [vmem:[%s868 + $0x4] sm:$0xf]
      %v871 = vld [vmem:[%s868 + $0x8] sm:$0xf]
      %v872 = vld [vmem:[%s868 + $0xc] sm:$0xf]
      %v873 = vunpack.c.l.b16 %v853
      %v874 = vunpack.c.l.b16 %v867
      %v875 = vpack.c.b16 %v874, %v873
      %v880 = vunpack.c.l.b16 %v869
      %v881 = vunpack.c.l.b16 %v870
      %v882 = vunpack.c.l.b16 %v871
      %v883 = vunpack.c.l.b16 %v872
      %v884 = vpack.c.b16 %v881, %v880
      %v885 = vpack.c.b16 %v883, %v882
      %v889 = vsel %vm321, %v875, 0
      %891 = vmatprep.subr.bf16.mxu0 0
      %892 = vmatpush1.bf16.msra.mxu0 %v884
      %893 = vmatprep.subr.bf16.mxu0 0
      %894 = vmatpush1.bf16.msra.mxu0 %v885
      %895 = vmatprep.subr.bf16.mxu0 0
      %896 = vmatpush1.bf16.msra.mxu0 0
      %897 = vmatprep.subr.bf16.mxu0 0
      %898 = vmatpush1.bf16.msra.mxu0 0
      %899 = vmatprep.subr.bf16.mxu0 0
      %900 = vmatpush1.bf16.msra.mxu0 0
      %901 = vmatprep.subr.bf16.mxu0 0
      %902 = vmatpush1.bf16.msra.mxu0 0
      %903 = vmatprep.subr.bf16.mxu0 0
      %904 = vmatpush1.bf16.msra.mxu0 0
      %905 = vmatprep.subr.bf16.mxu0 0
      %906 = vmatpush1.bf16.msra.mxu0 0
      %907 = vmatprep.subr.bf16.mxu0 0
      %908 = vmatpush1.bf16.msra.mxu0 0
      %909 = vmatprep.subr.bf16.mxu0 0
      %910 = vmatpush1.bf16.msra.mxu0 0
      %911 = vmatprep.subr.bf16.mxu0 0
      %912 = vmatpush1.bf16.msra.mxu0 0
      %913 = vmatprep.subr.bf16.mxu0 0
      %914 = vmatpush1.bf16.msra.mxu0 0
      %915 = vmatprep.subr.bf16.mxu0 0
      %916 = vmatpush1.bf16.msra.mxu0 0
      %917 = vmatprep.subr.bf16.mxu0 0
      %918 = vmatpush1.bf16.msra.mxu0 0
      %919 = vmatprep.subr.bf16.mxu0 0
      %920 = vmatpush1.bf16.msra.mxu0 0
      %921 = vmatprep.subr.bf16.mxu0 0
      %922 = vmatpush1.bf16.msra.mxu0 0
      %923 = vmatprep.mubr.bf16.mxu0 0
      %924 = vmatmul.mubr.bf16.gmra.mrb[0].mxu0 %v889
      %v925 = vpop.f32.mrb[0].mxu0
      %v926 = vadd.f32 0.0, %v925
      %v927 = vpop.f32.mrb[0].mxu0
      %v928 = vpop.f32.mrb[0].mxu0
      %v929 = vadd.f32 0.0, %v928
      %v930 = vpop.f32.mrb[0].mxu0
      %931 = vdwg.mxu0
      %v932 = vadd.f32 %v834, %v926
      %v933 = vadd.f32 %v835, %v929
      %v934 = vld [vmem:[%s765] sm:$0xe]
      %v935 = vld [vmem:[%s765 + $0x8] sm:$0xe]
      %v940 = vrot.slane %v934, 5
      %v941 = vrot.slane %v940, 4
      %v942 = vrot.slane %v837, 5
      %v943 = vsel %vm435, %v941, %v942
      %v944 = vrot.slane %v935, 5
      %v945 = vrot.slane %v944, 4
      %v946 = vrot.slane %v839, 5
      %v947 = vsel %vm435, %v945, %v946
      %s948 = scalar_lea.vmem %s1, 128
      %v949 = vld [vmem:[%s948] sm:$0xf]
      %v950 = vld [vmem:[%s948 + $0x4] sm:$0xf]
      %v951 = vld [vmem:[%s948 + $0x8] sm:$0xf]
      %v952 = vld [vmem:[%s948 + $0xc] sm:$0xf]
      %v953 = vunpack.c.l.b16 %v943
      %v954 = vunpack.c.l.b16 %v947
      %v955 = vpack.c.b16 %v954, %v953
      %v960 = vunpack.c.l.b16 %v949
      %v961 = vunpack.c.l.b16 %v950
      %v962 = vunpack.c.l.b16 %v951
      %v963 = vunpack.c.l.b16 %v952
      %v964 = vpack.c.b16 %v961, %v960
      %v965 = vpack.c.b16 %v963, %v962
      %v969 = vsel %vm321, %v955, 0
      %971 = vmatprep.subr.bf16.mxu0 0
      %972 = vmatpush1.bf16.msra.mxu0 %v964
      %973 = vmatprep.subr.bf16.mxu0 0
      %974 = vmatpush1.bf16.msra.mxu0 %v965
      %975 = vmatprep.subr.bf16.mxu0 0
      %976 = vmatpush1.bf16.msra.mxu0 0
      %977 = vmatprep.subr.bf16.mxu0 0
      %978 = vmatpush1.bf16.msra.mxu0 0
      %979 = vmatprep.subr.bf16.mxu0 0
      %980 = vmatpush1.bf16.msra.mxu0 0
      %981 = vmatprep.subr.bf16.mxu0 0
      %982 = vmatpush1.bf16.msra.mxu0 0
      %983 = vmatprep.subr.bf16.mxu0 0
      %984 = vmatpush1.bf16.msra.mxu0 0
      %985 = vmatprep.subr.bf16.mxu0 0
      %986 = vmatpush1.bf16.msra.mxu0 0
      %987 = vmatprep.subr.bf16.mxu0 0
      %988 = vmatpush1.bf16.msra.mxu0 0
      %989 = vmatprep.subr.bf16.mxu0 0
      %990 = vmatpush1.bf16.msra.mxu0 0
      %991 = vmatprep.subr.bf16.mxu0 0
      %992 = vmatpush1.bf16.msra.mxu0 0
      %993 = vmatprep.subr.bf16.mxu0 0
      %994 = vmatpush1.bf16.msra.mxu0 0
      %995 = vmatprep.subr.bf16.mxu0 0
      %996 = vmatpush1.bf16.msra.mxu0 0
      %997 = vmatprep.subr.bf16.mxu0 0
      %998 = vmatpush1.bf16.msra.mxu0 0
      %999 = vmatprep.subr.bf16.mxu0 0
      %1000 = vmatpush1.bf16.msra.mxu0 0
      %1001 = vmatprep.subr.bf16.mxu0 0
      %1002 = vmatpush1.bf16.msra.mxu0 0
      %1003 = vmatprep.mubr.bf16.mxu0 0
      %1004 = vmatmul.mubr.bf16.gmra.mrb[0].mxu0 %v969
      %v1005 = vpop.f32.mrb[0].mxu0
      %v1006 = vadd.f32 0.0, %v1005
      %v1007 = vpop.f32.mrb[0].mxu0
      %v1008 = vpop.f32.mrb[0].mxu0
      %v1009 = vadd.f32 0.0, %v1008
      %v1010 = vpop.f32.mrb[0].mxu0
      %1011 = vdwg.mxu0
      %v1012 = vadd.f32 %v932, %v1006
      %v1013 = vadd.f32 %v933, %v1009
      %v1014 = vld [vmem:[%s2] sm:$0x1]
      %v1016 = vlaneseq
      %v1017 = vshrl.u32 %v1016, 7
      %v1018 = vsub.s32 0, %v1017
      %v1019 = vrot.slane %v1014, %v1018
      %v1021 = vadd.f32 %v1012, %v1019
      %v1022 = vadd.f32 %v1013, %v1019
      %vm1023 = vcmp.ge.f32.partialorder %v1021, 0.0
      %vm1024 = vcmp.ge.f32.partialorder %v1022, 0.0
      %v1025 = vmul.f32 %v1021, 0.1
      %v1026 = vmul.f32 %v1022, 0.1
      %v1027 = vsel %vm1023, %v1021, %v1025
      %v1028 = vsel %vm1024, %v1022, %v1026
      %v1029 = vld [vmem:[%s245] sm:$0xf]
      %v1030 = vld [vmem:[%s245 + $0x4] sm:$0xf]
      %v1031 = vunpack.c.l.bf16 %v1029
      %v1032 = vunpack.c.l.bf16 %v1030
      %v1033 = vadd.f32 %v1027, %v1031
      %v1034 = vadd.f32 %v1028, %v1032
      %v1035 = vpack.c.bf16 %v1033, %v1033
      %v1036 = vpack.c.bf16 %v1034, %v1034
      %1037 = vst [vmem:[%s255] sm:$0xf] %v1035
      %1038 = vst [vmem:[%s255 + $0x4] sm:$0xf] %v1036
      %s1039 = smul.u32 2, %s20
      %p1040 = scmp.lt.s32.totalorder %s19, 1
      %s1041 = scalar_select %p1040, %s19, 1
      %p1042 = scmp.lt.s32.totalorder %s1039, 7
      %s1043 = scalar_select %p1042, %s1039, 7
      %s1044 = smul.addr %s1041, 8
      %s1045 = sadd.s32 %s1043, %s1044
      %s1046 = smul.addr %s1045, 4
      %s1047 = scalar_lea.vmem %s4, %s1046
      // Predicated region
      $region37: #{darknet_forward.8} parent=35 // pred_check
        %p1048 = pneg %p143
      $region38: #{darknet_forward.8} parent=35 // pred_check_branch
        %1050 = sbr.rel (%p1048) target = $region40
      $region39: #{darknet_forward.8} parent=35 // pred_region
        %s1051 = smul.u32 2, %s20
      $region40: #{darknet_forward.8} parent=35 // pred_fallthru
        _
    $region36: #{darknet_forward.8} parent=5 // pred_fallthru
      _
    %p1052 = scmp.le.s32.totalorder 2, %s10
    // Predicated region
    $region41: #{darknet_forward.8} parent=5 // pred_check
      %p1053 = pneg %p1052
    $region42: #{darknet_forward.8} parent=5 // pred_check_branch
      %1055 = sbr.rel (%p1053) target = $region44
    $region43: #{darknet_forward.8} parent=5 // pred_region
      %s1056 = ssub.s32 %s10, 2
      // Predicated region
      $region45: #{darknet_forward.8} parent=43 // pred_check
        %p1057 = pneg %p149
      $region46: #{darknet_forward.8} parent=43 // pred_check_branch
        %1059 = sbr.rel (%p1057) target = $region48
      $region47: #{darknet_forward.8} parent=43 // pred_region
        %s1060 = smul.u32 2, %s22
        %p1061 = scmp.lt.s32.totalorder %s21, 1
        %s1062 = scalar_select %p1061, %s21, 1
        %p1063 = scmp.lt.s32.totalorder %s1060, 7
        %s1064 = scalar_select %p1063, %s1060, 7
        %s1065 = smul.addr %s1062, 8
        %s1066 = sadd.s32 %s1064, %s1065
        %s1067 = smul.addr %s1066, 4
        %s1068 = scalar_lea.vmem %s4, %s1067
      $region48: #{darknet_forward.8} parent=43 // pred_fallthru
        _
    $region44: #{darknet_forward.8} parent=5 // pred_fallthru
      _
  $region6: #{darknet_forward.8} parent=0 // loop_footer
    %s14 = sadd.s32 1, %s10
  $region7: #{darknet_forward.8} parent=0 // loop_footer_branch
    %9 = sbr.rel target = $region3
  $region8: #{darknet_forward.8} parent=0 // loop_exit
    _

</llo_original>
